<compile_context>
chip_gen: v6e
topology: v6e:2x2x1
jax: 0.10.0
libtpu: 0.0.40
codegen_flags: <defaults>
</compile_context>

<pallas_src>
import functools

import jax
import jax.numpy as jnp
from jax.experimental import pallas as pl
from jax.experimental.pallas import tpu as pltpu

# ----------------------------- config --------------------------------------
HIDDEN = 32          # config.hidden_size
INTER = 64           # config.intermediate_size
HEADS = 4            # config.num_attention_heads
LAYERS = 2           # config.n_layers
EPS = 1e-6           # config.eps
DROPOUT = 0.0        # config.dropout (identity at p=0)
B, L = 2, 8          # batch, sequence length
DK = HIDDEN // HEADS
WDTYPE = jnp.bfloat16  # storage dtype of matmul weights (MXU-native)

# packed weight blob layout (per layer, rows x 128 lanes):
#   rows [0,32)    cols [0,96)   : wqkv  = [wq*qn*scale | wk*kn | wv*vn]
#   rows [32,64)   cols [0,32)   : wo    (attention fc, stored (in,out))
#   rows [64,96)   cols [0,128)  : w12   = [w1*fn | w2*fn]
#   rows [96,160)  cols [0,32)   : w3
R_QKV, R_WO, R_W12, R_W3 = 0, HIDDEN, 2 * HIDDEN, 3 * HIDDEN
W_ROWS = 3 * HIDDEN + INTER                    # 160
W_COLS = max(3 * HIDDEN, 2 * INTER, HIDDEN)    # 128 (lane-dense weight loads)
# bias blob (per layer, 4 x 128 f32): row0 bqkv | row1 bo | row2 b12 | row3 b3


# ------------------------------ kernel --------------------------------------
def encoder_kernel(x_ref, w_ref, b_ref, out_ref, *, eps, seq, heads, d_k,
                   layers, blk_b, hid, inter):
    """All EncoderBlocks for `blk_b` batch elements (tokens stacked on rows)."""
    f32, bf16 = jnp.float32, jnp.bfloat16
    x = x_ref[...].astype(f32)                                  # (blk_b*seq, hid)

    for li in range(layers):                                    # static unroll
        # ----- layer weights: static slices of the VMEM-resident blobs -------
        wqkv = w_ref[li, R_QKV:R_QKV + hid, 0:3 * hid]          # (hid, 3*hid) bf16
        wo = w_ref[li, R_WO:R_WO + hid, 0:hid]                  # (hid, hid)
        w12 = w_ref[li, R_W12:R_W12 + hid, 0:2 * inter]         # (hid, 2*inter)
        w3 = w_ref[li, R_W3:R_W3 + inter, 0:hid]                # (inter, hid)
        bqkv = b_ref[li, 0:1, 0:3 * hid]                        # (1, 3*hid) f32
        bo = b_ref[li, 1:2, 0:hid]
        b12 = b_ref[li, 2:3, 0:2 * inter]
        b3 = b_ref[li, 3:4, 0:hid]

        # -------------- multi-head self-attention (mask=None path) -----------
        # One RMSNorm statistic; qn/kn/vn and 1/sqrt(d_k) are folded into wqkv.
        inv = jax.lax.rsqrt(jnp.mean(x * x, axis=-1, keepdims=True) + eps)
        xn = (x * inv).astype(bf16)
        qkv = jnp.dot(xn, wqkv, preferred_element_type=f32) + bqkv   # (T, 3*hid)

        def head_split(col0):          # -> (blk_b*heads, seq, d_k)
            return jnp.stack(
                [qkv[b * seq:(b + 1) * seq, col0 + h * d_k:col0 + (h + 1) * d_k]
                 for b in range(blk_b) for h in range(heads)], axis=0)

        q = head_split(0).astype(bf16)
        k = head_split(hid).astype(bf16)
        v = head_split(2 * hid).astype(bf16)

        s = jnp.einsum('hqd,hkd->hqk', q, k, preferred_element_type=f32)
        s = s - jnp.max(s, axis=-1, keepdims=True)
        p = jnp.exp(s)
        p = p * pl.reciprocal(jnp.sum(p, axis=-1, keepdims=True), approx=True)
        o = jnp.einsum('hqk,hkd->hqd', p.astype(bf16), v,
                       preferred_element_type=f32)          # (blk_b*heads, seq, d_k)

        # 'b h l k -> b l (h k)', then a single output-projection matmul.
        attn = jnp.concatenate(
            [jnp.concatenate([o[b * heads + h] for h in range(heads)], axis=-1)
             for b in range(blk_b)], axis=0)                # (T, hid) f32
        attn = jnp.dot(attn.astype(bf16), wo, preferred_element_type=f32) + bo
        x = attn + x                                        # residual (dropout p=0)

        # --------------------------------- FFN --------------------------------
        inv = jax.lax.rsqrt(jnp.mean(x * x, axis=-1, keepdims=True) + eps)
        xn = (x * inv).astype(bf16)                         # fn folded into w12
        g12 = jnp.dot(xn, w12, preferred_element_type=f32) + b12     # (T, 2*inter)
        g = g12[:, 0:inter]                                 # linear1 output
        u = g12[:, inter:2 * inter]                         # linear2 output
        hmid = u * (g * jax.nn.sigmoid(g))                  # SiLU gate, f32
        y = jnp.dot(hmid.astype(bf16), w3, preferred_element_type=f32) + b3
        x = y + x                                           # residual (dropout p=0)

    out_ref[...] = x.astype(out_ref.dtype)


# --------------------------- pallas wrapper ---------------------------------
def encoder_forward(x, w_blob, b_blob, mask=None):
    """x: (B, L, H) float32 pre-embedded activations (Encoder embed=False path)."""
    # TODO(synk): Encoder.forward(embed=True) calls self.embed, which is not
    # defined in the reference module; only the embed=False path is implemented.
    assert mask is None  # bidirectional (unmasked) encoder attention
    bsz, lseq, hid = x.shape
    assert hid == HEADS * DK

    # v7x has two TensorCores per chip -> keep a parallel grid over batch there;
    # single-TC v5e/v6e fold the whole batch into a single grid step.
    kind = jax.devices()[0].device_kind.lower()
    blk_b = 1 if "v7" in kind else bsz
    grid = (bsz // blk_b,)

    x2d = x.reshape(bsz * lseq, hid)           # tokens on rows (free reshape)
    kern = functools.partial(encoder_kernel, eps=EPS, seq=lseq, heads=HEADS,
                             d_k=DK, layers=LAYERS, blk_b=blk_b, hid=hid,
                             inter=INTER)
    out = pl.pallas_call(
        kern,
        out_shape=jax.ShapeDtypeStruct((bsz * lseq, hid), x.dtype),
        grid=grid,
        in_specs=[pl.BlockSpec((blk_b * lseq, hid), lambda i: (i, 0)),
                  pl.BlockSpec(w_blob.shape, lambda i: (0, 0, 0)),
                  pl.BlockSpec(b_blob.shape, lambda i: (0, 0, 0))],
        out_specs=pl.BlockSpec((blk_b * lseq, hid), lambda i: (i, 0)),
        compiler_params=pltpu.CompilerParams(
            dimension_semantics=("parallel",)),
    )(x2d, w_blob, b_blob)
    return out.reshape(bsz, lseq, hid)


def position_encode(x, d_model):
    """Plain-JAX port of Encoder.position_encode (unused: embed=False path)."""
    seq_len = x.shape[1]
    positions = jnp.arange(seq_len, dtype=jnp.float32)[:, None]
    div_term = 10000.0 ** (jnp.arange(0, d_model, 2, dtype=jnp.float32) / d_model)
    pe = jnp.zeros((seq_len, d_model), jnp.float32)
    pe = pe.at[:, 0::2].set(jnp.sin(positions / div_term))
    pe = pe.at[:, 1::2].set(jnp.cos(positions / div_term))
    return x + pe[None]


# ------------------------- parameter construction ---------------------------
def init_params(key):
    """Synthetic parameters; returns packed kernel blobs + raw f32 reference params."""
    def nrm(k, shape, scale=0.02):
        return scale * jax.random.normal(k, shape, dtype=jnp.float32)

    w_blob = jnp.zeros((LAYERS, W_ROWS, W_COLS), jnp.float32)
    b_blob = jnp.zeros((LAYERS, 4, W_COLS), jnp.float32)
    raw = []
    scale = 1.0 / (DK ** 0.5)
    layer_keys = jax.random.split(key, LAYERS)
    for li in range(LAYERS):
        ks = jax.random.split(layer_keys[li], 14)
        # RMSNorm weights (torch init = ones)
        qn = kn = vn = fn = jnp.ones((HIDDEN,), jnp.float32)
        # all linear weights stored (in, out) so y = x @ W + b
        wq, bq = nrm(ks[0], (HIDDEN, HIDDEN)), nrm(ks[1], (HIDDEN,))
        wk, bk = nrm(ks[2], (HIDDEN, HIDDEN)), nrm(ks[3], (HIDDEN,))
        wv, bv = nrm(ks[4], (HIDDEN, HIDDEN)), nrm(ks[5], (HIDDEN,))
        wo, bo = nrm(ks[6], (HIDDEN, HIDDEN)), nrm(ks[7], (HIDDEN,))
        w1, b1 = nrm(ks[8], (HIDDEN, INTER)), nrm(ks[9], (INTER,))
        w2, b2 = nrm(ks[10], (HIDDEN, INTER)), nrm(ks[11], (INTER,))
        w3, b3 = nrm(ks[12], (INTER, HIDDEN)), nrm(ks[13], (HIDDEN,))
        raw.append(dict(qn=qn, kn=kn, vn=vn, fn=fn, wq=wq, bq=bq, wk=wk, bk=bk,
                        wv=wv, bv=bv, wo=wo, bo=bo, w1=w1, b1=b1, w2=w2, b2=b2,
                        w3=w3, b3=b3))
        # fold RMSNorm weights + 1/sqrt(d_k) score scale into the matmul weights
        wq_f, bq_f = qn[:, None] * wq * scale, bq * scale   # scale wq AND bq
        wk_f, wv_f = kn[:, None] * wk, vn[:, None] * wv
        w1_f, w2_f = fn[:, None] * w1, fn[:, None] * w2
        wqkv = jnp.concatenate([wq_f, wk_f, wv_f], axis=1)  # (32, 96)
        w12 = jnp.concatenate([w1_f, w2_f], axis=1)         # (32, 128)
        w_blob = w_blob.at[li, R_QKV:R_QKV + HIDDEN, 0:3 * HIDDEN].set(wqkv)
        w_blob = w_blob.at[li, R_WO:R_WO + HIDDEN, 0:HIDDEN].set(wo)
        w_blob = w_blob.at[li, R_W12:R_W12 + HIDDEN, 0:2 * INTER].set(w12)
        w_blob = w_blob.at[li, R_W3:R_W3 + INTER, 0:HIDDEN].set(w3)
        b_blob = b_blob.at[li, 0, 0:3 * HIDDEN].set(jnp.concatenate([bq_f, bk, bv]))
        b_blob = b_blob.at[li, 1, 0:HIDDEN].set(bo)
        b_blob = b_blob.at[li, 2, 0:2 * INTER].set(jnp.concatenate([b1, b2]))
        b_blob = b_blob.at[li, 3, 0:HIDDEN].set(b3)
    return {"w": w_blob.astype(WDTYPE), "b": b_blob, "raw": raw}


# ---------------------- pure-JAX f32 reference (unfolded) -------------------
def encoder_reference(x, raw):
    def rmsnorm(v, w):
        return v / jnp.sqrt(jnp.mean(v * v, axis=-1, keepdims=True) + EPS) * w

    for prm in raw:
        q = rmsnorm(x, prm["qn"]) @ prm["wq"] + prm["bq"]
        k = rmsnorm(x, prm["kn"]) @ prm["wk"] + prm["bk"]
        v = rmsnorm(x, prm["vn"]) @ prm["wv"] + prm["bv"]
        bsz, lseq, hid = q.shape

        def split(t):   # 'b l (h k) -> b h l k'
            return t.reshape(bsz, lseq, HEADS, DK).transpose(0, 2, 1, 3)

        qh, kh, vh = split(q), split(k), split(v)
        s = jnp.einsum('bhqd,bhkd->bhqk', qh, kh) / (DK ** 0.5)
        pattn = jax.nn.softmax(s, axis=-1)
        o = jnp.einsum('bhqk,bhkd->bhqd', pattn, vh)
        o = o.transpose(0, 2, 1, 3).reshape(bsz, lseq, hid)
        x = o @ prm["wo"] + prm["bo"] + x
        xn = rmsnorm(x, prm["fn"])
        gate = jax.nn.silu(xn @ prm["w1"] + prm["b1"])
        h_ = (xn @ prm["w2"] + prm["b2"]) * gate
        x = h_ @ prm["w3"] + prm["b3"] + x
    return x


# --------------------------------- main --------------------------------------
if __name__ == "__main__":
    key = jax.random.PRNGKey(0)
    k_x, k_par = jax.random.split(key)

    # Pre-embedded activations (Encoder embed=False path, as used by the ViT).
    x = jax.random.normal(k_x, (B, L, HIDDEN), dtype=jnp.float32)
    params = init_params(k_par)

    out = encoder_forward(x, params["w"], params["b"], mask=None)
    out = jax.block_until_ready(out)
    assert out.shape == (B, L, HIDDEN) and out.dtype == jnp.float32
    assert bool(jnp.all(jnp.isfinite(out)))

    ref = encoder_reference(x, params["raw"])
    max_err = float(jnp.max(jnp.abs(out - ref)))
    assert max_err < 5e-2, f"max abs error vs f32 reference: {max_err}"
    print("KERNEL_OK")
</pallas_src>

<mosaic_0001>
module attributes {stable_mosaic.version = 11 : i64} {
  func.func @encoder_kernel(%arg0: i32, %arg1: memref<16x32xf32, #tpu.memory_space<vmem>>, %arg2: memref<2x160x128xbf16, #tpu.memory_space<vmem>>, %arg3: memref<2x4x128xf32, #tpu.memory_space<vmem>>, %arg4: memref<16x32xf32, #tpu.memory_space<vmem>>) attributes {dimension_semantics = [#tpu.dimension_semantics<parallel>], iteration_bounds = array<i64: 1>, scalar_prefetch = 0 : i64, scratch_operands = 0 : i64, tpu.core_type = #tpu.core_type<tc>, window_params = [{transform_indices = @transform_0, window_bounds = array<i64: 16, 32>}, {pipeline_mode = #tpu.pipeline_mode<synchronous>, transform_indices = @transform_1, window_bounds = array<i64: 2, 160, 128>}, {pipeline_mode = #tpu.pipeline_mode<synchronous>, transform_indices = @transform_2, window_bounds = array<i64: 2, 4, 128>}, {transform_indices = @transform_3, window_bounds = array<i64: 16, 32>}]} {
    %c0 = arith.constant 0 : index
    %c0_0 = arith.constant 0 : index
    %0 = vector.load %arg1[%c0, %c0_0] : memref<16x32xf32, #tpu.memory_space<vmem>>, vector<16x32xf32>
    %c0_1 = arith.constant 0 : index
    %c0_2 = arith.constant 0 : index
    %c0_3 = arith.constant 0 : index
    %1 = vector.load %arg2[%c0_1, %c0_2, %c0_3] : memref<2x160x128xbf16, #tpu.memory_space<vmem>>, vector<1x32x96xbf16>
    %2 = vector.shape_cast %1 : vector<1x32x96xbf16> to vector<32x96xbf16>
    %c0_4 = arith.constant 0 : index
    %c32 = arith.constant 32 : index
    %c0_5 = arith.constant 0 : index
    %3 = vector.load %arg2[%c0_4, %c32, %c0_5] : memref<2x160x128xbf16, #tpu.memory_space<vmem>>, vector<1x32x32xbf16>
    %4 = vector.shape_cast %3 : vector<1x32x32xbf16> to vector<32x32xbf16>
    %c0_6 = arith.constant 0 : index
    %c64 = arith.constant 64 : index
    %c0_7 = arith.constant 0 : index
    %5 = vector.load %arg2[%c0_6, %c64, %c0_7] : memref<2x160x128xbf16, #tpu.memory_space<vmem>>, vector<1x32x128xbf16>
    %6 = vector.shape_cast %5 : vector<1x32x128xbf16> to vector<32x128xbf16>
    %c0_8 = arith.constant 0 : index
    %c96 = arith.constant 96 : index
    %c0_9 = arith.constant 0 : index
    %7 = vector.load %arg2[%c0_8, %c96, %c0_9] : memref<2x160x128xbf16, #tpu.memory_space<vmem>>, vector<1x64x32xbf16>
    %8 = vector.shape_cast %7 : vector<1x64x32xbf16> to vector<64x32xbf16>
    %c0_10 = arith.constant 0 : index
    %c0_11 = arith.constant 0 : index
    %c0_12 = arith.constant 0 : index
    %9 = vector.load %arg3[%c0_10, %c0_11, %c0_12] : memref<2x4x128xf32, #tpu.memory_space<vmem>>, vector<1x1x96xf32>
    %10 = vector.shape_cast %9 : vector<1x1x96xf32> to vector<1x96xf32>
    %c0_13 = arith.constant 0 : index
    %c1 = arith.constant 1 : index
    %c0_14 = arith.constant 0 : index
    %11 = vector.load %arg3[%c0_13, %c1, %c0_14] : memref<2x4x128xf32, #tpu.memory_space<vmem>>, vector<1x1x32xf32>
    %12 = vector.shape_cast %11 : vector<1x1x32xf32> to vector<1x32xf32>
    %c0_15 = arith.constant 0 : index
    %c2 = arith.constant 2 : index
    %c0_16 = arith.constant 0 : index
    %13 = vector.load %arg3[%c0_15, %c2, %c0_16] : memref<2x4x128xf32, #tpu.memory_space<vmem>>, vector<1x1x128xf32>
    %14 = vector.shape_cast %13 : vector<1x1x128xf32> to vector<1x128xf32>
    %c0_17 = arith.constant 0 : index
    %c3 = arith.constant 3 : index
    %c0_18 = arith.constant 0 : index
    %15 = vector.load %arg3[%c0_17, %c3, %c0_18] : memref<2x4x128xf32, #tpu.memory_space<vmem>>, vector<1x1x32xf32>
    %16 = vector.shape_cast %15 : vector<1x1x32xf32> to vector<1x32xf32>
    %17 = arith.mulf %0, %0 : vector<16x32xf32>
    %cst = arith.constant dense<0.000000e+00> : vector<16xf32>
    %18 = vector.multi_reduction <add>, %17, %cst [1] : vector<16x32xf32> to vector<16xf32>
    %19 = vector.shape_cast %18 : vector<16xf32> to vector<16x1xf32>
    %cst_19 = arith.constant 3.200000e+01 : f32
    %20 = vector.broadcast %cst_19 : f32 to vector<16x1xf32>
    %21 = arith.divf %19, %20 : vector<16x1xf32>
    %cst_20 = arith.constant 9.99999997E-7 : f32
    %22 = vector.broadcast %cst_20 : f32 to vector<16x1xf32>
    %23 = arith.addf %21, %22 : vector<16x1xf32>
    %24 = math.rsqrt %23 : vector<16x1xf32>
    %25 = vector.broadcast %24 : vector<16x1xf32> to vector<16x32xf32>
    %26 = arith.mulf %0, %25 : vector<16x32xf32>
    %27 = arith.truncf %26 : vector<16x32xf32> to vector<16x32xbf16>
    %cst_21 = arith.constant dense<0.000000e+00> : vector<16x96xf32>
    %28 = tpu.matmul %27, %2, %cst_21 {dimension_numbers = #tpu.dot_dimension_numbers<[1], [0], [0], [1], [0, 0, 1, 1], [], []>} : vector<16x32xbf16>, vector<32x96xbf16>, vector<16x96xf32> -> vector<16x96xf32>
    %29 = vector.broadcast %10 : vector<1x96xf32> to vector<16x96xf32>
    %30 = arith.addf %28, %29 : vector<16x96xf32>
    %31 = vector.extract_strided_slice %30 {offsets = [0, 0], sizes = [8, 8], strides = [1, 1]} : vector<16x96xf32> to vector<8x8xf32>
    %32 = vector.extract_strided_slice %30 {offsets = [0, 8], sizes = [8, 8], strides = [1, 1]} : vector<16x96xf32> to vector<8x8xf32>
    %33 = vector.extract_strided_slice %30 {offsets = [0, 16], sizes = [8, 8], strides = [1, 1]} : vector<16x96xf32> to vector<8x8xf32>
    %34 = vector.extract_strided_slice %30 {offsets = [0, 24], sizes = [8, 8], strides = [1, 1]} : vector<16x96xf32> to vector<8x8xf32>
    %35 = vector.extract_strided_slice %30 {offsets = [8, 0], sizes = [8, 8], strides = [1, 1]} : vector<16x96xf32> to vector<8x8xf32>
    %36 = vector.extract_strided_slice %30 {offsets = [8, 8], sizes = [8, 8], strides = [1, 1]} : vector<16x96xf32> to vector<8x8xf32>
    %37 = vector.extract_strided_slice %30 {offsets = [8, 16], sizes = [8, 8], strides = [1, 1]} : vector<16x96xf32> to vector<8x8xf32>
    %38 = vector.extract_strided_slice %30 {offsets = [8, 24], sizes = [8, 8], strides = [1, 1]} : vector<16x96xf32> to vector<8x8xf32>
    %39 = vector.shape_cast %31 : vector<8x8xf32> to vector<1x8x8xf32>
    %40 = vector.shape_cast %32 : vector<8x8xf32> to vector<1x8x8xf32>
    %41 = vector.shape_cast %33 : vector<8x8xf32> to vector<1x8x8xf32>
    %42 = vector.shape_cast %34 : vector<8x8xf32> to vector<1x8x8xf32>
    %43 = vector.shape_cast %35 : vector<8x8xf32> to vector<1x8x8xf32>
    %44 = vector.shape_cast %36 : vector<8x8xf32> to vector<1x8x8xf32>
    %45 = vector.shape_cast %37 : vector<8x8xf32> to vector<1x8x8xf32>
    %46 = vector.shape_cast %38 : vector<8x8xf32> to vector<1x8x8xf32>
    %47 = tpu.concatenate %39, %40, %41, %42, %43, %44, %45, %46 in 0 : vector<1x8x8xf32>, vector<1x8x8xf32>, vector<1x8x8xf32>, vector<1x8x8xf32>, vector<1x8x8xf32>, vector<1x8x8xf32>, vector<1x8x8xf32>, vector<1x8x8xf32> -> vector<8x8x8xf32>
    %48 = arith.truncf %47 : vector<8x8x8xf32> to vector<8x8x8xbf16>
    %49 = vector.extract_strided_slice %30 {offsets = [0, 32], sizes = [8, 8], strides = [1, 1]} : vector<16x96xf32> to vector<8x8xf32>
    %50 = vector.extract_strided_slice %30 {offsets = [0, 40], sizes = [8, 8], strides = [1, 1]} : vector<16x96xf32> to vector<8x8xf32>
    %51 = vector.extract_strided_slice %30 {offsets = [0, 48], sizes = [8, 8], strides = [1, 1]} : vector<16x96xf32> to vector<8x8xf32>
    %52 = vector.extract_strided_slice %30 {offsets = [0, 56], sizes = [8, 8], strides = [1, 1]} : vector<16x96xf32> to vector<8x8xf32>
    %53 = vector.extract_strided_slice %30 {offsets = [8, 32], sizes = [8, 8], strides = [1, 1]} : vector<16x96xf32> to vector<8x8xf32>
    %54 = vector.extract_strided_slice %30 {offsets = [8, 40], sizes = [8, 8], strides = [1, 1]} : vector<16x96xf32> to vector<8x8xf32>
    %55 = vector.extract_strided_slice %30 {offsets = [8, 48], sizes = [8, 8], strides = [1, 1]} : vector<16x96xf32> to vector<8x8xf32>
    %56 = vector.extract_strided_slice %30 {offsets = [8, 56], sizes = [8, 8], strides = [1, 1]} : vector<16x96xf32> to vector<8x8xf32>
    %57 = vector.shape_cast %49 : vector<8x8xf32> to vector<1x8x8xf32>
    %58 = vector.shape_cast %50 : vector<8x8xf32> to vector<1x8x8xf32>
    %59 = vector.shape_cast %51 : vector<8x8xf32> to vector<1x8x8xf32>
    %60 = vector.shape_cast %52 : vector<8x8xf32> to vector<1x8x8xf32>
    %61 = vector.shape_cast %53 : vector<8x8xf32> to vector<1x8x8xf32>
    %62 = vector.shape_cast %54 : vector<8x8xf32> to vector<1x8x8xf32>
    %63 = vector.shape_cast %55 : vector<8x8xf32> to vector<1x8x8xf32>
    %64 = vector.shape_cast %56 : vector<8x8xf32> to vector<1x8x8xf32>
    %65 = tpu.concatenate %57, %58, %59, %60, %61, %62, %63, %64 in 0 : vector<1x8x8xf32>, vector<1x8x8xf32>, vector<1x8x8xf32>, vector<1x8x8xf32>, vector<1x8x8xf32>, vector<1x8x8xf32>, vector<1x8x8xf32>, vector<1x8x8xf32> -> vector<8x8x8xf32>
    %66 = arith.truncf %65 : vector<8x8x8xf32> to vector<8x8x8xbf16>
    %67 = vector.extract_strided_slice %30 {offsets = [0, 64], sizes = [8, 8], strides = [1, 1]} : vector<16x96xf32> to vector<8x8xf32>
    %68 = vector.extract_strided_slice %30 {offsets = [0, 72], sizes = [8, 8], strides = [1, 1]} : vector<16x96xf32> to vector<8x8xf32>
    %69 = vector.extract_strided_slice %30 {offsets = [0, 80], sizes = [8, 8], strides = [1, 1]} : vector<16x96xf32> to vector<8x8xf32>
    %70 = vector.extract_strided_slice %30 {offsets = [0, 88], sizes = [8, 8], strides = [1, 1]} : vector<16x96xf32> to vector<8x8xf32>
    %71 = vector.extract_strided_slice %30 {offsets = [8, 64], sizes = [8, 8], strides = [1, 1]} : vector<16x96xf32> to vector<8x8xf32>
    %72 = vector.extract_strided_slice %30 {offsets = [8, 72], sizes = [8, 8], strides = [1, 1]} : vector<16x96xf32> to vector<8x8xf32>
    %73 = vector.extract_strided_slice %30 {offsets = [8, 80], sizes = [8, 8], strides = [1, 1]} : vector<16x96xf32> to vector<8x8xf32>
    %74 = vector.extract_strided_slice %30 {offsets = [8, 88], sizes = [8, 8], strides = [1, 1]} : vector<16x96xf32> to vector<8x8xf32>
    %75 = vector.shape_cast %67 : vector<8x8xf32> to vector<1x8x8xf32>
    %76 = vector.shape_cast %68 : vector<8x8xf32> to vector<1x8x8xf32>
    %77 = vector.shape_cast %69 : vector<8x8xf32> to vector<1x8x8xf32>
    %78 = vector.shape_cast %70 : vector<8x8xf32> to vector<1x8x8xf32>
    %79 = vector.shape_cast %71 : vector<8x8xf32> to vector<1x8x8xf32>
    %80 = vector.shape_cast %72 : vector<8x8xf32> to vector<1x8x8xf32>
    %81 = vector.shape_cast %73 : vector<8x8xf32> to vector<1x8x8xf32>
    %82 = vector.shape_cast %74 : vector<8x8xf32> to vector<1x8x8xf32>
    %83 = tpu.concatenate %75, %76, %77, %78, %79, %80, %81, %82 in 0 : vector<1x8x8xf32>, vector<1x8x8xf32>, vector<1x8x8xf32>, vector<1x8x8xf32>, vector<1x8x8xf32>, vector<1x8x8xf32>, vector<1x8x8xf32>, vector<1x8x8xf32> -> vector<8x8x8xf32>
    %84 = arith.truncf %83 : vector<8x8x8xf32> to vector<8x8x8xbf16>
    "tpu.trace_start"() <{level = 10 : i32, message = "hqd,hkd->hqk"}> : () -> ()
    %cst_22 = arith.constant dense<0.000000e+00> : vector<8x8x8xf32>
    %85 = tpu.matmul %48, %66, %cst_22 {dimension_numbers = #tpu.dot_dimension_numbers<[2], [2], [1], [1], [0, 0, 0, 1, 1, 1], [0], [0]>} : vector<8x8x8xbf16>, vector<8x8x8xbf16>, vector<8x8x8xf32> -> vector<8x8x8xf32>
    "tpu.trace_stop"() : () -> ()
    %cst_23 = arith.constant dense<0xFF800000> : vector<8x8xf32>
    %86 = vector.multi_reduction <maximumf>, %85, %cst_23 [2] : vector<8x8x8xf32> to vector<8x8xf32>
    %87 = vector.shape_cast %86 : vector<8x8xf32> to vector<8x8x1xf32>
    %88 = vector.broadcast %87 : vector<8x8x1xf32> to vector<8x8x8xf32>
    %89 = arith.subf %85, %88 : vector<8x8x8xf32>
    %90 = math.exp %89 : vector<8x8x8xf32>
    %cst_24 = arith.constant dense<0.000000e+00> : vector<8x8xf32>
    %91 = vector.multi_reduction <add>, %90, %cst_24 [2] : vector<8x8x8xf32> to vector<8x8xf32>
    %92 = vector.shape_cast %91 : vector<8x8xf32> to vector<8x8x1xf32>
    %93 = tpu.reciprocal %92 {approx = true} : vector<8x8x1xf32> -> vector<8x8x1xf32>
    %94 = vector.broadcast %93 : vector<8x8x1xf32> to vector<8x8x8xf32>
    %95 = arith.mulf %90, %94 : vector<8x8x8xf32>
    %96 = arith.truncf %95 : vector<8x8x8xf32> to vector<8x8x8xbf16>
    "tpu.trace_start"() <{level = 10 : i32, message = "hqk,hkd->hqd"}> : () -> ()
    %cst_25 = arith.constant dense<0.000000e+00> : vector<8x8x8xf32>
    %97 = tpu.matmul %96, %84, %cst_25 {dimension_numbers = #tpu.dot_dimension_numbers<[2], [1], [1], [2], [0, 0, 0, 1, 1, 2], [0], [0]>} : vector<8x8x8xbf16>, vector<8x8x8xbf16>, vector<8x8x8xf32> -> vector<8x8x8xf32>
    "tpu.trace_stop"() : () -> ()
    %98 = vector.extract_strided_slice %97 {offsets = [0, 0, 0], sizes = [1, 8, 8], strides = [1, 1, 1]} : vector<8x8x8xf32> to vector<1x8x8xf32>
    %99 = vector.shape_cast %98 : vector<1x8x8xf32> to vector<8x8xf32>
    %100 = vector.extract_strided_slice %97 {offsets = [1, 0, 0], sizes = [1, 8, 8], strides = [1, 1, 1]} : vector<8x8x8xf32> to vector<1x8x8xf32>
    %101 = vector.shape_cast %100 : vector<1x8x8xf32> to vector<8x8xf32>
    %102 = vector.extract_strided_slice %97 {offsets = [2, 0, 0], sizes = [1, 8, 8], strides = [1, 1, 1]} : vector<8x8x8xf32> to vector<1x8x8xf32>
    %103 = vector.shape_cast %102 : vector<1x8x8xf32> to vector<8x8xf32>
    %104 = vector.extract_strided_slice %97 {offsets = [3, 0, 0], sizes = [1, 8, 8], strides = [1, 1, 1]} : vector<8x8x8xf32> to vector<1x8x8xf32>
    %105 = vector.shape_cast %104 : vector<1x8x8xf32> to vector<8x8xf32>
    %106 = tpu.concatenate %99, %101, %103, %105 in 1 : vector<8x8xf32>, vector<8x8xf32>, vector<8x8xf32>, vector<8x8xf32> -> vector<8x32xf32>
    %107 = vector.extract_strided_slice %97 {offsets = [4, 0, 0], sizes = [1, 8, 8], strides = [1, 1, 1]} : vector<8x8x8xf32> to vector<1x8x8xf32>
    %108 = vector.shape_cast %107 : vector<1x8x8xf32> to vector<8x8xf32>
    %109 = vector.extract_strided_slice %97 {offsets = [5, 0, 0], sizes = [1, 8, 8], strides = [1, 1, 1]} : vector<8x8x8xf32> to vector<1x8x8xf32>
    %110 = vector.shape_cast %109 : vector<1x8x8xf32> to vector<8x8xf32>
    %111 = vector.extract_strided_slice %97 {offsets = [6, 0, 0], sizes = [1, 8, 8], strides = [1, 1, 1]} : vector<8x8x8xf32> to vector<1x8x8xf32>
    %112 = vector.shape_cast %111 : vector<1x8x8xf32> to vector<8x8xf32>
    %113 = vector.extract_strided_slice %97 {offsets = [7, 0, 0], sizes = [1, 8, 8], strides = [1, 1, 1]} : vector<8x8x8xf32> to vector<1x8x8xf32>
    %114 = vector.shape_cast %113 : vector<1x8x8xf32> to vector<8x8xf32>
    %115 = tpu.concatenate %108, %110, %112, %114 in 1 : vector<8x8xf32>, vector<8x8xf32>, vector<8x8xf32>, vector<8x8xf32> -> vector<8x32xf32>
    %116 = tpu.concatenate %106, %115 in 0 : vector<8x32xf32>, vector<8x32xf32> -> vector<16x32xf32>
    %117 = arith.truncf %116 : vector<16x32xf32> to vector<16x32xbf16>
    %cst_26 = arith.constant dense<0.000000e+00> : vector<16x32xf32>
    %118 = tpu.matmul %117, %4, %cst_26 {dimension_numbers = #tpu.dot_dimension_numbers<[1], [0], [0], [1], [0, 0, 1, 1], [], []>} : vector<16x32xbf16>, vector<32x32xbf16>, vector<16x32xf32> -> vector<16x32xf32>
    %119 = vector.broadcast %12 : vector<1x32xf32> to vector<16x32xf32>
    %120 = arith.addf %118, %119 : vector<16x32xf32>
    %121 = arith.addf %120, %0 : vector<16x32xf32>
    %122 = arith.mulf %121, %121 : vector<16x32xf32>
    %cst_27 = arith.constant dense<0.000000e+00> : vector<16xf32>
    %123 = vector.multi_reduction <add>, %122, %cst_27 [1] : vector<16x32xf32> to vector<16xf32>
    %124 = vector.shape_cast %123 : vector<16xf32> to vector<16x1xf32>
    %cst_28 = arith.constant 3.200000e+01 : f32
    %125 = vector.broadcast %cst_28 : f32 to vector<16x1xf32>
    %126 = arith.divf %124, %125 : vector<16x1xf32>
    %cst_29 = arith.constant 9.99999997E-7 : f32
    %127 = vector.broadcast %cst_29 : f32 to vector<16x1xf32>
    %128 = arith.addf %126, %127 : vector<16x1xf32>
    %129 = math.rsqrt %128 : vector<16x1xf32>
    %130 = vector.broadcast %129 : vector<16x1xf32> to vector<16x32xf32>
    %131 = arith.mulf %121, %130 : vector<16x32xf32>
    %132 = arith.truncf %131 : vector<16x32xf32> to vector<16x32xbf16>
    %cst_30 = arith.constant dense<0.000000e+00> : vector<16x128xf32>
    %133 = tpu.matmul %132, %6, %cst_30 {dimension_numbers = #tpu.dot_dimension_numbers<[1], [0], [0], [1], [0, 0, 1, 1], [], []>} : vector<16x32xbf16>, vector<32x128xbf16>, vector<16x128xf32> -> vector<16x128xf32>
    %134 = vector.broadcast %14 : vector<1x128xf32> to vector<16x128xf32>
    %135 = arith.addf %133, %134 : vector<16x128xf32>
    %136 = vector.extract_strided_slice %135 {offsets = [0, 0], sizes = [16, 64], strides = [1, 1]} : vector<16x128xf32> to vector<16x64xf32>
    %137 = vector.extract_strided_slice %135 {offsets = [0, 64], sizes = [16, 64], strides = [1, 1]} : vector<16x128xf32> to vector<16x64xf32>
    %138 = arith.negf %136 : vector<16x64xf32>
    %139 = math.exp %138 : vector<16x64xf32>
    %cst_31 = arith.constant 1.000000e+00 : f32
    %140 = vector.broadcast %cst_31 : f32 to vector<16x64xf32>
    %141 = arith.addf %140, %139 : vector<16x64xf32>
    %142 = arith.divf %140, %141 : vector<16x64xf32>
    %143 = arith.mulf %136, %142 : vector<16x64xf32>
    %144 = arith.mulf %137, %143 : vector<16x64xf32>
    %145 = arith.truncf %144 : vector<16x64xf32> to vector<16x64xbf16>
    %cst_32 = arith.constant dense<0.000000e+00> : vector<16x32xf32>
    %146 = tpu.matmul %145, %8, %cst_32 {dimension_numbers = #tpu.dot_dimension_numbers<[1], [0], [0], [1], [0, 0, 1, 1], [], []>} : vector<16x64xbf16>, vector<64x32xbf16>, vector<16x32xf32> -> vector<16x32xf32>
    %147 = vector.broadcast %16 : vector<1x32xf32> to vector<16x32xf32>
    %148 = arith.addf %146, %147 : vector<16x32xf32>
    %149 = arith.addf %148, %121 : vector<16x32xf32>
    %c1_33 = arith.constant 1 : index
    %c0_34 = arith.constant 0 : index
    %c0_35 = arith.constant 0 : index
    %150 = vector.load %arg2[%c1_33, %c0_34, %c0_35] : memref<2x160x128xbf16, #tpu.memory_space<vmem>>, vector<1x32x96xbf16>
    %151 = vector.shape_cast %150 : vector<1x32x96xbf16> to vector<32x96xbf16>
    %c1_36 = arith.constant 1 : index
    %c32_37 = arith.constant 32 : index
    %c0_38 = arith.constant 0 : index
    %152 = vector.load %arg2[%c1_36, %c32_37, %c0_38] : memref<2x160x128xbf16, #tpu.memory_space<vmem>>, vector<1x32x32xbf16>
    %153 = vector.shape_cast %152 : vector<1x32x32xbf16> to vector<32x32xbf16>
    %c1_39 = arith.constant 1 : index
    %c64_40 = arith.constant 64 : index
    %c0_41 = arith.constant 0 : index
    %154 = vector.load %arg2[%c1_39, %c64_40, %c0_41] : memref<2x160x128xbf16, #tpu.memory_space<vmem>>, vector<1x32x128xbf16>
    %155 = vector.shape_cast %154 : vector<1x32x128xbf16> to vector<32x128xbf16>
    %c1_42 = arith.constant 1 : index
    %c96_43 = arith.constant 96 : index
    %c0_44 = arith.constant 0 : index
    %156 = vector.load %arg2[%c1_42, %c96_43, %c0_44] : memref<2x160x128xbf16, #tpu.memory_space<vmem>>, vector<1x64x32xbf16>
    %157 = vector.shape_cast %156 : vector<1x64x32xbf16> to vector<64x32xbf16>
    %c1_45 = arith.constant 1 : index
    %c0_46 = arith.constant 0 : index
    %c0_47 = arith.constant 0 : index
    %158 = vector.load %arg3[%c1_45, %c0_46, %c0_47] : memref<2x4x128xf32, #tpu.memory_space<vmem>>, vector<1x1x96xf32>
    %159 = vector.shape_cast %158 : vector<1x1x96xf32> to vector<1x96xf32>
    %c1_48 = arith.constant 1 : index
    %c1_49 = arith.constant 1 : index
    %c0_50 = arith.constant 0 : index
    %160 = vector.load %arg3[%c1_48, %c1_49, %c0_50] : memref<2x4x128xf32, #tpu.memory_space<vmem>>, vector<1x1x32xf32>
    %161 = vector.shape_cast %160 : vector<1x1x32xf32> to vector<1x32xf32>
    %c1_51 = arith.constant 1 : index
    %c2_52 = arith.constant 2 : index
    %c0_53 = arith.constant 0 : index
    %162 = vector.load %arg3[%c1_51, %c2_52, %c0_53] : memref<2x4x128xf32, #tpu.memory_space<vmem>>, vector<1x1x128xf32>
    %163 = vector.shape_cast %162 : vector<1x1x128xf32> to vector<1x128xf32>
    %c1_54 = arith.constant 1 : index
    %c3_55 = arith.constant 3 : index
    %c0_56 = arith.constant 0 : index
    %164 = vector.load %arg3[%c1_54, %c3_55, %c0_56] : memref<2x4x128xf32, #tpu.memory_space<vmem>>, vector<1x1x32xf32>
    %165 = vector.shape_cast %164 : vector<1x1x32xf32> to vector<1x32xf32>
    %166 = arith.mulf %149, %149 : vector<16x32xf32>
    %cst_57 = arith.constant dense<0.000000e+00> : vector<16xf32>
    %167 = vector.multi_reduction <add>, %166, %cst_57 [1] : vector<16x32xf32> to vector<16xf32>
    %168 = vector.shape_cast %167 : vector<16xf32> to vector<16x1xf32>
    %cst_58 = arith.constant 3.200000e+01 : f32
    %169 = vector.broadcast %cst_58 : f32 to vector<16x1xf32>
    %170 = arith.divf %168, %169 : vector<16x1xf32>
    %cst_59 = arith.constant 9.99999997E-7 : f32
    %171 = vector.broadcast %cst_59 : f32 to vector<16x1xf32>
    %172 = arith.addf %170, %171 : vector<16x1xf32>
    %173 = math.rsqrt %172 : vector<16x1xf32>
    %174 = vector.broadcast %173 : vector<16x1xf32> to vector<16x32xf32>
    %175 = arith.mulf %149, %174 : vector<16x32xf32>
    %176 = arith.truncf %175 : vector<16x32xf32> to vector<16x32xbf16>
    %cst_60 = arith.constant dense<0.000000e+00> : vector<16x96xf32>
    %177 = tpu.matmul %176, %151, %cst_60 {dimension_numbers = #tpu.dot_dimension_numbers<[1], [0], [0], [1], [0, 0, 1, 1], [], []>} : vector<16x32xbf16>, vector<32x96xbf16>, vector<16x96xf32> -> vector<16x96xf32>
    %178 = vector.broadcast %159 : vector<1x96xf32> to vector<16x96xf32>
    %179 = arith.addf %177, %178 : vector<16x96xf32>
    %180 = vector.extract_strided_slice %179 {offsets = [0, 0], sizes = [8, 8], strides = [1, 1]} : vector<16x96xf32> to vector<8x8xf32>
    %181 = vector.extract_strided_slice %179 {offsets = [0, 8], sizes = [8, 8], strides = [1, 1]} : vector<16x96xf32> to vector<8x8xf32>
    %182 = vector.extract_strided_slice %179 {offsets = [0, 16], sizes = [8, 8], strides = [1, 1]} : vector<16x96xf32> to vector<8x8xf32>
    %183 = vector.extract_strided_slice %179 {offsets = [0, 24], sizes = [8, 8], strides = [1, 1]} : vector<16x96xf32> to vector<8x8xf32>
    %184 = vector.extract_strided_slice %179 {offsets = [8, 0], sizes = [8, 8], strides = [1, 1]} : vector<16x96xf32> to vector<8x8xf32>
    %185 = vector.extract_strided_slice %179 {offsets = [8, 8], sizes = [8, 8], strides = [1, 1]} : vector<16x96xf32> to vector<8x8xf32>
    %186 = vector.extract_strided_slice %179 {offsets = [8, 16], sizes = [8, 8], strides = [1, 1]} : vector<16x96xf32> to vector<8x8xf32>
    %187 = vector.extract_strided_slice %179 {offsets = [8, 24], sizes = [8, 8], strides = [1, 1]} : vector<16x96xf32> to vector<8x8xf32>
    %188 = vector.shape_cast %180 : vector<8x8xf32> to vector<1x8x8xf32>
    %189 = vector.shape_cast %181 : vector<8x8xf32> to vector<1x8x8xf32>
    %190 = vector.shape_cast %182 : vector<8x8xf32> to vector<1x8x8xf32>
    %191 = vector.shape_cast %183 : vector<8x8xf32> to vector<1x8x8xf32>
    %192 = vector.shape_cast %184 : vector<8x8xf32> to vector<1x8x8xf32>
    %193 = vector.shape_cast %185 : vector<8x8xf32> to vector<1x8x8xf32>
    %194 = vector.shape_cast %186 : vector<8x8xf32> to vector<1x8x8xf32>
    %195 = vector.shape_cast %187 : vector<8x8xf32> to vector<1x8x8xf32>
    %196 = tpu.concatenate %188, %189, %190, %191, %192, %193, %194, %195 in 0 : vector<1x8x8xf32>, vector<1x8x8xf32>, vector<1x8x8xf32>, vector<1x8x8xf32>, vector<1x8x8xf32>, vector<1x8x8xf32>, vector<1x8x8xf32>, vector<1x8x8xf32> -> vector<8x8x8xf32>
    %197 = arith.truncf %196 : vector<8x8x8xf32> to vector<8x8x8xbf16>
    %198 = vector.extract_strided_slice %179 {offsets = [0, 32], sizes = [8, 8], strides = [1, 1]} : vector<16x96xf32> to vector<8x8xf32>
    %199 = vector.extract_strided_slice %179 {offsets = [0, 40], sizes = [8, 8], strides = [1, 1]} : vector<16x96xf32> to vector<8x8xf32>
    %200 = vector.extract_strided_slice %179 {offsets = [0, 48], sizes = [8, 8], strides = [1, 1]} : vector<16x96xf32> to vector<8x8xf32>
    %201 = vector.extract_strided_slice %179 {offsets = [0, 56], sizes = [8, 8], strides = [1, 1]} : vector<16x96xf32> to vector<8x8xf32>
    %202 = vector.extract_strided_slice %179 {offsets = [8, 32], sizes = [8, 8], strides = [1, 1]} : vector<16x96xf32> to vector<8x8xf32>
    %203 = vector.extract_strided_slice %179 {offsets = [8, 40], sizes = [8, 8], strides = [1, 1]} : vector<16x96xf32> to vector<8x8xf32>
    %204 = vector.extract_strided_slice %179 {offsets = [8, 48], sizes = [8, 8], strides = [1, 1]} : vector<16x96xf32> to vector<8x8xf32>
    %205 = vector.extract_strided_slice %179 {offsets = [8, 56], sizes = [8, 8], strides = [1, 1]} : vector<16x96xf32> to vector<8x8xf32>
    %206 = vector.shape_cast %198 : vector<8x8xf32> to vector<1x8x8xf32>
    %207 = vector.shape_cast %199 : vector<8x8xf32> to vector<1x8x8xf32>
    %208 = vector.shape_cast %200 : vector<8x8xf32> to vector<1x8x8xf32>
    %209 = vector.shape_cast %201 : vector<8x8xf32> to vector<1x8x8xf32>
    %210 = vector.shape_cast %202 : vector<8x8xf32> to vector<1x8x8xf32>
    %211 = vector.shape_cast %203 : vector<8x8xf32> to vector<1x8x8xf32>
    %212 = vector.shape_cast %204 : vector<8x8xf32> to vector<1x8x8xf32>
    %213 = vector.shape_cast %205 : vector<8x8xf32> to vector<1x8x8xf32>
    %214 = tpu.concatenate %206, %207, %208, %209, %210, %211, %212, %213 in 0 : vector<1x8x8xf32>, vector<1x8x8xf32>, vector<1x8x8xf32>, vector<1x8x8xf32>, vector<1x8x8xf32>, vector<1x8x8xf32>, vector<1x8x8xf32>, vector<1x8x8xf32> -> vector<8x8x8xf32>
    %215 = arith.truncf %214 : vector<8x8x8xf32> to vector<8x8x8xbf16>
    %216 = vector.extract_strided_slice %179 {offsets = [0, 64], sizes = [8, 8], strides = [1, 1]} : vector<16x96xf32> to vector<8x8xf32>
    %217 = vector.extract_strided_slice %179 {offsets = [0, 72], sizes = [8, 8], strides = [1, 1]} : vector<16x96xf32> to vector<8x8xf32>
    %218 = vector.extract_strided_slice %179 {offsets = [0, 80], sizes = [8, 8], strides = [1, 1]} : vector<16x96xf32> to vector<8x8xf32>
    %219 = vector.extract_strided_slice %179 {offsets = [0, 88], sizes = [8, 8], strides = [1, 1]} : vector<16x96xf32> to vector<8x8xf32>
    %220 = vector.extract_strided_slice %179 {offsets = [8, 64], sizes = [8, 8], strides = [1, 1]} : vector<16x96xf32> to vector<8x8xf32>
    %221 = vector.extract_strided_slice %179 {offsets = [8, 72], sizes = [8, 8], strides = [1, 1]} : vector<16x96xf32> to vector<8x8xf32>
    %222 = vector.extract_strided_slice %179 {offsets = [8, 80], sizes = [8, 8], strides = [1, 1]} : vector<16x96xf32> to vector<8x8xf32>
    %223 = vector.extract_strided_slice %179 {offsets = [8, 88], sizes = [8, 8], strides = [1, 1]} : vector<16x96xf32> to vector<8x8xf32>
    %224 = vector.shape_cast %216 : vector<8x8xf32> to vector<1x8x8xf32>
    %225 = vector.shape_cast %217 : vector<8x8xf32> to vector<1x8x8xf32>
    %226 = vector.shape_cast %218 : vector<8x8xf32> to vector<1x8x8xf32>
    %227 = vector.shape_cast %219 : vector<8x8xf32> to vector<1x8x8xf32>
    %228 = vector.shape_cast %220 : vector<8x8xf32> to vector<1x8x8xf32>
    %229 = vector.shape_cast %221 : vector<8x8xf32> to vector<1x8x8xf32>
    %230 = vector.shape_cast %222 : vector<8x8xf32> to vector<1x8x8xf32>
    %231 = vector.shape_cast %223 : vector<8x8xf32> to vector<1x8x8xf32>
    %232 = tpu.concatenate %224, %225, %226, %227, %228, %229, %230, %231 in 0 : vector<1x8x8xf32>, vector<1x8x8xf32>, vector<1x8x8xf32>, vector<1x8x8xf32>, vector<1x8x8xf32>, vector<1x8x8xf32>, vector<1x8x8xf32>, vector<1x8x8xf32> -> vector<8x8x8xf32>
    %233 = arith.truncf %232 : vector<8x8x8xf32> to vector<8x8x8xbf16>
    "tpu.trace_start"() <{level = 10 : i32, message = "hqd,hkd->hqk"}> : () -> ()
    %cst_61 = arith.constant dense<0.000000e+00> : vector<8x8x8xf32>
    %234 = tpu.matmul %197, %215, %cst_61 {dimension_numbers = #tpu.dot_dimension_numbers<[2], [2], [1], [1], [0, 0, 0, 1, 1, 1], [0], [0]>} : vector<8x8x8xbf16>, vector<8x8x8xbf16>, vector<8x8x8xf32> -> vector<8x8x8xf32>
    "tpu.trace_stop"() : () -> ()
    %cst_62 = arith.constant dense<0xFF800000> : vector<8x8xf32>
    %235 = vector.multi_reduction <maximumf>, %234, %cst_62 [2] : vector<8x8x8xf32> to vector<8x8xf32>
    %236 = vector.shape_cast %235 : vector<8x8xf32> to vector<8x8x1xf32>
    %237 = vector.broadcast %236 : vector<8x8x1xf32> to vector<8x8x8xf32>
    %238 = arith.subf %234, %237 : vector<8x8x8xf32>
    %239 = math.exp %238 : vector<8x8x8xf32>
    %cst_63 = arith.constant dense<0.000000e+00> : vector<8x8xf32>
    %240 = vector.multi_reduction <add>, %239, %cst_63 [2] : vector<8x8x8xf32> to vector<8x8xf32>
    %241 = vector.shape_cast %240 : vector<8x8xf32> to vector<8x8x1xf32>
    %242 = tpu.reciprocal %241 {approx = true} : vector<8x8x1xf32> -> vector<8x8x1xf32>
    %243 = vector.broadcast %242 : vector<8x8x1xf32> to vector<8x8x8xf32>
    %244 = arith.mulf %239, %243 : vector<8x8x8xf32>
    %245 = arith.truncf %244 : vector<8x8x8xf32> to vector<8x8x8xbf16>
    "tpu.trace_start"() <{level = 10 : i32, message = "hqk,hkd->hqd"}> : () -> ()
    %cst_64 = arith.constant dense<0.000000e+00> : vector<8x8x8xf32>
    %246 = tpu.matmul %245, %233, %cst_64 {dimension_numbers = #tpu.dot_dimension_numbers<[2], [1], [1], [2], [0, 0, 0, 1, 1, 2], [0], [0]>} : vector<8x8x8xbf16>, vector<8x8x8xbf16>, vector<8x8x8xf32> -> vector<8x8x8xf32>
    "tpu.trace_stop"() : () -> ()
    %247 = vector.extract_strided_slice %246 {offsets = [0, 0, 0], sizes = [1, 8, 8], strides = [1, 1, 1]} : vector<8x8x8xf32> to vector<1x8x8xf32>
    %248 = vector.shape_cast %247 : vector<1x8x8xf32> to vector<8x8xf32>
    %249 = vector.extract_strided_slice %246 {offsets = [1, 0, 0], sizes = [1, 8, 8], strides = [1, 1, 1]} : vector<8x8x8xf32> to vector<1x8x8xf32>
    %250 = vector.shape_cast %249 : vector<1x8x8xf32> to vector<8x8xf32>
    %251 = vector.extract_strided_slice %246 {offsets = [2, 0, 0], sizes = [1, 8, 8], strides = [1, 1, 1]} : vector<8x8x8xf32> to vector<1x8x8xf32>
    %252 = vector.shape_cast %251 : vector<1x8x8xf32> to vector<8x8xf32>
    %253 = vector.extract_strided_slice %246 {offsets = [3, 0, 0], sizes = [1, 8, 8], strides = [1, 1, 1]} : vector<8x8x8xf32> to vector<1x8x8xf32>
    %254 = vector.shape_cast %253 : vector<1x8x8xf32> to vector<8x8xf32>
    %255 = tpu.concatenate %248, %250, %252, %254 in 1 : vector<8x8xf32>, vector<8x8xf32>, vector<8x8xf32>, vector<8x8xf32> -> vector<8x32xf32>
    %256 = vector.extract_strided_slice %246 {offsets = [4, 0, 0], sizes = [1, 8, 8], strides = [1, 1, 1]} : vector<8x8x8xf32> to vector<1x8x8xf32>
    %257 = vector.shape_cast %256 : vector<1x8x8xf32> to vector<8x8xf32>
    %258 = vector.extract_strided_slice %246 {offsets = [5, 0, 0], sizes = [1, 8, 8], strides = [1, 1, 1]} : vector<8x8x8xf32> to vector<1x8x8xf32>
    %259 = vector.shape_cast %258 : vector<1x8x8xf32> to vector<8x8xf32>
    %260 = vector.extract_strided_slice %246 {offsets = [6, 0, 0], sizes = [1, 8, 8], strides = [1, 1, 1]} : vector<8x8x8xf32> to vector<1x8x8xf32>
    %261 = vector.shape_cast %260 : vector<1x8x8xf32> to vector<8x8xf32>
    %262 = vector.extract_strided_slice %246 {offsets = [7, 0, 0], sizes = [1, 8, 8], strides = [1, 1, 1]} : vector<8x8x8xf32> to vector<1x8x8xf32>
    %263 = vector.shape_cast %262 : vector<1x8x8xf32> to vector<8x8xf32>
    %264 = tpu.concatenate %257, %259, %261, %263 in 1 : vector<8x8xf32>, vector<8x8xf32>, vector<8x8xf32>, vector<8x8xf32> -> vector<8x32xf32>
    %265 = tpu.concatenate %255, %264 in 0 : vector<8x32xf32>, vector<8x32xf32> -> vector<16x32xf32>
    %266 = arith.truncf %265 : vector<16x32xf32> to vector<16x32xbf16>
    %cst_65 = arith.constant dense<0.000000e+00> : vector<16x32xf32>
    %267 = tpu.matmul %266, %153, %cst_65 {dimension_numbers = #tpu.dot_dimension_numbers<[1], [0], [0], [1], [0, 0, 1, 1], [], []>} : vector<16x32xbf16>, vector<32x32xbf16>, vector<16x32xf32> -> vector<16x32xf32>
    %268 = vector.broadcast %161 : vector<1x32xf32> to vector<16x32xf32>
    %269 = arith.addf %267, %268 : vector<16x32xf32>
    %270 = arith.addf %269, %149 : vector<16x32xf32>
    %271 = arith.mulf %270, %270 : vector<16x32xf32>
    %cst_66 = arith.constant dense<0.000000e+00> : vector<16xf32>
    %272 = vector.multi_reduction <add>, %271, %cst_66 [1] : vector<16x32xf32> to vector<16xf32>
    %273 = vector.shape_cast %272 : vector<16xf32> to vector<16x1xf32>
    %cst_67 = arith.constant 3.200000e+01 : f32
    %274 = vector.broadcast %cst_67 : f32 to vector<16x1xf32>
    %275 = arith.divf %273, %274 : vector<16x1xf32>
    %cst_68 = arith.constant 9.99999997E-7 : f32
    %276 = vector.broadcast %cst_68 : f32 to vector<16x1xf32>
    %277 = arith.addf %275, %276 : vector<16x1xf32>
    %278 = math.rsqrt %277 : vector<16x1xf32>
    %279 = vector.broadcast %278 : vector<16x1xf32> to vector<16x32xf32>
    %280 = arith.mulf %270, %279 : vector<16x32xf32>
    %281 = arith.truncf %280 : vector<16x32xf32> to vector<16x32xbf16>
    %cst_69 = arith.constant dense<0.000000e+00> : vector<16x128xf32>
    %282 = tpu.matmul %281, %155, %cst_69 {dimension_numbers = #tpu.dot_dimension_numbers<[1], [0], [0], [1], [0, 0, 1, 1], [], []>} : vector<16x32xbf16>, vector<32x128xbf16>, vector<16x128xf32> -> vector<16x128xf32>
    %283 = vector.broadcast %163 : vector<1x128xf32> to vector<16x128xf32>
    %284 = arith.addf %282, %283 : vector<16x128xf32>
    %285 = vector.extract_strided_slice %284 {offsets = [0, 0], sizes = [16, 64], strides = [1, 1]} : vector<16x128xf32> to vector<16x64xf32>
    %286 = vector.extract_strided_slice %284 {offsets = [0, 64], sizes = [16, 64], strides = [1, 1]} : vector<16x128xf32> to vector<16x64xf32>
    %287 = arith.negf %285 : vector<16x64xf32>
    %288 = math.exp %287 : vector<16x64xf32>
    %cst_70 = arith.constant 1.000000e+00 : f32
    %289 = vector.broadcast %cst_70 : f32 to vector<16x64xf32>
    %290 = arith.addf %289, %288 : vector<16x64xf32>
    %291 = arith.divf %289, %290 : vector<16x64xf32>
    %292 = arith.mulf %285, %291 : vector<16x64xf32>
    %293 = arith.mulf %286, %292 : vector<16x64xf32>
    %294 = arith.truncf %293 : vector<16x64xf32> to vector<16x64xbf16>
    %cst_71 = arith.constant dense<0.000000e+00> : vector<16x32xf32>
    %295 = tpu.matmul %294, %157, %cst_71 {dimension_numbers = #tpu.dot_dimension_numbers<[1], [0], [0], [1], [0, 0, 1, 1], [], []>} : vector<16x64xbf16>, vector<64x32xbf16>, vector<16x32xf32> -> vector<16x32xf32>
    %296 = vector.broadcast %165 : vector<1x32xf32> to vector<16x32xf32>
    %297 = arith.addf %295, %296 : vector<16x32xf32>
    %298 = arith.addf %297, %270 : vector<16x32xf32>
    %c0_72 = arith.constant 0 : index
    %c0_73 = arith.constant 0 : index
    %299 = vector.load %arg4[%c0_72, %c0_73] : memref<16x32xf32, #tpu.memory_space<vmem>>, vector<16x32xf32>
    tpu.vector_store %arg4[%c0_72, %c0_73], %298 {strides = array<i32>} : memref<16x32xf32, #tpu.memory_space<vmem>>, vector<16x32xf32>,
    return
  }
  func.func @transform_0(%arg0: i32) -> (i32, i32) {
    %c0_i32 = arith.constant 0 : i32
    %c0_i32_0 = arith.constant 0 : i32
    return %arg0, %c0_i32 : i32, i32
  }
  func.func @transform_1(%arg0: i32) -> (i32, i32, i32) {
    %c0_i32 = arith.constant 0 : i32
    %c0_i32_0 = arith.constant 0 : i32
    %c0_i32_1 = arith.constant 0 : i32
    %c0_i32_2 = arith.constant 0 : i32
    return %c0_i32, %c0_i32_0, %c0_i32_1 : i32, i32, i32
  }
  func.func @transform_2(%arg0: i32) -> (i32, i32, i32) {
    %c0_i32 = arith.constant 0 : i32
    %c0_i32_0 = arith.constant 0 : i32
    %c0_i32_1 = arith.constant 0 : i32
    %c0_i32_2 = arith.constant 0 : i32
    return %c0_i32, %c0_i32_0, %c0_i32_1 : i32, i32, i32
  }
  func.func @transform_3(%arg0: i32) -> (i32, i32) {
    %c0_i32 = arith.constant 0 : i32
    %c0_i32_0 = arith.constant 0 : i32
    return %arg0, %c0_i32 : i32, i32
  }
}

</mosaic_0001>

<llo_original>
// kernel: tpu_custom_call.1
$region0: #{tpu_custom_call.1}
  #allocation0 [shape = 'u32[]', space=smem, size = 0x4, offset = 0x4, fixed_abs, tag = 'smem constant byte address 0x4 - core index']
  #allocation1 [shape = 'u32[144,128]{1,0:T(1,128)}', space=vmem, size = 0x12000, scoped, tag = 'internal scratch']
  %s0 = inlined_call_operand.hbm [shape: f32[16,32], index: 0, kind: input, shape index: {}]
  %s1 = inlined_call_operand.hbm [shape: bf16[2,160,128], index: 1, kind: input, shape index: {}]
  %s2 = inlined_call_operand.hbm [shape: f32[2,4,128], index: 2, kind: input, shape index: {}]
  %s3 = inlined_call_operand.hbm [shape: f32[16,32], index: 3, kind: output, shape index: {}]
  %s4 = sld [smem:[#allocation0]]
  $region34: #{tpu_custom_call.1} parent=0
    _
  %s6 = ssub.s32 1, %s4
  %s7 = scalar_select 0, %s6, %s4
  $region1: #{tpu_custom_call.1} parent=0
    #allocation2 [shape = 'u8[8192]{0}', space=vmem, size = 0x2000, scoped, tag = 'input window, operand 0, single buffered']
    #allocation3 [shape = 's32[1]{0}', space=sflag, size = 0x4, scoped, tag = 'scoped memory for tpu_custom_call.1']
    #allocation4 [shape = 's32[1]{0}', space=sflag, size = 0x4, scoped, tag = 'scoped memory for tpu_custom_call.1']
    #allocation5 [shape = 'u8[81920]{0}', space=vmem, size = 0x14000, scoped, tag = 'input window, operand 1, single buffered']
    #allocation6 [shape = 's32[1]{0}', space=sflag, size = 0x4, scoped, tag = 'scoped memory for tpu_custom_call.1']
    #allocation7 [shape = 'u8[4096]{0}', space=vmem, size = 0x1000, scoped, tag = 'input window, operand 2, single buffered']
    #allocation8 [shape = 'u8[8192]{0}', space=vmem, size = 0x2000, scoped, tag = 'output window, operand 0, single buffered']
    %8 = vsyncpa [#allocation3], 0
    %9 = vsyncpa [#allocation6], 0
    %10 = vsyncpa [#allocation4], 0
    // Predicated region
    $region2: #{tpu_custom_call.1} parent=1 // pred_check
      _
    $region3: #{tpu_custom_call.1} parent=1 // pred_check_branch
      %12 = sbr.rel (0) target = $region5
    $region4: #{tpu_custom_call.1} parent=1 // pred_region
      %s14 = ssub.s32 256, 256
      %15 = vsyncadd [#allocation3], %s14
      %s16 = sshll.u32 [#allocation2], 4
      %s17 = int_to_ptr.vmem [resolvable:$true] %s16
      %22 = dma.hbm_to_vmem [thread:$0]  %s0, 256, %s17, [#allocation3], 128, 128, 8
    $region5: #{tpu_custom_call.1} parent=1 // pred_fallthru
      _
    // Predicated region
    $region6: #{tpu_custom_call.1} parent=1 // pred_check
      _
    $region7: #{tpu_custom_call.1} parent=1 // pred_check_branch
      %24 = sbr.rel (0) target = $region9
    $region8: #{tpu_custom_call.1} parent=1 // pred_region
      %s26 = ssub.s32 2560, 2560
      %27 = vsyncadd [#allocation6], %s26
      %s28 = sshll.u32 [#allocation5], 4
      %s29 = int_to_ptr.vmem [resolvable:$true] %s28
      %34 = dma.hbm_to_vmem [thread:$0]  %s1, 2560, %s29, [#allocation6], 64, 64, 4
    $region9: #{tpu_custom_call.1} parent=1 // pred_fallthru
      _
    // Predicated region
    $region10: #{tpu_custom_call.1} parent=1 // pred_check
      _
    $region11: #{tpu_custom_call.1} parent=1 // pred_check_branch
      %36 = sbr.rel (0) target = $region13
    $region12: #{tpu_custom_call.1} parent=1 // pred_region
      %s38 = ssub.s32 128, 128
      %39 = vsyncadd [#allocation6], %s38
      %s40 = sshll.u32 [#allocation7], 4
      %s41 = int_to_ptr.vmem [resolvable:$true] %s40
      %46 = dma.hbm_to_vmem [thread:$0]  %s2, 128, %s41, [#allocation6], 64, 64, 4
    $region13: #{tpu_custom_call.1} parent=1 // pred_fallthru
      _
    // Predicated region
    $region14: #{tpu_custom_call.1} parent=1 // pred_check
      _
    $region15: #{tpu_custom_call.1} parent=1 // pred_check_branch
      %48 = sbr.rel (0) target = $region17
    $region16: #{tpu_custom_call.1} parent=1 // pred_region
      %49 = dma.done [#allocation3], 256
    $region17: #{tpu_custom_call.1} parent=1 // pred_fallthru
      _
    // Predicated region
    $region18: #{tpu_custom_call.1} parent=1 // pred_check
      _
    $region19: #{tpu_custom_call.1} parent=1 // pred_check_branch
      %51 = sbr.rel (0) target = $region21
    $region20: #{tpu_custom_call.1} parent=1 // pred_region
      %52 = dma.done [#allocation6], 2560
    $region21: #{tpu_custom_call.1} parent=1 // pred_fallthru
      _
    // Predicated region
    $region22: #{tpu_custom_call.1} parent=1 // pred_check
      _
    $region23: #{tpu_custom_call.1} parent=1 // pred_check_branch
      %54 = sbr.rel (0) target = $region25
    $region24: #{tpu_custom_call.1} parent=1 // pred_region
      %55 = dma.done [#allocation6], 128
    $region25: #{tpu_custom_call.1} parent=1 // pred_fallthru
      _
    %v57 = vld [vmem:[#allocation2] sm:$0xff]
    %v58 = vld [vmem:[#allocation2 + $0x8] sm:$0xff]
    %v59 = vld [vmem:[#allocation5] sm:$0xf]
    %v60 = vld [vmem:[#allocation5 + $0x4] sm:$0xf]
    %v61 = vld [vmem:[#allocation5 + $0x8] sm:$0xf]
    %v62 = vld [vmem:[#allocation5 + $0xc] sm:$0xf]
    %v63 = vld [vmem:[#allocation5 + $0x10] sm:$0xf]
    %v64 = vld [vmem:[#allocation5 + $0x14] sm:$0xf]
    %v65 = vld [vmem:[#allocation5 + $0x18] sm:$0xf]
    %v66 = vld [vmem:[#allocation5 + $0x1c] sm:$0xf]
    %v67 = vld [vmem:[#allocation5 + $0x20] sm:$0xf]
    %v68 = vld [vmem:[#allocation5 + $0x24] sm:$0xf]
    %v69 = vld [vmem:[#allocation5 + $0x28] sm:$0xf]
    %v70 = vld [vmem:[#allocation5 + $0x2c] sm:$0xf]
    %v71 = vld [vmem:[#allocation5 + $0x30] sm:$0xf]
    %v72 = vld [vmem:[#allocation5 + $0x34] sm:$0xf]
    %v73 = vld [vmem:[#allocation5 + $0x38] sm:$0xf]
    %v74 = vld [vmem:[#allocation5 + $0x3c] sm:$0xf]
    %v75 = vld [vmem:[#allocation5 + $0x40] sm:$0xf]
    %v76 = vld [vmem:[#allocation5 + $0x44] sm:$0xf]
    %v77 = vld [vmem:[#allocation5 + $0x48] sm:$0xf]
    %v78 = vld [vmem:[#allocation5 + $0x4c] sm:$0xf]
    %v79 = vld [vmem:[#allocation7] sm:$0x1]
    %v80 = vld [vmem:[#allocation7 + $0x1] sm:$0x1]
    %v81 = vld [vmem:[#allocation7 + $0x2] sm:$0x1]
    %v82 = vld [vmem:[#allocation7 + $0x3] sm:$0x1]
    %v83 = vmul.f32 %v57, %v57
    %v84 = vmul.f32 %v58, %v58
    %vm85 = vcmask 261120
    %v86 = vsel %vm85, %v83, 0.0
    %87 = vadd.xlane.f32.xlu0 %v86
    %v88 = vpop.xlane.xlu0 %87
    %v89 = vsel %vm85, %v84, 0.0
    %90 = vadd.xlane.f32.xlu0 %v89
    %v91 = vpop.xlane.xlu0 %90
    %v92 = vrcp.pop 32.0
    %v93 = vmul.f32 %v88, %v92
    %v94 = vmul.f32 %v91, %v92
    %v95 = vadd.f32 %v93, 1e-06
    %v96 = vadd.f32 %v94, 1e-06
    %v97 = vrsqrt.pop %v95
    %v98 = vrsqrt.pop %v96
    %v99 = vmul.f32 %v57, %v97
    %v100 = vmul.f32 %v58, %v98
    %v101 = vpack.c.bf16 %v100, %v99
    %v102 = vlaneseq
    %v103 = vshrl.u32 %v102, 7
    %v104 = vsub.s32 0, %v103
    %v105 = vrot.slane %v79, %v104
    %v110 = vunpack.c.l.b16 %v59
    %v111 = vunpack.c.l.b16 %v60
    %v112 = vunpack.c.l.b16 %v61
    %v113 = vunpack.c.l.b16 %v62
    %v114 = vpack.c.b16 %v111, %v110
    %v115 = vpack.c.b16 %v113, %v112
    %v119 = vsel %vm85, %v101, 0
    %121 = vmatprep.subr.bf16.mxu0 0
    %122 = vmatpush1.bf16.msra.mxu0 0
    %123 = vmatprep.subr.bf16.mxu0 0
    %124 = vmatpush1.bf16.msra.mxu0 0
    %125 = vmatprep.subr.bf16.mxu0 0
    %126 = vmatpush1.bf16.msra.mxu0 0
    %127 = vmatprep.subr.bf16.mxu0 0
    %128 = vmatpush1.bf16.msra.mxu0 0
    %129 = vmatprep.subr.bf16.mxu0 0
    %130 = vmatpush1.bf16.msra.mxu0 0
    %131 = vmatprep.subr.bf16.mxu0 0
    %132 = vmatpush1.bf16.msra.mxu0 0
    %133 = vmatprep.subr.bf16.mxu0 0
    %134 = vmatpush1.bf16.msra.mxu0 %v115
    %135 = vmatprep.subr.bf16.mxu0 0
    %136 = vmatpush1.bf16.msra.mxu0 %v114
    %137 = vmatprep.subr.bf16.mxu0 0
    %138 = vmatpush2.bf16.msra.mxu0 0
    %139 = vmatprep.subr.bf16.mxu0 0
    %140 = vmatpush2.bf16.msra.mxu0 0
    %141 = vmatprep.subr.bf16.mxu0 0
    %142 = vmatpush2.bf16.msra.mxu0 0
    %143 = vmatprep.subr.bf16.mxu0 0
    %144 = vmatpush2.bf16.msra.mxu0 0
    %145 = vmatprep.subr.bf16.mxu0 0
    %146 = vmatpush2.bf16.msra.mxu0 0
    %147 = vmatprep.subr.bf16.mxu0 0
    %148 = vmatpush2.bf16.msra.mxu0 0
    %149 = vmatprep.subr.bf16.mxu0 0
    %150 = vmatpush2.bf16.msra.mxu0 0
    %151 = vmatprep.subr.bf16.mxu0 0
    %152 = vmatpush2.bf16.msra.mxu0 0
    %153 = vmatprep.mubr.bf16.mxu0 0
    %154 = vmatmul.mubr.bf16.gmra.mxu0 %v119
    %v155 = vpop.f32.mrf.mxu0
    %v156 = vadd.f32 %v105, %v155
    %v157 = vpop.f32.mrf.mxu0
    %v158 = vpop.f32.mrf.mxu0
    %v159 = vadd.f32 %v105, %v158
    %v160 = vpop.f32.mrf.mxu0
    %161 = vdwg.mxu0
    %163 = vrot.lane.b32.xlu0 %v156, 120
    %v164 = vpop.permute.xlu0 %163
    %166 = vrot.lane.b32.xlu0 %v156, 112
    %v167 = vpop.permute.xlu0 %166
    %169 = vrot.lane.b32.xlu0 %v156, 104
    %v170 = vpop.permute.xlu0 %169
    %173 = vrot.lane.b32.xlu0 %v159, 120
    %v174 = vpop.permute.xlu0 %173
    %176 = vrot.lane.b32.xlu0 %v159, 112
    %v177 = vpop.permute.xlu0 %176
    %179 = vrot.lane.b32.xlu0 %v159, 104
    %v180 = vpop.permute.xlu0 %179
    %v182 = vpack.c.bf16 %v156, %v156
    %v183 = vpack.c.bf16 %v164, %v164
    %v184 = vpack.c.bf16 %v167, %v167
    %v185 = vpack.c.bf16 %v170, %v170
    %v186 = vpack.c.bf16 %v159, %v159
    %v187 = vpack.c.bf16 %v174, %v174
    %v188 = vpack.c.bf16 %v177, %v177
    %v189 = vpack.c.bf16 %v180, %v180
    %191 = vrot.lane.b32.xlu0 %v182, 96
    %v192 = vpop.permute.xlu0 %191
    %vm193 = vcmask 64512
    %v195 = vsel %vm193, %v182, 0
    %v198 = vsel %vm193, %v192, 0
    %200 = vmatprep.subr.bf16.mxu0 0
    %201 = vmatpush1.bf16.xpose.msra.mxu0 0
    %202 = vmatprep.subr.bf16.mxu0 0
    %203 = vmatpush1.bf16.xpose.msra.mxu0 0
    %204 = vmatprep.subr.bf16.mxu0 0
    %205 = vmatpush1.bf16.xpose.msra.mxu0 0
    %206 = vmatprep.subr.bf16.mxu0 0
    %207 = vmatpush1.bf16.xpose.msra.mxu0 0
    %208 = vmatprep.subr.bf16.mxu0 0
    %209 = vmatpush1.bf16.xpose.msra.mxu0 0
    %210 = vmatprep.subr.bf16.mxu0 0
    %211 = vmatpush1.bf16.xpose.msra.mxu0 0
    %212 = vmatprep.subr.bf16.mxu0 0
    %213 = vmatpush1.bf16.xpose.msra.mxu0 0
    %214 = vmatprep.subr.bf16.mxu0 0
    %215 = vmatpush1.bf16.xpose.msra.mxu0 %v198
    %216 = vmatprep.subr.bf16.mxu0 0
    %217 = vmatpush2.bf16.xpose.msra.mxu0 0
    %218 = vmatprep.subr.bf16.mxu0 0
    %219 = vmatpush2.bf16.xpose.msra.mxu0 0
    %220 = vmatprep.subr.bf16.mxu0 0
    %221 = vmatpush2.bf16.xpose.msra.mxu0 0
    %222 = vmatprep.subr.bf16.mxu0 0
    %223 = vmatpush2.bf16.xpose.msra.mxu0 0
    %224 = vmatprep.subr.bf16.mxu0 0
    %225 = vmatpush2.bf16.xpose.msra.mxu0 0
    %226 = vmatprep.subr.bf16.mxu0 0
    %227 = vmatpush2.bf16.xpose.msra.mxu0 0
    %228 = vmatprep.subr.bf16.mxu0 0
    %229 = vmatpush2.bf16.xpose.msra.mxu0 0
    %230 = vmatprep.subr.bf16.mxu0 0
    %231 = vmatpush2.bf16.xpose.msra.mxu0 0
    %232 = vmatprep.mubr.bf16.mxu0 0
    %233 = vmatmul.mubr.bf16.gmra.mxu0 %v195
    %v234 = vpop.f32.mrf.mxu0
    %v235 = vadd.f32 0.0, %v234
    %v236 = vpop.f32.mrf.mxu0
    %v237 = vpop.f32.mrf.mxu0
    %v238 = vpop.f32.mrf.mxu0
    %239 = vdwg.mxu0
    %241 = vrot.lane.b32.xlu0 %v183, 96
    %v242 = vpop.permute.xlu0 %241
    %v244 = vsel %vm193, %v183, 0
    %v247 = vsel %vm193, %v242, 0
    %249 = vmatprep.subr.bf16.mxu0 0
    %250 = vmatpush1.bf16.xpose.msra.mxu0 0
    %251 = vmatprep.subr.bf16.mxu0 0
    %252 = vmatpush1.bf16.xpose.msra.mxu0 0
    %253 = vmatprep.subr.bf16.mxu0 0
    %254 = vmatpush1.bf16.xpose.msra.mxu0 0
    %255 = vmatprep.subr.bf16.mxu0 0
    %256 = vmatpush1.bf16.xpose.msra.mxu0 0
    %257 = vmatprep.subr.bf16.mxu0 0
    %258 = vmatpush1.bf16.xpose.msra.mxu0 0
    %259 = vmatprep.subr.bf16.mxu0 0
    %260 = vmatpush1.bf16.xpose.msra.mxu0 0
    %261 = vmatprep.subr.bf16.mxu0 0
    %262 = vmatpush1.bf16.xpose.msra.mxu0 0
    %263 = vmatprep.subr.bf16.mxu0 0
    %264 = vmatpush1.bf16.xpose.msra.mxu0 %v247
    %265 = vmatprep.subr.bf16.mxu0 0
    %266 = vmatpush2.bf16.xpose.msra.mxu0 0
    %267 = vmatprep.subr.bf16.mxu0 0
    %268 = vmatpush2.bf16.xpose.msra.mxu0 0
    %269 = vmatprep.subr.bf16.mxu0 0
    %270 = vmatpush2.bf16.xpose.msra.mxu0 0
    %271 = vmatprep.subr.bf16.mxu0 0
    %272 = vmatpush2.bf16.xpose.msra.mxu0 0
    %273 = vmatprep.subr.bf16.mxu0 0
    %274 = vmatpush2.bf16.xpose.msra.mxu0 0
    %275 = vmatprep.subr.bf16.mxu0 0
    %276 = vmatpush2.bf16.xpose.msra.mxu0 0
    %277 = vmatprep.subr.bf16.mxu0 0
    %278 = vmatpush2.bf16.xpose.msra.mxu0 0
    %279 = vmatprep.subr.bf16.mxu0 0
    %280 = vmatpush2.bf16.xpose.msra.mxu0 0
    %281 = vmatprep.mubr.bf16.mxu0 0
    %282 = vmatmul.mubr.bf16.gmra.mxu0 %v244
    %v283 = vpop.f32.mrf.mxu0
    %v284 = vadd.f32 0.0, %v283
    %v285 = vpop.f32.mrf.mxu0
    %v286 = vpop.f32.mrf.mxu0
    %v287 = vpop.f32.mrf.mxu0
    %288 = vdwg.mxu0
    %290 = vrot.lane.b32.xlu0 %v184, 96
    %v291 = vpop.permute.xlu0 %290
    %v293 = vsel %vm193, %v184, 0
    %v296 = vsel %vm193, %v291, 0
    %298 = vmatprep.subr.bf16.mxu0 0
    %299 = vmatpush1.bf16.xpose.msra.mxu0 0
    %300 = vmatprep.subr.bf16.mxu0 0
    %301 = vmatpush1.bf16.xpose.msra.mxu0 0
    %302 = vmatprep.subr.bf16.mxu0 0
    %303 = vmatpush1.bf16.xpose.msra.mxu0 0
    %304 = vmatprep.subr.bf16.mxu0 0
    %305 = vmatpush1.bf16.xpose.msra.mxu0 0
    %306 = vmatprep.subr.bf16.mxu0 0
    %307 = vmatpush1.bf16.xpose.msra.mxu0 0
    %308 = vmatprep.subr.bf16.mxu0 0
    %309 = vmatpush1.bf16.xpose.msra.mxu0 0
    %310 = vmatprep.subr.bf16.mxu0 0
    %311 = vmatpush1.bf16.xpose.msra.mxu0 0
    %312 = vmatprep.subr.bf16.mxu0 0
    %313 = vmatpush1.bf16.xpose.msra.mxu0 %v296
    %314 = vmatprep.subr.bf16.mxu0 0
    %315 = vmatpush2.bf16.xpose.msra.mxu0 0
    %316 = vmatprep.subr.bf16.mxu0 0
    %317 = vmatpush2.bf16.xpose.msra.mxu0 0
    %318 = vmatprep.subr.bf16.mxu0 0
    %319 = vmatpush2.bf16.xpose.msra.mxu0 0
    %320 = vmatprep.subr.bf16.mxu0 0
    %321 = vmatpush2.bf16.xpose.msra.mxu0 0
    %322 = vmatprep.subr.bf16.mxu0 0
    %323 = vmatpush2.bf16.xpose.msra.mxu0 0
    %324 = vmatprep.subr.bf16.mxu0 0
    %325 = vmatpush2.bf16.xpose.msra.mxu0 0
    %326 = vmatprep.subr.bf16.mxu0 0
    %327 = vmatpush2.bf16.xpose.msra.mxu0 0
    %328 = vmatprep.subr.bf16.mxu0 0
    %329 = vmatpush2.bf16.xpose.msra.mxu0 0
    %330 = vmatprep.mubr.bf16.mxu0 0
    %331 = vmatmul.mubr.bf16.gmra.mxu0 %v293
    %v332 = vpop.f32.mrf.mxu0
    %v333 = vadd.f32 0.0, %v332
    %v334 = vpop.f32.mrf.mxu0
    %v335 = vpop.f32.mrf.mxu0
    %v336 = vpop.f32.mrf.mxu0
    %337 = vdwg.mxu0
    %339 = vrot.lane.b32.xlu0 %v185, 96
    %v340 = vpop.permute.xlu0 %339
    %v342 = vsel %vm193, %v185, 0
    %v345 = vsel %vm193, %v340, 0
    %347 = vmatprep.subr.bf16.mxu0 0
    %348 = vmatpush1.bf16.xpose.msra.mxu0 0
    %349 = vmatprep.subr.bf16.mxu0 0
    %350 = vmatpush1.bf16.xpose.msra.mxu0 0
    %351 = vmatprep.subr.bf16.mxu0 0
    %352 = vmatpush1.bf16.xpose.msra.mxu0 0
    %353 = vmatprep.subr.bf16.mxu0 0
    %354 = vmatpush1.bf16.xpose.msra.mxu0 0
    %355 = vmatprep.subr.bf16.mxu0 0
    %356 = vmatpush1.bf16.xpose.msra.mxu0 0
    %357 = vmatprep.subr.bf16.mxu0 0
    %358 = vmatpush1.bf16.xpose.msra.mxu0 0
    %359 = vmatprep.subr.bf16.mxu0 0
    %360 = vmatpush1.bf16.xpose.msra.mxu0 0
    %361 = vmatprep.subr.bf16.mxu0 0
    %362 = vmatpush1.bf16.xpose.msra.mxu0 %v345
    %363 = vmatprep.subr.bf16.mxu0 0
    %364 = vmatpush2.bf16.xpose.msra.mxu0 0
    %365 = vmatprep.subr.bf16.mxu0 0
    %366 = vmatpush2.bf16.xpose.msra.mxu0 0
    %367 = vmatprep.subr.bf16.mxu0 0
    %368 = vmatpush2.bf16.xpose.msra.mxu0 0
    %369 = vmatprep.subr.bf16.mxu0 0
    %370 = vmatpush2.bf16.xpose.msra.mxu0 0
    %371 = vmatprep.subr.bf16.mxu0 0
    %372 = vmatpush2.bf16.xpose.msra.mxu0 0
    %373 = vmatprep.subr.bf16.mxu0 0
    %374 = vmatpush2.bf16.xpose.msra.mxu0 0
    %375 = vmatprep.subr.bf16.mxu0 0
    %376 = vmatpush2.bf16.xpose.msra.mxu0 0
    %377 = vmatprep.subr.bf16.mxu0 0
    %378 = vmatpush2.bf16.xpose.msra.mxu0 0
    %379 = vmatprep.mubr.bf16.mxu0 0
    %380 = vmatmul.mubr.bf16.gmra.mxu0 %v342
    %v381 = vpop.f32.mrf.mxu0
    %v382 = vadd.f32 0.0, %v381
    %v383 = vpop.f32.mrf.mxu0
    %v384 = vpop.f32.mrf.mxu0
    %v385 = vpop.f32.mrf.mxu0
    %386 = vdwg.mxu0
    %388 = vrot.lane.b32.xlu0 %v186, 96
    %v389 = vpop.permute.xlu0 %388
    %v391 = vsel %vm193, %v186, 0
    %v394 = vsel %vm193, %v389, 0
    %396 = vmatprep.subr.bf16.mxu0 0
    %397 = vmatpush1.bf16.xpose.msra.mxu0 0
    %398 = vmatprep.subr.bf16.mxu0 0
    %399 = vmatpush1.bf16.xpose.msra.mxu0 0
    %400 = vmatprep.subr.bf16.mxu0 0
    %401 = vmatpush1.bf16.xpose.msra.mxu0 0
    %402 = vmatprep.subr.bf16.mxu0 0
    %403 = vmatpush1.bf16.xpose.msra.mxu0 0
    %404 = vmatprep.subr.bf16.mxu0 0
    %405 = vmatpush1.bf16.xpose.msra.mxu0 0
    %406 = vmatprep.subr.bf16.mxu0 0
    %407 = vmatpush1.bf16.xpose.msra.mxu0 0
    %408 = vmatprep.subr.bf16.mxu0 0
    %409 = vmatpush1.bf16.xpose.msra.mxu0 0
    %410 = vmatprep.subr.bf16.mxu0 0
    %411 = vmatpush1.bf16.xpose.msra.mxu0 %v394
    %412 = vmatprep.subr.bf16.mxu0 0
    %413 = vmatpush2.bf16.xpose.msra.mxu0 0
    %414 = vmatprep.subr.bf16.mxu0 0
    %415 = vmatpush2.bf16.xpose.msra.mxu0 0
    %416 = vmatprep.subr.bf16.mxu0 0
    %417 = vmatpush2.bf16.xpose.msra.mxu0 0
    %418 = vmatprep.subr.bf16.mxu0 0
    %419 = vmatpush2.bf16.xpose.msra.mxu0 0
    %420 = vmatprep.subr.bf16.mxu0 0
    %421 = vmatpush2.bf16.xpose.msra.mxu0 0
    %422 = vmatprep.subr.bf16.mxu0 0
    %423 = vmatpush2.bf16.xpose.msra.mxu0 0
    %424 = vmatprep.subr.bf16.mxu0 0
    %425 = vmatpush2.bf16.xpose.msra.mxu0 0
    %426 = vmatprep.subr.bf16.mxu0 0
    %427 = vmatpush2.bf16.xpose.msra.mxu0 0
    %428 = vmatprep.mubr.bf16.mxu0 0
    %429 = vmatmul.mubr.bf16.gmra.mxu0 %v391
    %v430 = vpop.f32.mrf.mxu0
    %v431 = vadd.f32 0.0, %v430
    %v432 = vpop.f32.mrf.mxu0
    %v433 = vpop.f32.mrf.mxu0
    %v434 = vpop.f32.mrf.mxu0
    %435 = vdwg.mxu0
    %437 = vrot.lane.b32.xlu0 %v187, 96
    %v438 = vpop.permute.xlu0 %437
    %v440 = vsel %vm193, %v187, 0
    %v443 = vsel %vm193, %v438, 0
    %445 = vmatprep.subr.bf16.mxu0 0
    %446 = vmatpush1.bf16.xpose.msra.mxu0 0
    %447 = vmatprep.subr.bf16.mxu0 0
    %448 = vmatpush1.bf16.xpose.msra.mxu0 0
    %449 = vmatprep.subr.bf16.mxu0 0
    %450 = vmatpush1.bf16.xpose.msra.mxu0 0
    %451 = vmatprep.subr.bf16.mxu0 0
    %452 = vmatpush1.bf16.xpose.msra.mxu0 0
    %453 = vmatprep.subr.bf16.mxu0 0
    %454 = vmatpush1.bf16.xpose.msra.mxu0 0
    %455 = vmatprep.subr.bf16.mxu0 0
    %456 = vmatpush1.bf16.xpose.msra.mxu0 0
    %457 = vmatprep.subr.bf16.mxu0 0
    %458 = vmatpush1.bf16.xpose.msra.mxu0 0
    %459 = vmatprep.subr.bf16.mxu0 0
    %460 = vmatpush1.bf16.xpose.msra.mxu0 %v443
    %461 = vmatprep.subr.bf16.mxu0 0
    %462 = vmatpush2.bf16.xpose.msra.mxu0 0
    %463 = vmatprep.subr.bf16.mxu0 0
    %464 = vmatpush2.bf16.xpose.msra.mxu0 0
    %465 = vmatprep.subr.bf16.mxu0 0
    %466 = vmatpush2.bf16.xpose.msra.mxu0 0
    %467 = vmatprep.subr.bf16.mxu0 0
    %468 = vmatpush2.bf16.xpose.msra.mxu0 0
    %469 = vmatprep.subr.bf16.mxu0 0
    %470 = vmatpush2.bf16.xpose.msra.mxu0 0
    %471 = vmatprep.subr.bf16.mxu0 0
    %472 = vmatpush2.bf16.xpose.msra.mxu0 0
    %473 = vmatprep.subr.bf16.mxu0 0
    %474 = vmatpush2.bf16.xpose.msra.mxu0 0
    %475 = vmatprep.subr.bf16.mxu0 0
    %476 = vmatpush2.bf16.xpose.msra.mxu0 0
    %477 = vmatprep.mubr.bf16.mxu0 0
    %478 = vmatmul.mubr.bf16.gmra.mxu0 %v440
    %v479 = vpop.f32.mrf.mxu0
    %v480 = vadd.f32 0.0, %v479
    %v481 = vpop.f32.mrf.mxu0
    %v482 = vpop.f32.mrf.mxu0
    %v483 = vpop.f32.mrf.mxu0
    %484 = vdwg.mxu0
    %486 = vrot.lane.b32.xlu0 %v188, 96
    %v487 = vpop.permute.xlu0 %486
    %v489 = vsel %vm193, %v188, 0
    %v492 = vsel %vm193, %v487, 0
    %494 = vmatprep.subr.bf16.mxu0 0
    %495 = vmatpush1.bf16.xpose.msra.mxu0 0
    %496 = vmatprep.subr.bf16.mxu0 0
    %497 = vmatpush1.bf16.xpose.msra.mxu0 0
    %498 = vmatprep.subr.bf16.mxu0 0
    %499 = vmatpush1.bf16.xpose.msra.mxu0 0
    %500 = vmatprep.subr.bf16.mxu0 0
    %501 = vmatpush1.bf16.xpose.msra.mxu0 0
    %502 = vmatprep.subr.bf16.mxu0 0
    %503 = vmatpush1.bf16.xpose.msra.mxu0 0
    %504 = vmatprep.subr.bf16.mxu0 0
    %505 = vmatpush1.bf16.xpose.msra.mxu0 0
    %506 = vmatprep.subr.bf16.mxu0 0
    %507 = vmatpush1.bf16.xpose.msra.mxu0 0
    %508 = vmatprep.subr.bf16.mxu0 0
    %509 = vmatpush1.bf16.xpose.msra.mxu0 %v492
    %510 = vmatprep.subr.bf16.mxu0 0
    %511 = vmatpush2.bf16.xpose.msra.mxu0 0
    %512 = vmatprep.subr.bf16.mxu0 0
    %513 = vmatpush2.bf16.xpose.msra.mxu0 0
    %514 = vmatprep.subr.bf16.mxu0 0
    %515 = vmatpush2.bf16.xpose.msra.mxu0 0
    %516 = vmatprep.subr.bf16.mxu0 0
    %517 = vmatpush2.bf16.xpose.msra.mxu0 0
    %518 = vmatprep.subr.bf16.mxu0 0
    %519 = vmatpush2.bf16.xpose.msra.mxu0 0
    %520 = vmatprep.subr.bf16.mxu0 0
    %521 = vmatpush2.bf16.xpose.msra.mxu0 0
    %522 = vmatprep.subr.bf16.mxu0 0
    %523 = vmatpush2.bf16.xpose.msra.mxu0 0
    %524 = vmatprep.subr.bf16.mxu0 0
    %525 = vmatpush2.bf16.xpose.msra.mxu0 0
    %526 = vmatprep.mubr.bf16.mxu0 0
    %527 = vmatmul.mubr.bf16.gmra.mxu0 %v489
    %v528 = vpop.f32.mrf.mxu0
    %v529 = vadd.f32 0.0, %v528
    %v530 = vpop.f32.mrf.mxu0
    %v531 = vpop.f32.mrf.mxu0
    %v532 = vpop.f32.mrf.mxu0
    %533 = vdwg.mxu0
    %535 = vrot.lane.b32.xlu0 %v189, 96
    %v536 = vpop.permute.xlu0 %535
    %v538 = vsel %vm193, %v189, 0
    %v541 = vsel %vm193, %v536, 0
    %543 = vmatprep.subr.bf16.mxu0 0
    %544 = vmatpush1.bf16.xpose.msra.mxu0 0
    %545 = vmatprep.subr.bf16.mxu0 0
    %546 = vmatpush1.bf16.xpose.msra.mxu0 0
    %547 = vmatprep.subr.bf16.mxu0 0
    %548 = vmatpush1.bf16.xpose.msra.mxu0 0
    %549 = vmatprep.subr.bf16.mxu0 0
    %550 = vmatpush1.bf16.xpose.msra.mxu0 0
    %551 = vmatprep.subr.bf16.mxu0 0
    %552 = vmatpush1.bf16.xpose.msra.mxu0 0
    %553 = vmatprep.subr.bf16.mxu0 0
    %554 = vmatpush1.bf16.xpose.msra.mxu0 0
    %555 = vmatprep.subr.bf16.mxu0 0
    %556 = vmatpush1.bf16.xpose.msra.mxu0 0
    %557 = vmatprep.subr.bf16.mxu0 0
    %558 = vmatpush1.bf16.xpose.msra.mxu0 %v541
    %559 = vmatprep.subr.bf16.mxu0 0
    %560 = vmatpush2.bf16.xpose.msra.mxu0 0
    %561 = vmatprep.subr.bf16.mxu0 0
    %562 = vmatpush2.bf16.xpose.msra.mxu0 0
    %563 = vmatprep.subr.bf16.mxu0 0
    %564 = vmatpush2.bf16.xpose.msra.mxu0 0
    %565 = vmatprep.subr.bf16.mxu0 0
    %566 = vmatpush2.bf16.xpose.msra.mxu0 0
    %567 = vmatprep.subr.bf16.mxu0 0
    %568 = vmatpush2.bf16.xpose.msra.mxu0 0
    %569 = vmatprep.subr.bf16.mxu0 0
    %570 = vmatpush2.bf16.xpose.msra.mxu0 0
    %571 = vmatprep.subr.bf16.mxu0 0
    %572 = vmatpush2.bf16.xpose.msra.mxu0 0
    %573 = vmatprep.subr.bf16.mxu0 0
    %574 = vmatpush2.bf16.xpose.msra.mxu0 0
    %575 = vmatprep.mubr.bf16.mxu0 0
    %576 = vmatmul.mubr.bf16.gmra.mxu0 %v538
    %v577 = vpop.f32.mrf.mxu0
    %v578 = vadd.f32 0.0, %v577
    %v579 = vpop.f32.mrf.mxu0
    %v580 = vpop.f32.mrf.mxu0
    %v581 = vpop.f32.mrf.mxu0
    %582 = vdwg.mxu0
    %v583 = vsel %vm193, %v235, -inf
    %584 = vmax.xlane.f32.xlu0 %v583
    %v585 = vpop.xlane.xlu0 %584
    %v586 = vsel %vm193, %v284, -inf
    %587 = vmax.xlane.f32.xlu0 %v586
    %v588 = vpop.xlane.xlu0 %587
    %v589 = vsel %vm193, %v333, -inf
    %590 = vmax.xlane.f32.xlu0 %v589
    %v591 = vpop.xlane.xlu0 %590
    %v592 = vsel %vm193, %v382, -inf
    %593 = vmax.xlane.f32.xlu0 %v592
    %v594 = vpop.xlane.xlu0 %593
    %v595 = vsel %vm193, %v431, -inf
    %596 = vmax.xlane.f32.xlu0 %v595
    %v597 = vpop.xlane.xlu0 %596
    %v598 = vsel %vm193, %v480, -inf
    %599 = vmax.xlane.f32.xlu0 %v598
    %v600 = vpop.xlane.xlu0 %599
    %v601 = vsel %vm193, %v529, -inf
    %602 = vmax.xlane.f32.xlu0 %v601
    %v603 = vpop.xlane.xlu0 %602
    %v604 = vsel %vm193, %v578, -inf
    %605 = vmax.xlane.f32.xlu0 %v604
    %v606 = vpop.xlane.xlu0 %605
    %v607 = vsub.f32 %v235, %v585
    %v608 = vsub.f32 %v284, %v588
    %v609 = vsub.f32 %v333, %v591
    %v610 = vsub.f32 %v382, %v594
    %v611 = vsub.f32 %v431, %v597
    %v612 = vsub.f32 %v480, %v600
    %v613 = vsub.f32 %v529, %v603
    %v614 = vsub.f32 %v578, %v606
    %v615 = vmul.f32 %v607, 1.442695
    %v616 = vpow.pop %v615
    %v617 = vmul.f32 %v608, 1.442695
    %v618 = vpow.pop %v617
    %v619 = vmul.f32 %v609, 1.442695
    %v620 = vpow.pop %v619
    %v621 = vmul.f32 %v610, 1.442695
    %v622 = vpow.pop %v621
    %v623 = vmul.f32 %v611, 1.442695
    %v624 = vpow.pop %v623
    %v625 = vmul.f32 %v612, 1.442695
    %v626 = vpow.pop %v625
    %v627 = vmul.f32 %v613, 1.442695
    %v628 = vpow.pop %v627
    %v629 = vmul.f32 %v614, 1.442695
    %v630 = vpow.pop %v629
    %v631 = vsel %vm193, %v616, 0.0
    %632 = vadd.xlane.f32.xlu0 %v631
    %v633 = vpop.xlane.xlu0 %632
    %v634 = vsel %vm193, %v618, 0.0
    %635 = vadd.xlane.f32.xlu0 %v634
    %v636 = vpop.xlane.xlu0 %635
    %v637 = vsel %vm193, %v620, 0.0
    %638 = vadd.xlane.f32.xlu0 %v637
    %v639 = vpop.xlane.xlu0 %638
    %v640 = vsel %vm193, %v622, 0.0
    %641 = vadd.xlane.f32.xlu0 %v640
    %v642 = vpop.xlane.xlu0 %641
    %v643 = vsel %vm193, %v624, 0.0
    %644 = vadd.xlane.f32.xlu0 %v643
    %v645 = vpop.xlane.xlu0 %644
    %v646 = vsel %vm193, %v626, 0.0
    %647 = vadd.xlane.f32.xlu0 %v646
    %v648 = vpop.xlane.xlu0 %647
    %v649 = vsel %vm193, %v628, 0.0
    %650 = vadd.xlane.f32.xlu0 %v649
    %v651 = vpop.xlane.xlu0 %650
    %v652 = vsel %vm193, %v630, 0.0
    %653 = vadd.xlane.f32.xlu0 %v652
    %v654 = vpop.xlane.xlu0 %653
    %v655 = vrcp.pop %v633
    %v656 = vrcp.pop %v636
    %v657 = vrcp.pop %v639
    %v658 = vrcp.pop %v642
    %v659 = vrcp.pop %v645
    %v660 = vrcp.pop %v648
    %v661 = vrcp.pop %v651
    %v662 = vrcp.pop %v654
    %v663 = vmul.f32 %v616, %v655
    %v664 = vmul.f32 %v618, %v656
    %v665 = vmul.f32 %v620, %v657
    %v666 = vmul.f32 %v622, %v658
    %v667 = vmul.f32 %v624, %v659
    %v668 = vmul.f32 %v626, %v660
    %v669 = vmul.f32 %v628, %v661
    %v670 = vmul.f32 %v630, %v662
    %v671 = vpack.c.bf16 %v663, %v663
    %v672 = vpack.c.bf16 %v664, %v664
    %v673 = vpack.c.bf16 %v665, %v665
    %v674 = vpack.c.bf16 %v666, %v666
    %v675 = vpack.c.bf16 %v667, %v667
    %v676 = vpack.c.bf16 %v668, %v668
    %v677 = vpack.c.bf16 %v669, %v669
    %v678 = vpack.c.bf16 %v670, %v670
    %679 = vrot.lane.b32.xlu0 %v182, 64
    %v680 = vpop.permute.xlu0 %679
    %v682 = vsel %vm193, %v671, 0
    %vm684 = vcmask 1043456
    %v686 = vsel %vm684, %v680, 0
    %688 = vmatprep.subr.bf16.mxu0 0
    %689 = vmatpush1.bf16.msra.mxu0 0
    %690 = vmatprep.subr.bf16.mxu0 0
    %691 = vmatpush1.bf16.msra.mxu0 0
    %692 = vmatprep.subr.bf16.mxu0 0
    %693 = vmatpush1.bf16.msra.mxu0 0
    %694 = vmatprep.subr.bf16.mxu0 0
    %695 = vmatpush1.bf16.msra.mxu0 0
    %696 = vmatprep.subr.bf16.mxu0 0
    %697 = vmatpush1.bf16.msra.mxu0 0
    %698 = vmatprep.subr.bf16.mxu0 0
    %699 = vmatpush1.bf16.msra.mxu0 0
    %700 = vmatprep.subr.bf16.mxu0 0
    %701 = vmatpush1.bf16.msra.mxu0 0
    %702 = vmatprep.subr.bf16.mxu0 0
    %703 = vmatpush1.bf16.msra.mxu0 %v686
    %704 = vmatprep.subr.bf16.mxu0 0
    %705 = vmatpush2.bf16.msra.mxu0 0
    %706 = vmatprep.subr.bf16.mxu0 0
    %707 = vmatpush2.bf16.msra.mxu0 0
    %708 = vmatprep.subr.bf16.mxu0 0
    %709 = vmatpush2.bf16.msra.mxu0 0
    %710 = vmatprep.subr.bf16.mxu0 0
    %711 = vmatpush2.bf16.msra.mxu0 0
    %712 = vmatprep.subr.bf16.mxu0 0
    %713 = vmatpush2.bf16.msra.mxu0 0
    %714 = vmatprep.subr.bf16.mxu0 0
    %715 = vmatpush2.bf16.msra.mxu0 0
    %716 = vmatprep.subr.bf16.mxu0 0
    %717 = vmatpush2.bf16.msra.mxu0 0
    %718 = vmatprep.subr.bf16.mxu0 0
    %719 = vmatpush2.bf16.msra.mxu0 0
    %720 = vmatprep.mubr.bf16.mxu0 0
    %721 = vmatmul.mubr.bf16.gmra.mxu0 %v682
    %v722 = vpop.f32.mrf.mxu0
    %v723 = vadd.f32 0.0, %v722
    %v724 = vpop.f32.mrf.mxu0
    %v725 = vpop.f32.mrf.mxu0
    %v726 = vpop.f32.mrf.mxu0
    %727 = vdwg.mxu0
    %728 = vrot.lane.b32.xlu0 %v183, 64
    %v729 = vpop.permute.xlu0 %728
    %v731 = vsel %vm193, %v672, 0
    %v734 = vsel %vm684, %v729, 0
    %736 = vmatprep.subr.bf16.mxu0 0
    %737 = vmatpush1.bf16.msra.mxu0 0
    %738 = vmatprep.subr.bf16.mxu0 0
    %739 = vmatpush1.bf16.msra.mxu0 0
    %740 = vmatprep.subr.bf16.mxu0 0
    %741 = vmatpush1.bf16.msra.mxu0 0
    %742 = vmatprep.subr.bf16.mxu0 0
    %743 = vmatpush1.bf16.msra.mxu0 0
    %744 = vmatprep.subr.bf16.mxu0 0
    %745 = vmatpush1.bf16.msra.mxu0 0
    %746 = vmatprep.subr.bf16.mxu0 0
    %747 = vmatpush1.bf16.msra.mxu0 0
    %748 = vmatprep.subr.bf16.mxu0 0
    %749 = vmatpush1.bf16.msra.mxu0 0
    %750 = vmatprep.subr.bf16.mxu0 0
    %751 = vmatpush1.bf16.msra.mxu0 %v734
    %752 = vmatprep.subr.bf16.mxu0 0
    %753 = vmatpush2.bf16.msra.mxu0 0
    %754 = vmatprep.subr.bf16.mxu0 0
    %755 = vmatpush2.bf16.msra.mxu0 0
    %756 = vmatprep.subr.bf16.mxu0 0
    %757 = vmatpush2.bf16.msra.mxu0 0
    %758 = vmatprep.subr.bf16.mxu0 0
    %759 = vmatpush2.bf16.msra.mxu0 0
    %760 = vmatprep.subr.bf16.mxu0 0
    %761 = vmatpush2.bf16.msra.mxu0 0
    %762 = vmatprep.subr.bf16.mxu0 0
    %763 = vmatpush2.bf16.msra.mxu0 0
    %764 = vmatprep.subr.bf16.mxu0 0
    %765 = vmatpush2.bf16.msra.mxu0 0
    %766 = vmatprep.subr.bf16.mxu0 0
    %767 = vmatpush2.bf16.msra.mxu0 0
    %768 = vmatprep.mubr.bf16.mxu0 0
    %769 = vmatmul.mubr.bf16.gmra.mxu0 %v731
    %v770 = vpop.f32.mrf.mxu0
    %v771 = vadd.f32 0.0, %v770
    %v772 = vpop.f32.mrf.mxu0
    %v773 = vpop.f32.mrf.mxu0
    %v774 = vpop.f32.mrf.mxu0
    %775 = vdwg.mxu0
    %776 = vrot.lane.b32.xlu0 %v184, 64
    %v777 = vpop.permute.xlu0 %776
    %v779 = vsel %vm193, %v673, 0
    %v782 = vsel %vm684, %v777, 0
    %784 = vmatprep.subr.bf16.mxu0 0
    %785 = vmatpush1.bf16.msra.mxu0 0
    %786 = vmatprep.subr.bf16.mxu0 0
    %787 = vmatpush1.bf16.msra.mxu0 0
    %788 = vmatprep.subr.bf16.mxu0 0
    %789 = vmatpush1.bf16.msra.mxu0 0
    %790 = vmatprep.subr.bf16.mxu0 0
    %791 = vmatpush1.bf16.msra.mxu0 0
    %792 = vmatprep.subr.bf16.mxu0 0
    %793 = vmatpush1.bf16.msra.mxu0 0
    %794 = vmatprep.subr.bf16.mxu0 0
    %795 = vmatpush1.bf16.msra.mxu0 0
    %796 = vmatprep.subr.bf16.mxu0 0
    %797 = vmatpush1.bf16.msra.mxu0 0
    %798 = vmatprep.subr.bf16.mxu0 0
    %799 = vmatpush1.bf16.msra.mxu0 %v782
    %800 = vmatprep.subr.bf16.mxu0 0
    %801 = vmatpush2.bf16.msra.mxu0 0
    %802 = vmatprep.subr.bf16.mxu0 0
    %803 = vmatpush2.bf16.msra.mxu0 0
    %804 = vmatprep.subr.bf16.mxu0 0
    %805 = vmatpush2.bf16.msra.mxu0 0
    %806 = vmatprep.subr.bf16.mxu0 0
    %807 = vmatpush2.bf16.msra.mxu0 0
    %808 = vmatprep.subr.bf16.mxu0 0
    %809 = vmatpush2.bf16.msra.mxu0 0
    %810 = vmatprep.subr.bf16.mxu0 0
    %811 = vmatpush2.bf16.msra.mxu0 0
    %812 = vmatprep.subr.bf16.mxu0 0
    %813 = vmatpush2.bf16.msra.mxu0 0
    %814 = vmatprep.subr.bf16.mxu0 0
    %815 = vmatpush2.bf16.msra.mxu0 0
    %816 = vmatprep.mubr.bf16.mxu0 0
    %817 = vmatmul.mubr.bf16.gmra.mxu0 %v779
    %v818 = vpop.f32.mrf.mxu0
    %v819 = vadd.f32 0.0, %v818
    %v820 = vpop.f32.mrf.mxu0
    %v821 = vpop.f32.mrf.mxu0
    %v822 = vpop.f32.mrf.mxu0
    %823 = vdwg.mxu0
    %824 = vrot.lane.b32.xlu0 %v185, 64
    %v825 = vpop.permute.xlu0 %824
    %v827 = vsel %vm193, %v674, 0
    %v830 = vsel %vm684, %v825, 0
    %832 = vmatprep.subr.bf16.mxu0 0
    %833 = vmatpush1.bf16.msra.mxu0 0
    %834 = vmatprep.subr.bf16.mxu0 0
    %835 = vmatpush1.bf16.msra.mxu0 0
    %836 = vmatprep.subr.bf16.mxu0 0
    %837 = vmatpush1.bf16.msra.mxu0 0
    %838 = vmatprep.subr.bf16.mxu0 0
    %839 = vmatpush1.bf16.msra.mxu0 0
    %840 = vmatprep.subr.bf16.mxu0 0
    %841 = vmatpush1.bf16.msra.mxu0 0
    %842 = vmatprep.subr.bf16.mxu0 0
    %843 = vmatpush1.bf16.msra.mxu0 0
    %844 = vmatprep.subr.bf16.mxu0 0
    %845 = vmatpush1.bf16.msra.mxu0 0
    %846 = vmatprep.subr.bf16.mxu0 0
    %847 = vmatpush1.bf16.msra.mxu0 %v830
    %848 = vmatprep.subr.bf16.mxu0 0
    %849 = vmatpush2.bf16.msra.mxu0 0
    %850 = vmatprep.subr.bf16.mxu0 0
    %851 = vmatpush2.bf16.msra.mxu0 0
    %852 = vmatprep.subr.bf16.mxu0 0
    %853 = vmatpush2.bf16.msra.mxu0 0
    %854 = vmatprep.subr.bf16.mxu0 0
    %855 = vmatpush2.bf16.msra.mxu0 0
    %856 = vmatprep.subr.bf16.mxu0 0
    %857 = vmatpush2.bf16.msra.mxu0 0
    %858 = vmatprep.subr.bf16.mxu0 0
    %859 = vmatpush2.bf16.msra.mxu0 0
    %860 = vmatprep.subr.bf16.mxu0 0
    %861 = vmatpush2.bf16.msra.mxu0 0
    %862 = vmatprep.subr.bf16.mxu0 0
    %863 = vmatpush2.bf16.msra.mxu0 0
    %864 = vmatprep.mubr.bf16.mxu0 0
    %865 = vmatmul.mubr.bf16.gmra.mxu0 %v827
    %v866 = vpop.f32.mrf.mxu0
    %v867 = vadd.f32 0.0, %v866
    %v868 = vpop.f32.mrf.mxu0
    %v869 = vpop.f32.mrf.mxu0
    %v870 = vpop.f32.mrf.mxu0
    %871 = vdwg.mxu0
    %872 = vrot.lane.b32.xlu0 %v186, 64
    %v873 = vpop.permute.xlu0 %872
    %v875 = vsel %vm193, %v675, 0
    %v878 = vsel %vm684, %v873, 0
    %880 = vmatprep.subr.bf16.mxu0 0
    %881 = vmatpush1.bf16.msra.mxu0 0
    %882 = vmatprep.subr.bf16.mxu0 0
    %883 = vmatpush1.bf16.msra.mxu0 0
    %884 = vmatprep.subr.bf16.mxu0 0
    %885 = vmatpush1.bf16.msra.mxu0 0
    %886 = vmatprep.subr.bf16.mxu0 0
    %887 = vmatpush1.bf16.msra.mxu0 0
    %888 = vmatprep.subr.bf16.mxu0 0
    %889 = vmatpush1.bf16.msra.mxu0 0
    %890 = vmatprep.subr.bf16.mxu0 0
    %891 = vmatpush1.bf16.msra.mxu0 0
    %892 = vmatprep.subr.bf16.mxu0 0
    %893 = vmatpush1.bf16.msra.mxu0 0
    %894 = vmatprep.subr.bf16.mxu0 0
    %895 = vmatpush1.bf16.msra.mxu0 %v878
    %896 = vmatprep.subr.bf16.mxu0 0
    %897 = vmatpush2.bf16.msra.mxu0 0
    %898 = vmatprep.subr.bf16.mxu0 0
    %899 = vmatpush2.bf16.msra.mxu0 0
    %900 = vmatprep.subr.bf16.mxu0 0
    %901 = vmatpush2.bf16.msra.mxu0 0
    %902 = vmatprep.subr.bf16.mxu0 0
    %903 = vmatpush2.bf16.msra.mxu0 0
    %904 = vmatprep.subr.bf16.mxu0 0
    %905 = vmatpush2.bf16.msra.mxu0 0
    %906 = vmatprep.subr.bf16.mxu0 0
    %907 = vmatpush2.bf16.msra.mxu0 0
    %908 = vmatprep.subr.bf16.mxu0 0
    %909 = vmatpush2.bf16.msra.mxu0 0
    %910 = vmatprep.subr.bf16.mxu0 0
    %911 = vmatpush2.bf16.msra.mxu0 0
    %912 = vmatprep.mubr.bf16.mxu0 0
    %913 = vmatmul.mubr.bf16.gmra.mxu0 %v875
    %v914 = vpop.f32.mrf.mxu0
    %v915 = vadd.f32 0.0, %v914
    %v916 = vpop.f32.mrf.mxu0
    %v917 = vpop.f32.mrf.mxu0
    %v918 = vpop.f32.mrf.mxu0
    %919 = vdwg.mxu0
    %920 = vrot.lane.b32.xlu0 %v187, 64
    %v921 = vpop.permute.xlu0 %920
    %v923 = vsel %vm193, %v676, 0
    %v926 = vsel %vm684, %v921, 0
    %928 = vmatprep.subr.bf16.mxu0 0
    %929 = vmatpush1.bf16.msra.mxu0 0
    %930 = vmatprep.subr.bf16.mxu0 0
    %931 = vmatpush1.bf16.msra.mxu0 0
    %932 = vmatprep.subr.bf16.mxu0 0
    %933 = vmatpush1.bf16.msra.mxu0 0
    %934 = vmatprep.subr.bf16.mxu0 0
    %935 = vmatpush1.bf16.msra.mxu0 0
    %936 = vmatprep.subr.bf16.mxu0 0
    %937 = vmatpush1.bf16.msra.mxu0 0
    %938 = vmatprep.subr.bf16.mxu0 0
    %939 = vmatpush1.bf16.msra.mxu0 0
    %940 = vmatprep.subr.bf16.mxu0 0
    %941 = vmatpush1.bf16.msra.mxu0 0
    %942 = vmatprep.subr.bf16.mxu0 0
    %943 = vmatpush1.bf16.msra.mxu0 %v926
    %944 = vmatprep.subr.bf16.mxu0 0
    %945 = vmatpush2.bf16.msra.mxu0 0
    %946 = vmatprep.subr.bf16.mxu0 0
    %947 = vmatpush2.bf16.msra.mxu0 0
    %948 = vmatprep.subr.bf16.mxu0 0
    %949 = vmatpush2.bf16.msra.mxu0 0
    %950 = vmatprep.subr.bf16.mxu0 0
    %951 = vmatpush2.bf16.msra.mxu0 0
    %952 = vmatprep.subr.bf16.mxu0 0
    %953 = vmatpush2.bf16.msra.mxu0 0
    %954 = vmatprep.subr.bf16.mxu0 0
    %955 = vmatpush2.bf16.msra.mxu0 0
    %956 = vmatprep.subr.bf16.mxu0 0
    %957 = vmatpush2.bf16.msra.mxu0 0
    %958 = vmatprep.subr.bf16.mxu0 0
    %959 = vmatpush2.bf16.msra.mxu0 0
    %960 = vmatprep.mubr.bf16.mxu0 0
    %961 = vmatmul.mubr.bf16.gmra.mxu0 %v923
    %v962 = vpop.f32.mrf.mxu0
    %v963 = vadd.f32 0.0, %v962
    %v964 = vpop.f32.mrf.mxu0
    %v965 = vpop.f32.mrf.mxu0
    %v966 = vpop.f32.mrf.mxu0
    %967 = vdwg.mxu0
    %968 = vrot.lane.b32.xlu0 %v188, 64
    %v969 = vpop.permute.xlu0 %968
    %v971 = vsel %vm193, %v677, 0
    %v974 = vsel %vm684, %v969, 0
    %976 = vmatprep.subr.bf16.mxu0 0
    %977 = vmatpush1.bf16.msra.mxu0 0
    %978 = vmatprep.subr.bf16.mxu0 0
    %979 = vmatpush1.bf16.msra.mxu0 0
    %980 = vmatprep.subr.bf16.mxu0 0
    %981 = vmatpush1.bf16.msra.mxu0 0
    %982 = vmatprep.subr.bf16.mxu0 0
    %983 = vmatpush1.bf16.msra.mxu0 0
    %984 = vmatprep.subr.bf16.mxu0 0
    %985 = vmatpush1.bf16.msra.mxu0 0
    %986 = vmatprep.subr.bf16.mxu0 0
    %987 = vmatpush1.bf16.msra.mxu0 0
    %988 = vmatprep.subr.bf16.mxu0 0
    %989 = vmatpush1.bf16.msra.mxu0 0
    %990 = vmatprep.subr.bf16.mxu0 0
    %991 = vmatpush1.bf16.msra.mxu0 %v974
    %992 = vmatprep.subr.bf16.mxu0 0
    %993 = vmatpush2.bf16.msra.mxu0 0
    %994 = vmatprep.subr.bf16.mxu0 0
    %995 = vmatpush2.bf16.msra.mxu0 0
    %996 = vmatprep.subr.bf16.mxu0 0
    %997 = vmatpush2.bf16.msra.mxu0 0
    %998 = vmatprep.subr.bf16.mxu0 0
    %999 = vmatpush2.bf16.msra.mxu0 0
    %1000 = vmatprep.subr.bf16.mxu0 0
    %1001 = vmatpush2.bf16.msra.mxu0 0
    %1002 = vmatprep.subr.bf16.mxu0 0
    %1003 = vmatpush2.bf16.msra.mxu0 0
    %1004 = vmatprep.subr.bf16.mxu0 0
    %1005 = vmatpush2.bf16.msra.mxu0 0
    %1006 = vmatprep.subr.bf16.mxu0 0
    %1007 = vmatpush2.bf16.msra.mxu0 0
    %1008 = vmatprep.mubr.bf16.mxu0 0
    %1009 = vmatmul.mubr.bf16.gmra.mxu0 %v971
    %v1010 = vpop.f32.mrf.mxu0
    %v1011 = vadd.f32 0.0, %v1010
    %v1012 = vpop.f32.mrf.mxu0
    %v1013 = vpop.f32.mrf.mxu0
    %v1014 = vpop.f32.mrf.mxu0
    %1015 = vdwg.mxu0
    %1016 = vrot.lane.b32.xlu0 %v189, 64
    %v1017 = vpop.permute.xlu0 %1016
    %v1019 = vsel %vm193, %v678, 0
    %v1022 = vsel %vm684, %v1017, 0
    %1024 = vmatprep.subr.bf16.mxu0 0
    %1025 = vmatpush1.bf16.msra.mxu0 0
    %1026 = vmatprep.subr.bf16.mxu0 0
    %1027 = vmatpush1.bf16.msra.mxu0 0
    %1028 = vmatprep.subr.bf16.mxu0 0
    %1029 = vmatpush1.bf16.msra.mxu0 0
    %1030 = vmatprep.subr.bf16.mxu0 0
    %1031 = vmatpush1.bf16.msra.mxu0 0
    %1032 = vmatprep.subr.bf16.mxu0 0
    %1033 = vmatpush1.bf16.msra.mxu0 0
    %1034 = vmatprep.subr.bf16.mxu0 0
    %1035 = vmatpush1.bf16.msra.mxu0 0
    %1036 = vmatprep.subr.bf16.mxu0 0
    %1037 = vmatpush1.bf16.msra.mxu0 0
    %1038 = vmatprep.subr.bf16.mxu0 0
    %1039 = vmatpush1.bf16.msra.mxu0 %v1022
    %1040 = vmatprep.subr.bf16.mxu0 0
    %1041 = vmatpush2.bf16.msra.mxu0 0
    %1042 = vmatprep.subr.bf16.mxu0 0
    %1043 = vmatpush2.bf16.msra.mxu0 0
    %1044 = vmatprep.subr.bf16.mxu0 0
    %1045 = vmatpush2.bf16.msra.mxu0 0
    %1046 = vmatprep.subr.bf16.mxu0 0
    %1047 = vmatpush2.bf16.msra.mxu0 0
    %1048 = vmatprep.subr.bf16.mxu0 0
    %1049 = vmatpush2.bf16.msra.mxu0 0
    %1050 = vmatprep.subr.bf16.mxu0 0
    %1051 = vmatpush2.bf16.msra.mxu0 0
    %1052 = vmatprep.subr.bf16.mxu0 0
    %1053 = vmatpush2.bf16.msra.mxu0 0
    %1054 = vmatprep.subr.bf16.mxu0 0
    %1055 = vmatpush2.bf16.msra.mxu0 0
    %1056 = vmatprep.mubr.bf16.mxu0 0
    %1057 = vmatmul.mubr.bf16.gmra.mxu0 %v1019
    %v1058 = vpop.f32.mrf.mxu0
    %v1059 = vadd.f32 0.0, %v1058
    %v1060 = vpop.f32.mrf.mxu0
    %v1061 = vpop.f32.mrf.mxu0
    %v1062 = vpop.f32.mrf.mxu0
    %1063 = vdwg.mxu0
    %1065 = vrot.lane.b32.xlu0 %v771, 8
    %v1066 = vpop.permute.xlu0 %1065
    %1069 = vrot.lane.b32.xlu0 %v819, 16
    %v1070 = vpop.permute.xlu0 %1069
    %1073 = vrot.lane.b32.xlu0 %v867, 24
    %v1074 = vpop.permute.xlu0 %1073
    %v1076 = vsel %vm193, %v723, %v1066
    %vm1077 = vcmask 130048
    %v1078 = vsel %vm1077, %v1076, %v1070
    %vm1079 = vcmask 195584
    %v1080 = vsel %vm1079, %v1078, %v1074
    %1082 = vrot.lane.b32.xlu0 %v963, 8
    %v1083 = vpop.permute.xlu0 %1082
    %1086 = vrot.lane.b32.xlu0 %v1011, 16
    %v1087 = vpop.permute.xlu0 %1086
    %1090 = vrot.lane.b32.xlu0 %v1059, 24
    %v1091 = vpop.permute.xlu0 %1090
    %v1093 = vsel %vm193, %v915, %v1083
    %v1094 = vsel %vm1077, %v1093, %v1087
    %v1095 = vsel %vm1079, %v1094, %v1091
    %v1096 = vpack.c.bf16 %v1095, %v1080
    %v1097 = vlaneseq
    %v1098 = vshrl.u32 %v1097, 7
    %v1099 = vsub.s32 0, %v1098
    %v1100 = vrot.slane %v80, %v1099
    %v1105 = vunpack.c.l.b16 %v63
    %v1106 = vunpack.c.l.b16 %v64
    %v1107 = vunpack.c.l.b16 %v65
    %v1108 = vunpack.c.l.b16 %v66
    %v1109 = vpack.c.b16 %v1106, %v1105
    %v1110 = vpack.c.b16 %v1108, %v1107
    %v1114 = vsel %vm85, %v1096, 0
    %1116 = vmatprep.subr.bf16.mxu0 0
    %1117 = vmatpush1.bf16.msra.mxu0 0
    %1118 = vmatprep.subr.bf16.mxu0 0
    %1119 = vmatpush1.bf16.msra.mxu0 0
    %1120 = vmatprep.subr.bf16.mxu0 0
    %1121 = vmatpush1.bf16.msra.mxu0 0
    %1122 = vmatprep.subr.bf16.mxu0 0
    %1123 = vmatpush1.bf16.msra.mxu0 0
    %1124 = vmatprep.subr.bf16.mxu0 0
    %1125 = vmatpush1.bf16.msra.mxu0 0
    %1126 = vmatprep.subr.bf16.mxu0 0
    %1127 = vmatpush1.bf16.msra.mxu0 0
    %1128 = vmatprep.subr.bf16.mxu0 0
    %1129 = vmatpush1.bf16.msra.mxu0 %v1110
    %1130 = vmatprep.subr.bf16.mxu0 0
    %1131 = vmatpush1.bf16.msra.mxu0 %v1109
    %1132 = vmatprep.subr.bf16.mxu0 0
    %1133 = vmatpush2.bf16.msra.mxu0 0
    %1134 = vmatprep.subr.bf16.mxu0 0
    %1135 = vmatpush2.bf16.msra.mxu0 0
    %1136 = vmatprep.subr.bf16.mxu0 0
    %1137 = vmatpush2.bf16.msra.mxu0 0
    %1138 = vmatprep.subr.bf16.mxu0 0
    %1139 = vmatpush2.bf16.msra.mxu0 0
    %1140 = vmatprep.subr.bf16.mxu0 0
    %1141 = vmatpush2.bf16.msra.mxu0 0
    %1142 = vmatprep.subr.bf16.mxu0 0
    %1143 = vmatpush2.bf16.msra.mxu0 0
    %1144 = vmatprep.subr.bf16.mxu0 0
    %1145 = vmatpush2.bf16.msra.mxu0 0
    %1146 = vmatprep.subr.bf16.mxu0 0
    %1147 = vmatpush2.bf16.msra.mxu0 0
    %1148 = vmatprep.mubr.bf16.mxu0 0
    %1149 = vmatmul.mubr.bf16.gmra.mxu0 %v1114
    %v1150 = vpop.f32.mrf.mxu0
    %v1151 = vadd.f32 %v1100, %v1150
    %v1152 = vpop.f32.mrf.mxu0
    %v1153 = vpop.f32.mrf.mxu0
    %v1154 = vadd.f32 %v1100, %v1153
    %v1155 = vpop.f32.mrf.mxu0
    %1156 = vdwg.mxu0
    %v1157 = vadd.f32 %v1151, %v57
    %v1158 = vadd.f32 %v1154, %v58
    %v1159 = vmul.f32 %v1157, %v1157
    %v1160 = vmul.f32 %v1158, %v1158
    %v1161 = vsel %vm85, %v1159, 0.0
    %1162 = vadd.xlane.f32.xlu0 %v1161
    %v1163 = vpop.xlane.xlu0 %1162
    %v1164 = vsel %vm85, %v1160, 0.0
    %1165 = vadd.xlane.f32.xlu0 %v1164
    %v1166 = vpop.xlane.xlu0 %1165
    %v1167 = vmul.f32 %v1163, %v92
    %v1168 = vmul.f32 %v1166, %v92
    %v1169 = vadd.f32 %v1167, 1e-06
    %v1170 = vadd.f32 %v1168, 1e-06
    %v1171 = vrsqrt.pop %v1169
    %v1172 = vrsqrt.pop %v1170
    %v1173 = vmul.f32 %v1157, %v1171
    %v1174 = vmul.f32 %v1158, %v1172
    %v1175 = vpack.c.bf16 %v1174, %v1173
    %v1176 = vlaneseq
    %v1177 = vshrl.u32 %v1176, 7
    %v1178 = vsub.s32 0, %v1177
    %v1179 = vrot.slane %v81, %v1178
    %v1184 = vunpack.c.l.b16 %v67
    %v1185 = vunpack.c.l.b16 %v68
    %v1186 = vunpack.c.l.b16 %v69
    %v1187 = vunpack.c.l.b16 %v70
    %v1188 = vpack.c.b16 %v1185, %v1184
    %v1189 = vpack.c.b16 %v1187, %v1186
    %v1193 = vsel %vm85, %v1175, 0
    %1195 = vmatprep.subr.bf16.mxu0 0
    %1196 = vmatpush1.bf16.msra.mxu0 0
    %1197 = vmatprep.subr.bf16.mxu0 0
    %1198 = vmatpush1.bf16.msra.mxu0 0
    %1199 = vmatprep.subr.bf16.mxu0 0
    %1200 = vmatpush1.bf16.msra.mxu0 0
    %1201 = vmatprep.subr.bf16.mxu0 0
    %1202 = vmatpush1.bf16.msra.mxu0 0
    %1203 = vmatprep.subr.bf16.mxu0 0
    %1204 = vmatpush1.bf16.msra.mxu0 0
    %1205 = vmatprep.subr.bf16.mxu0 0
    %1206 = vmatpush1.bf16.msra.mxu0 0
    %1207 = vmatprep.subr.bf16.mxu0 0
    %1208 = vmatpush1.bf16.msra.mxu0 %v1189
    %1209 = vmatprep.subr.bf16.mxu0 0
    %1210 = vmatpush1.bf16.msra.mxu0 %v1188
    %1211 = vmatprep.subr.bf16.mxu0 0
    %1212 = vmatpush2.bf16.msra.mxu0 0
    %1213 = vmatprep.subr.bf16.mxu0 0
    %1214 = vmatpush2.bf16.msra.mxu0 0
    %1215 = vmatprep.subr.bf16.mxu0 0
    %1216 = vmatpush2.bf16.msra.mxu0 0
    %1217 = vmatprep.subr.bf16.mxu0 0
    %1218 = vmatpush2.bf16.msra.mxu0 0
    %1219 = vmatprep.subr.bf16.mxu0 0
    %1220 = vmatpush2.bf16.msra.mxu0 0
    %1221 = vmatprep.subr.bf16.mxu0 0
    %1222 = vmatpush2.bf16.msra.mxu0 0
    %1223 = vmatprep.subr.bf16.mxu0 0
    %1224 = vmatpush2.bf16.msra.mxu0 0
    %1225 = vmatprep.subr.bf16.mxu0 0
    %1226 = vmatpush2.bf16.msra.mxu0 0
    %1227 = vmatprep.mubr.bf16.mxu0 0
    %1228 = vmatmul.mubr.bf16.gmra.mxu0 %v1193
    %v1229 = vpop.f32.mrf.mxu0
    %v1230 = vadd.f32 %v1179, %v1229
    %v1231 = vpop.f32.mrf.mxu0
    %v1232 = vpop.f32.mrf.mxu0
    %v1233 = vadd.f32 %v1179, %v1232
    %v1234 = vpop.f32.mrf.mxu0
    %1235 = vdwg.mxu0
    %v1236 = vxor.u32 %v1230, 2147483648
    %v1237 = vxor.u32 %v1233, 2147483648
    %v1238 = vmul.f32 %v1236, 1.442695
    %v1239 = vpow.pop %v1238
    %v1240 = vmul.f32 %v1237, 1.442695
    %v1241 = vpow.pop %v1240
    %v1242 = vadd.f32 %v1239, 1.0
    %v1243 = vadd.f32 %v1241, 1.0
    %v1244 = vrcp.pop %v1242
    %v1245 = vmul.f32 1.0, %v1244
    %v1246 = vrcp.pop %v1243
    %v1247 = vmul.f32 1.0, %v1246
    %v1248 = vmul.f32 %v1230, %v1245
    %v1249 = vmul.f32 %v1233, %v1247
    %1252 = vrot.lane.b32.xlu0 %v1248, 64
    %v1253 = vpop.permute.xlu0 %1252
    %1254 = vrot.lane.b32.xlu0 %v1249, 64
    %v1255 = vpop.permute.xlu0 %1254
    %v1258 = vmul.f32 %v1230, %v1253
    %v1259 = vmul.f32 %v1233, %v1255
    %v1260 = vpack.c.bf16 %v1259, %v1258
    %v1261 = vlaneseq
    %v1262 = vshrl.u32 %v1261, 7
    %v1263 = vsub.s32 0, %v1262
    %v1264 = vrot.slane %v82, %v1263
    %1266 = vrot.lane.b32.xlu0 %v1260, 64
    %v1267 = vpop.permute.xlu0 %1266
    %v1276 = vunpack.c.l.b16 %v71
    %v1277 = vunpack.c.l.b16 %v72
    %v1278 = vunpack.c.l.b16 %v73
    %v1279 = vunpack.c.l.b16 %v74
    %v1280 = vunpack.c.l.b16 %v75
    %v1281 = vunpack.c.l.b16 %v76
    %v1282 = vunpack.c.l.b16 %v77
    %v1283 = vunpack.c.l.b16 %v78
    %v1284 = vpack.c.b16 %v1277, %v1276
    %v1285 = vpack.c.b16 %v1279, %v1278
    %v1286 = vpack.c.b16 %v1281, %v1280
    %v1287 = vpack.c.b16 %v1283, %v1282
    %vm1292 = vcmask 523264
    %v1294 = vsel %vm1292, %v1267, 0
    %1296 = vmatprep.subr.bf16.mxu0 0
    %1297 = vmatpush1.bf16.msra.mxu0 0
    %1298 = vmatprep.subr.bf16.mxu0 0
    %1299 = vmatpush1.bf16.msra.mxu0 0
    %1300 = vmatprep.subr.bf16.mxu0 0
    %1301 = vmatpush1.bf16.msra.mxu0 0
    %1302 = vmatprep.subr.bf16.mxu0 0
    %1303 = vmatpush1.bf16.msra.mxu0 0
    %1304 = vmatprep.subr.bf16.mxu0 0
    %1305 = vmatpush1.bf16.msra.mxu0 %v1287
    %1306 = vmatprep.subr.bf16.mxu0 0
    %1307 = vmatpush1.bf16.msra.mxu0 %v1286
    %1308 = vmatprep.subr.bf16.mxu0 0
    %1309 = vmatpush1.bf16.msra.mxu0 %v1285
    %1310 = vmatprep.subr.bf16.mxu0 0
    %1311 = vmatpush1.bf16.msra.mxu0 %v1284
    %1312 = vmatprep.subr.bf16.mxu0 0
    %1313 = vmatpush2.bf16.msra.mxu0 0
    %1314 = vmatprep.subr.bf16.mxu0 0
    %1315 = vmatpush2.bf16.msra.mxu0 0
    %1316 = vmatprep.subr.bf16.mxu0 0
    %1317 = vmatpush2.bf16.msra.mxu0 0
    %1318 = vmatprep.subr.bf16.mxu0 0
    %1319 = vmatpush2.bf16.msra.mxu0 0
    %1320 = vmatprep.subr.bf16.mxu0 0
    %1321 = vmatpush2.bf16.msra.mxu0 0
    %1322 = vmatprep.subr.bf16.mxu0 0
    %1323 = vmatpush2.bf16.msra.mxu0 0
    %1324 = vmatprep.subr.bf16.mxu0 0
    %1325 = vmatpush2.bf16.msra.mxu0 0
    %1326 = vmatprep.subr.bf16.mxu0 0
    %1327 = vmatpush2.bf16.msra.mxu0 0
    %1328 = vmatprep.mubr.bf16.mxu0 0
    %1329 = vmatmul.mubr.bf16.gmra.mxu0 %v1294
    %v1330 = vpop.f32.mrf.mxu0
    %v1331 = vadd.f32 %v1264, %v1330
    %v1332 = vpop.f32.mrf.mxu0
    %v1333 = vpop.f32.mrf.mxu0
    %v1334 = vadd.f32 %v1264, %v1333
    %v1335 = vpop.f32.mrf.mxu0
    %1336 = vdwg.mxu0
    %v1337 = vadd.f32 %v1331, %v1157
    %v1338 = vadd.f32 %v1334, %v1158
    %s1339 = scalar_lea.vmem [#allocation5], 80
    %v1340 = vld [vmem:[%s1339] sm:$0xf]
    %v1341 = vld [vmem:[%s1339 + $0x4] sm:$0xf]
    %v1342 = vld [vmem:[%s1339 + $0x8] sm:$0xf]
    %v1343 = vld [vmem:[%s1339 + $0xc] sm:$0xf]
    %v1344 = vld [vmem:[%s1339 + $0x10] sm:$0xf]
    %v1345 = vld [vmem:[%s1339 + $0x14] sm:$0xf]
    %v1346 = vld [vmem:[%s1339 + $0x18] sm:$0xf]
    %v1347 = vld [vmem:[%s1339 + $0x1c] sm:$0xf]
    %v1348 = vld [vmem:[%s1339 + $0x20] sm:$0xf]
    %v1349 = vld [vmem:[%s1339 + $0x24] sm:$0xf]
    %v1350 = vld [vmem:[%s1339 + $0x28] sm:$0xf]
    %v1351 = vld [vmem:[%s1339 + $0x2c] sm:$0xf]
    %v1352 = vld [vmem:[%s1339 + $0x30] sm:$0xf]
    %v1353 = vld [vmem:[%s1339 + $0x34] sm:$0xf]
    %v1354 = vld [vmem:[%s1339 + $0x38] sm:$0xf]
    %v1355 = vld [vmem:[%s1339 + $0x3c] sm:$0xf]
    %v1356 = vld [vmem:[%s1339 + $0x40] sm:$0xf]
    %v1357 = vld [vmem:[%s1339 + $0x44] sm:$0xf]
    %v1358 = vld [vmem:[%s1339 + $0x48] sm:$0xf]
    %v1359 = vld [vmem:[%s1339 + $0x4c] sm:$0xf]
    %s1360 = scalar_lea.vmem [#allocation7], 4
    %v1361 = vld [vmem:[%s1360] sm:$0x1]
    %v1362 = vld [vmem:[%s1360 + $0x1] sm:$0x1]
    %v1363 = vld [vmem:[%s1360 + $0x2] sm:$0x1]
    %v1364 = vld [vmem:[%s1360 + $0x3] sm:$0x1]
    %v1365 = vmul.f32 %v1337, %v1337
    %v1366 = vmul.f32 %v1338, %v1338
    %v1367 = vsel %vm85, %v1365, 0.0
    %1368 = vadd.xlane.f32.xlu0 %v1367
    %v1369 = vpop.xlane.xlu0 %1368
    %v1370 = vsel %vm85, %v1366, 0.0
    %1371 = vadd.xlane.f32.xlu0 %v1370
    %v1372 = vpop.xlane.xlu0 %1371
    %v1373 = vmul.f32 %v1369, %v92
    %v1374 = vmul.f32 %v1372, %v92
    %v1375 = vadd.f32 %v1373, 1e-06
    %v1376 = vadd.f32 %v1374, 1e-06
    %v1377 = vrsqrt.pop %v1375
    %v1378 = vrsqrt.pop %v1376
    %v1379 = vmul.f32 %v1337, %v1377
    %v1380 = vmul.f32 %v1338, %v1378
    %v1381 = vpack.c.bf16 %v1380, %v1379
    %v1382 = vlaneseq
    %v1383 = vshrl.u32 %v1382, 7
    %v1384 = vsub.s32 0, %v1383
    %v1385 = vrot.slane %v1361, %v1384
    %v1390 = vunpack.c.l.b16 %v1340
    %v1391 = vunpack.c.l.b16 %v1341
    %v1392 = vunpack.c.l.b16 %v1342
    %v1393 = vunpack.c.l.b16 %v1343
    %v1394 = vpack.c.b16 %v1391, %v1390
    %v1395 = vpack.c.b16 %v1393, %v1392
    %v1399 = vsel %vm85, %v1381, 0
    %1401 = vmatprep.subr.bf16.mxu0 0
    %1402 = vmatpush1.bf16.msra.mxu0 0
    %1403 = vmatprep.subr.bf16.mxu0 0
    %1404 = vmatpush1.bf16.msra.mxu0 0
    %1405 = vmatprep.subr.bf16.mxu0 0
    %1406 = vmatpush1.bf16.msra.mxu0 0
    %1407 = vmatprep.subr.bf16.mxu0 0
    %1408 = vmatpush1.bf16.msra.mxu0 0
    %1409 = vmatprep.subr.bf16.mxu0 0
    %1410 = vmatpush1.bf16.msra.mxu0 0
    %1411 = vmatprep.subr.bf16.mxu0 0
    %1412 = vmatpush1.bf16.msra.mxu0 0
    %1413 = vmatprep.subr.bf16.mxu0 0
    %1414 = vmatpush1.bf16.msra.mxu0 %v1395
    %1415 = vmatprep.subr.bf16.mxu0 0
    %1416 = vmatpush1.bf16.msra.mxu0 %v1394
    %1417 = vmatprep.subr.bf16.mxu0 0
    %1418 = vmatpush2.bf16.msra.mxu0 0
    %1419 = vmatprep.subr.bf16.mxu0 0
    %1420 = vmatpush2.bf16.msra.mxu0 0
    %1421 = vmatprep.subr.bf16.mxu0 0
    %1422 = vmatpush2.bf16.msra.mxu0 0
    %1423 = vmatprep.subr.bf16.mxu0 0
    %1424 = vmatpush2.bf16.msra.mxu0 0
    %1425 = vmatprep.subr.bf16.mxu0 0
    %1426 = vmatpush2.bf16.msra.mxu0 0
    %1427 = vmatprep.subr.bf16.mxu0 0
    %1428 = vmatpush2.bf16.msra.mxu0 0
    %1429 = vmatprep.subr.bf16.mxu0 0
    %1430 = vmatpush2.bf16.msra.mxu0 0
    %1431 = vmatprep.subr.bf16.mxu0 0
    %1432 = vmatpush2.bf16.msra.mxu0 0
    %1433 = vmatprep.mubr.bf16.mxu0 0
    %1434 = vmatmul.mubr.bf16.gmra.mxu0 %v1399
    %v1435 = vpop.f32.mrf.mxu0
    %v1436 = vadd.f32 %v1385, %v1435
    %v1437 = vpop.f32.mrf.mxu0
    %v1438 = vpop.f32.mrf.mxu0
    %v1439 = vadd.f32 %v1385, %v1438
    %v1440 = vpop.f32.mrf.mxu0
    %1441 = vdwg.mxu0
    %1443 = vrot.lane.b32.xlu0 %v1436, 120
    %v1444 = vpop.permute.xlu0 %1443
    %1446 = vrot.lane.b32.xlu0 %v1436, 112
    %v1447 = vpop.permute.xlu0 %1446
    %1449 = vrot.lane.b32.xlu0 %v1436, 104
    %v1450 = vpop.permute.xlu0 %1449
    %1453 = vrot.lane.b32.xlu0 %v1439, 120
    %v1454 = vpop.permute.xlu0 %1453
    %1456 = vrot.lane.b32.xlu0 %v1439, 112
    %v1457 = vpop.permute.xlu0 %1456
    %1459 = vrot.lane.b32.xlu0 %v1439, 104
    %v1460 = vpop.permute.xlu0 %1459
    %v1462 = vpack.c.bf16 %v1436, %v1436
    %v1463 = vpack.c.bf16 %v1444, %v1444
    %v1464 = vpack.c.bf16 %v1447, %v1447
    %v1465 = vpack.c.bf16 %v1450, %v1450
    %v1466 = vpack.c.bf16 %v1439, %v1439
    %v1467 = vpack.c.bf16 %v1454, %v1454
    %v1468 = vpack.c.bf16 %v1457, %v1457
    %v1469 = vpack.c.bf16 %v1460, %v1460
    %1471 = vrot.lane.b32.xlu0 %v1462, 96
    %v1472 = vpop.permute.xlu0 %1471
    %v1474 = vsel %vm193, %v1462, 0
    %v1477 = vsel %vm193, %v1472, 0
    %1479 = vmatprep.subr.bf16.mxu0 0
    %1480 = vmatpush1.bf16.xpose.msra.mxu0 0
    %1481 = vmatprep.subr.bf16.mxu0 0
    %1482 = vmatpush1.bf16.xpose.msra.mxu0 0
    %1483 = vmatprep.subr.bf16.mxu0 0
    %1484 = vmatpush1.bf16.xpose.msra.mxu0 0
    %1485 = vmatprep.subr.bf16.mxu0 0
    %1486 = vmatpush1.bf16.xpose.msra.mxu0 0
    %1487 = vmatprep.subr.bf16.mxu0 0
    %1488 = vmatpush1.bf16.xpose.msra.mxu0 0
    %1489 = vmatprep.subr.bf16.mxu0 0
    %1490 = vmatpush1.bf16.xpose.msra.mxu0 0
    %1491 = vmatprep.subr.bf16.mxu0 0
    %1492 = vmatpush1.bf16.xpose.msra.mxu0 0
    %1493 = vmatprep.subr.bf16.mxu0 0
    %1494 = vmatpush1.bf16.xpose.msra.mxu0 %v1477
    %1495 = vmatprep.subr.bf16.mxu0 0
    %1496 = vmatpush2.bf16.xpose.msra.mxu0 0
    %1497 = vmatprep.subr.bf16.mxu0 0
    %1498 = vmatpush2.bf16.xpose.msra.mxu0 0
    %1499 = vmatprep.subr.bf16.mxu0 0
    %1500 = vmatpush2.bf16.xpose.msra.mxu0 0
    %1501 = vmatprep.subr.bf16.mxu0 0
    %1502 = vmatpush2.bf16.xpose.msra.mxu0 0
    %1503 = vmatprep.subr.bf16.mxu0 0
    %1504 = vmatpush2.bf16.xpose.msra.mxu0 0
    %1505 = vmatprep.subr.bf16.mxu0 0
    %1506 = vmatpush2.bf16.xpose.msra.mxu0 0
    %1507 = vmatprep.subr.bf16.mxu0 0
    %1508 = vmatpush2.bf16.xpose.msra.mxu0 0
    %1509 = vmatprep.subr.bf16.mxu0 0
    %1510 = vmatpush2.bf16.xpose.msra.mxu0 0
    %1511 = vmatprep.mubr.bf16.mxu0 0
    %1512 = vmatmul.mubr.bf16.gmra.mxu0 %v1474
    %v1513 = vpop.f32.mrf.mxu0
    %v1514 = vadd.f32 0.0, %v1513
    %v1515 = vpop.f32.mrf.mxu0
    %v1516 = vpop.f32.mrf.mxu0
    %v1517 = vpop.f32.mrf.mxu0
    %1518 = vdwg.mxu0
    %1520 = vrot.lane.b32.xlu0 %v1463, 96
    %v1521 = vpop.permute.xlu0 %1520
    %v1523 = vsel %vm193, %v1463, 0
    %v1526 = vsel %vm193, %v1521, 0
    %1528 = vmatprep.subr.bf16.mxu0 0
    %1529 = vmatpush1.bf16.xpose.msra.mxu0 0
    %1530 = vmatprep.subr.bf16.mxu0 0
    %1531 = vmatpush1.bf16.xpose.msra.mxu0 0
    %1532 = vmatprep.subr.bf16.mxu0 0
    %1533 = vmatpush1.bf16.xpose.msra.mxu0 0
    %1534 = vmatprep.subr.bf16.mxu0 0
    %1535 = vmatpush1.bf16.xpose.msra.mxu0 0
    %1536 = vmatprep.subr.bf16.mxu0 0
    %1537 = vmatpush1.bf16.xpose.msra.mxu0 0
    %1538 = vmatprep.subr.bf16.mxu0 0
    %1539 = vmatpush1.bf16.xpose.msra.mxu0 0
    %1540 = vmatprep.subr.bf16.mxu0 0
    %1541 = vmatpush1.bf16.xpose.msra.mxu0 0
    %1542 = vmatprep.subr.bf16.mxu0 0
    %1543 = vmatpush1.bf16.xpose.msra.mxu0 %v1526
    %1544 = vmatprep.subr.bf16.mxu0 0
    %1545 = vmatpush2.bf16.xpose.msra.mxu0 0
    %1546 = vmatprep.subr.bf16.mxu0 0
    %1547 = vmatpush2.bf16.xpose.msra.mxu0 0
    %1548 = vmatprep.subr.bf16.mxu0 0
    %1549 = vmatpush2.bf16.xpose.msra.mxu0 0
    %1550 = vmatprep.subr.bf16.mxu0 0
    %1551 = vmatpush2.bf16.xpose.msra.mxu0 0
    %1552 = vmatprep.subr.bf16.mxu0 0
    %1553 = vmatpush2.bf16.xpose.msra.mxu0 0
    %1554 = vmatprep.subr.bf16.mxu0 0
    %1555 = vmatpush2.bf16.xpose.msra.mxu0 0
    %1556 = vmatprep.subr.bf16.mxu0 0
    %1557 = vmatpush2.bf16.xpose.msra.mxu0 0
    %1558 = vmatprep.subr.bf16.mxu0 0
    %1559 = vmatpush2.bf16.xpose.msra.mxu0 0
    %1560 = vmatprep.mubr.bf16.mxu0 0
    %1561 = vmatmul.mubr.bf16.gmra.mxu0 %v1523
    %v1562 = vpop.f32.mrf.mxu0
    %v1563 = vadd.f32 0.0, %v1562
    %v1564 = vpop.f32.mrf.mxu0
    %v1565 = vpop.f32.mrf.mxu0
    %v1566 = vpop.f32.mrf.mxu0
    %1567 = vdwg.mxu0
    %1569 = vrot.lane.b32.xlu0 %v1464, 96
    %v1570 = vpop.permute.xlu0 %1569
    %v1572 = vsel %vm193, %v1464, 0
    %v1575 = vsel %vm193, %v1570, 0
    %1577 = vmatprep.subr.bf16.mxu0 0
    %1578 = vmatpush1.bf16.xpose.msra.mxu0 0
    %1579 = vmatprep.subr.bf16.mxu0 0
    %1580 = vmatpush1.bf16.xpose.msra.mxu0 0
    %1581 = vmatprep.subr.bf16.mxu0 0
    %1582 = vmatpush1.bf16.xpose.msra.mxu0 0
    %1583 = vmatprep.subr.bf16.mxu0 0
    %1584 = vmatpush1.bf16.xpose.msra.mxu0 0
    %1585 = vmatprep.subr.bf16.mxu0 0
    %1586 = vmatpush1.bf16.xpose.msra.mxu0 0
    %1587 = vmatprep.subr.bf16.mxu0 0
    %1588 = vmatpush1.bf16.xpose.msra.mxu0 0
    %1589 = vmatprep.subr.bf16.mxu0 0
    %1590 = vmatpush1.bf16.xpose.msra.mxu0 0
    %1591 = vmatprep.subr.bf16.mxu0 0
    %1592 = vmatpush1.bf16.xpose.msra.mxu0 %v1575
    %1593 = vmatprep.subr.bf16.mxu0 0
    %1594 = vmatpush2.bf16.xpose.msra.mxu0 0
    %1595 = vmatprep.subr.bf16.mxu0 0
    %1596 = vmatpush2.bf16.xpose.msra.mxu0 0
    %1597 = vmatprep.subr.bf16.mxu0 0
    %1598 = vmatpush2.bf16.xpose.msra.mxu0 0
    %1599 = vmatprep.subr.bf16.mxu0 0
    %1600 = vmatpush2.bf16.xpose.msra.mxu0 0
    %1601 = vmatprep.subr.bf16.mxu0 0
    %1602 = vmatpush2.bf16.xpose.msra.mxu0 0
    %1603 = vmatprep.subr.bf16.mxu0 0
    %1604 = vmatpush2.bf16.xpose.msra.mxu0 0
    %1605 = vmatprep.subr.bf16.mxu0 0
    %1606 = vmatpush2.bf16.xpose.msra.mxu0 0
    %1607 = vmatprep.subr.bf16.mxu0 0
    %1608 = vmatpush2.bf16.xpose.msra.mxu0 0
    %1609 = vmatprep.mubr.bf16.mxu0 0
    %1610 = vmatmul.mubr.bf16.gmra.mxu0 %v1572
    %v1611 = vpop.f32.mrf.mxu0
    %v1612 = vadd.f32 0.0, %v1611
    %v1613 = vpop.f32.mrf.mxu0
    %v1614 = vpop.f32.mrf.mxu0
    %v1615 = vpop.f32.mrf.mxu0
    %1616 = vdwg.mxu0
    %1618 = vrot.lane.b32.xlu0 %v1465, 96
    %v1619 = vpop.permute.xlu0 %1618
    %v1621 = vsel %vm193, %v1465, 0
    %v1624 = vsel %vm193, %v1619, 0
    %1626 = vmatprep.subr.bf16.mxu0 0
    %1627 = vmatpush1.bf16.xpose.msra.mxu0 0
    %1628 = vmatprep.subr.bf16.mxu0 0
    %1629 = vmatpush1.bf16.xpose.msra.mxu0 0
    %1630 = vmatprep.subr.bf16.mxu0 0
    %1631 = vmatpush1.bf16.xpose.msra.mxu0 0
    %1632 = vmatprep.subr.bf16.mxu0 0
    %1633 = vmatpush1.bf16.xpose.msra.mxu0 0
    %1634 = vmatprep.subr.bf16.mxu0 0
    %1635 = vmatpush1.bf16.xpose.msra.mxu0 0
    %1636 = vmatprep.subr.bf16.mxu0 0
    %1637 = vmatpush1.bf16.xpose.msra.mxu0 0
    %1638 = vmatprep.subr.bf16.mxu0 0
    %1639 = vmatpush1.bf16.xpose.msra.mxu0 0
    %1640 = vmatprep.subr.bf16.mxu0 0
    %1641 = vmatpush1.bf16.xpose.msra.mxu0 %v1624
    %1642 = vmatprep.subr.bf16.mxu0 0
    %1643 = vmatpush2.bf16.xpose.msra.mxu0 0
    %1644 = vmatprep.subr.bf16.mxu0 0
    %1645 = vmatpush2.bf16.xpose.msra.mxu0 0
    %1646 = vmatprep.subr.bf16.mxu0 0
    %1647 = vmatpush2.bf16.xpose.msra.mxu0 0
    %1648 = vmatprep.subr.bf16.mxu0 0
    %1649 = vmatpush2.bf16.xpose.msra.mxu0 0
    %1650 = vmatprep.subr.bf16.mxu0 0
    %1651 = vmatpush2.bf16.xpose.msra.mxu0 0
    %1652 = vmatprep.subr.bf16.mxu0 0
    %1653 = vmatpush2.bf16.xpose.msra.mxu0 0
    %1654 = vmatprep.subr.bf16.mxu0 0
    %1655 = vmatpush2.bf16.xpose.msra.mxu0 0
    %1656 = vmatprep.subr.bf16.mxu0 0
    %1657 = vmatpush2.bf16.xpose.msra.mxu0 0
    %1658 = vmatprep.mubr.bf16.mxu0 0
    %1659 = vmatmul.mubr.bf16.gmra.mxu0 %v1621
    %v1660 = vpop.f32.mrf.mxu0
    %v1661 = vadd.f32 0.0, %v1660
    %v1662 = vpop.f32.mrf.mxu0
    %v1663 = vpop.f32.mrf.mxu0
    %v1664 = vpop.f32.mrf.mxu0
    %1665 = vdwg.mxu0
    %1667 = vrot.lane.b32.xlu0 %v1466, 96
    %v1668 = vpop.permute.xlu0 %1667
    %v1670 = vsel %vm193, %v1466, 0
    %v1673 = vsel %vm193, %v1668, 0
    %1675 = vmatprep.subr.bf16.mxu0 0
    %1676 = vmatpush1.bf16.xpose.msra.mxu0 0
    %1677 = vmatprep.subr.bf16.mxu0 0
    %1678 = vmatpush1.bf16.xpose.msra.mxu0 0
    %1679 = vmatprep.subr.bf16.mxu0 0
    %1680 = vmatpush1.bf16.xpose.msra.mxu0 0
    %1681 = vmatprep.subr.bf16.mxu0 0
    %1682 = vmatpush1.bf16.xpose.msra.mxu0 0
    %1683 = vmatprep.subr.bf16.mxu0 0
    %1684 = vmatpush1.bf16.xpose.msra.mxu0 0
    %1685 = vmatprep.subr.bf16.mxu0 0
    %1686 = vmatpush1.bf16.xpose.msra.mxu0 0
    %1687 = vmatprep.subr.bf16.mxu0 0
    %1688 = vmatpush1.bf16.xpose.msra.mxu0 0
    %1689 = vmatprep.subr.bf16.mxu0 0
    %1690 = vmatpush1.bf16.xpose.msra.mxu0 %v1673
    %1691 = vmatprep.subr.bf16.mxu0 0
    %1692 = vmatpush2.bf16.xpose.msra.mxu0 0
    %1693 = vmatprep.subr.bf16.mxu0 0
    %1694 = vmatpush2.bf16.xpose.msra.mxu0 0
    %1695 = vmatprep.subr.bf16.mxu0 0
    %1696 = vmatpush2.bf16.xpose.msra.mxu0 0
    %1697 = vmatprep.subr.bf16.mxu0 0
    %1698 = vmatpush2.bf16.xpose.msra.mxu0 0
    %1699 = vmatprep.subr.bf16.mxu0 0
    %1700 = vmatpush2.bf16.xpose.msra.mxu0 0
    %1701 = vmatprep.subr.bf16.mxu0 0
    %1702 = vmatpush2.bf16.xpose.msra.mxu0 0
    %1703 = vmatprep.subr.bf16.mxu0 0
    %1704 = vmatpush2.bf16.xpose.msra.mxu0 0
    %1705 = vmatprep.subr.bf16.mxu0 0
    %1706 = vmatpush2.bf16.xpose.msra.mxu0 0
    %1707 = vmatprep.mubr.bf16.mxu0 0
    %1708 = vmatmul.mubr.bf16.gmra.mxu0 %v1670
    %v1709 = vpop.f32.mrf.mxu0
    %v1710 = vadd.f32 0.0, %v1709
    %v1711 = vpop.f32.mrf.mxu0
    %v1712 = vpop.f32.mrf.mxu0
    %v1713 = vpop.f32.mrf.mxu0
    %1714 = vdwg.mxu0
    %1716 = vrot.lane.b32.xlu0 %v1467, 96
    %v1717 = vpop.permute.xlu0 %1716
    %v1719 = vsel %vm193, %v1467, 0
    %v1722 = vsel %vm193, %v1717, 0
    %1724 = vmatprep.subr.bf16.mxu0 0
    %1725 = vmatpush1.bf16.xpose.msra.mxu0 0
    %1726 = vmatprep.subr.bf16.mxu0 0
    %1727 = vmatpush1.bf16.xpose.msra.mxu0 0
    %1728 = vmatprep.subr.bf16.mxu0 0
    %1729 = vmatpush1.bf16.xpose.msra.mxu0 0
    %1730 = vmatprep.subr.bf16.mxu0 0
    %1731 = vmatpush1.bf16.xpose.msra.mxu0 0
    %1732 = vmatprep.subr.bf16.mxu0 0
    %1733 = vmatpush1.bf16.xpose.msra.mxu0 0
    %1734 = vmatprep.subr.bf16.mxu0 0
    %1735 = vmatpush1.bf16.xpose.msra.mxu0 0
    %1736 = vmatprep.subr.bf16.mxu0 0
    %1737 = vmatpush1.bf16.xpose.msra.mxu0 0
    %1738 = vmatprep.subr.bf16.mxu0 0
    %1739 = vmatpush1.bf16.xpose.msra.mxu0 %v1722
    %1740 = vmatprep.subr.bf16.mxu0 0
    %1741 = vmatpush2.bf16.xpose.msra.mxu0 0
    %1742 = vmatprep.subr.bf16.mxu0 0
    %1743 = vmatpush2.bf16.xpose.msra.mxu0 0
    %1744 = vmatprep.subr.bf16.mxu0 0
    %1745 = vmatpush2.bf16.xpose.msra.mxu0 0
    %1746 = vmatprep.subr.bf16.mxu0 0
    %1747 = vmatpush2.bf16.xpose.msra.mxu0 0
    %1748 = vmatprep.subr.bf16.mxu0 0
    %1749 = vmatpush2.bf16.xpose.msra.mxu0 0
    %1750 = vmatprep.subr.bf16.mxu0 0
    %1751 = vmatpush2.bf16.xpose.msra.mxu0 0
    %1752 = vmatprep.subr.bf16.mxu0 0
    %1753 = vmatpush2.bf16.xpose.msra.mxu0 0
    %1754 = vmatprep.subr.bf16.mxu0 0
    %1755 = vmatpush2.bf16.xpose.msra.mxu0 0
    %1756 = vmatprep.mubr.bf16.mxu0 0
    %1757 = vmatmul.mubr.bf16.gmra.mxu0 %v1719
    %v1758 = vpop.f32.mrf.mxu0
    %v1759 = vadd.f32 0.0, %v1758
    %v1760 = vpop.f32.mrf.mxu0
    %v1761 = vpop.f32.mrf.mxu0
    %v1762 = vpop.f32.mrf.mxu0
    %1763 = vdwg.mxu0
    %1765 = vrot.lane.b32.xlu0 %v1468, 96
    %v1766 = vpop.permute.xlu0 %1765
    %v1768 = vsel %vm193, %v1468, 0
    %v1771 = vsel %vm193, %v1766, 0
    %1773 = vmatprep.subr.bf16.mxu0 0
    %1774 = vmatpush1.bf16.xpose.msra.mxu0 0
    %1775 = vmatprep.subr.bf16.mxu0 0
    %1776 = vmatpush1.bf16.xpose.msra.mxu0 0
    %1777 = vmatprep.subr.bf16.mxu0 0
    %1778 = vmatpush1.bf16.xpose.msra.mxu0 0
    %1779 = vmatprep.subr.bf16.mxu0 0
    %1780 = vmatpush1.bf16.xpose.msra.mxu0 0
    %1781 = vmatprep.subr.bf16.mxu0 0
    %1782 = vmatpush1.bf16.xpose.msra.mxu0 0
    %1783 = vmatprep.subr.bf16.mxu0 0
    %1784 = vmatpush1.bf16.xpose.msra.mxu0 0
    %1785 = vmatprep.subr.bf16.mxu0 0
    %1786 = vmatpush1.bf16.xpose.msra.mxu0 0
    %1787 = vmatprep.subr.bf16.mxu0 0
    %1788 = vmatpush1.bf16.xpose.msra.mxu0 %v1771
    %1789 = vmatprep.subr.bf16.mxu0 0
    %1790 = vmatpush2.bf16.xpose.msra.mxu0 0
    %1791 = vmatprep.subr.bf16.mxu0 0
    %1792 = vmatpush2.bf16.xpose.msra.mxu0 0
    %1793 = vmatprep.subr.bf16.mxu0 0
    %1794 = vmatpush2.bf16.xpose.msra.mxu0 0
    %1795 = vmatprep.subr.bf16.mxu0 0
    %1796 = vmatpush2.bf16.xpose.msra.mxu0 0
    %1797 = vmatprep.subr.bf16.mxu0 0
    %1798 = vmatpush2.bf16.xpose.msra.mxu0 0
    %1799 = vmatprep.subr.bf16.mxu0 0
    %1800 = vmatpush2.bf16.xpose.msra.mxu0 0
    %1801 = vmatprep.subr.bf16.mxu0 0
    %1802 = vmatpush2.bf16.xpose.msra.mxu0 0
    %1803 = vmatprep.subr.bf16.mxu0 0
    %1804 = vmatpush2.bf16.xpose.msra.mxu0 0
    %1805 = vmatprep.mubr.bf16.mxu0 0
    %1806 = vmatmul.mubr.bf16.gmra.mxu0 %v1768
    %v1807 = vpop.f32.mrf.mxu0
    %v1808 = vadd.f32 0.0, %v1807
    %v1809 = vpop.f32.mrf.mxu0
    %v1810 = vpop.f32.mrf.mxu0
    %v1811 = vpop.f32.mrf.mxu0
    %1812 = vdwg.mxu0
    %1814 = vrot.lane.b32.xlu0 %v1469, 96
    %v1815 = vpop.permute.xlu0 %1814
    %v1817 = vsel %vm193, %v1469, 0
    %v1820 = vsel %vm193, %v1815, 0
    %1822 = vmatprep.subr.bf16.mxu0 0
    %1823 = vmatpush1.bf16.xpose.msra.mxu0 0
    %1824 = vmatprep.subr.bf16.mxu0 0
    %1825 = vmatpush1.bf16.xpose.msra.mxu0 0
    %1826 = vmatprep.subr.bf16.mxu0 0
    %1827 = vmatpush1.bf16.xpose.msra.mxu0 0
    %1828 = vmatprep.subr.bf16.mxu0 0
    %1829 = vmatpush1.bf16.xpose.msra.mxu0 0
    %1830 = vmatprep.subr.bf16.mxu0 0
    %1831 = vmatpush1.bf16.xpose.msra.mxu0 0
    %1832 = vmatprep.subr.bf16.mxu0 0
    %1833 = vmatpush1.bf16.xpose.msra.mxu0 0
    %1834 = vmatprep.subr.bf16.mxu0 0
    %1835 = vmatpush1.bf16.xpose.msra.mxu0 0
    %1836 = vmatprep.subr.bf16.mxu0 0
    %1837 = vmatpush1.bf16.xpose.msra.mxu0 %v1820
    %1838 = vmatprep.subr.bf16.mxu0 0
    %1839 = vmatpush2.bf16.xpose.msra.mxu0 0
    %1840 = vmatprep.subr.bf16.mxu0 0
    %1841 = vmatpush2.bf16.xpose.msra.mxu0 0
    %1842 = vmatprep.subr.bf16.mxu0 0
    %1843 = vmatpush2.bf16.xpose.msra.mxu0 0
    %1844 = vmatprep.subr.bf16.mxu0 0
    %1845 = vmatpush2.bf16.xpose.msra.mxu0 0
    %1846 = vmatprep.subr.bf16.mxu0 0
    %1847 = vmatpush2.bf16.xpose.msra.mxu0 0
    %1848 = vmatprep.subr.bf16.mxu0 0
    %1849 = vmatpush2.bf16.xpose.msra.mxu0 0
    %1850 = vmatprep.subr.bf16.mxu0 0
    %1851 = vmatpush2.bf16.xpose.msra.mxu0 0
    %1852 = vmatprep.subr.bf16.mxu0 0
    %1853 = vmatpush2.bf16.xpose.msra.mxu0 0
    %1854 = vmatprep.mubr.bf16.mxu0 0
    %1855 = vmatmul.mubr.bf16.gmra.mxu0 %v1817
    %v1856 = vpop.f32.mrf.mxu0
    %v1857 = vadd.f32 0.0, %v1856
    %v1858 = vpop.f32.mrf.mxu0
    %v1859 = vpop.f32.mrf.mxu0
    %v1860 = vpop.f32.mrf.mxu0
    %1861 = vdwg.mxu0
    %v1862 = vsel %vm193, %v1514, -inf
    %1863 = vmax.xlane.f32.xlu0 %v1862
    %v1864 = vpop.xlane.xlu0 %1863
    %v1865 = vsel %vm193, %v1563, -inf
    %1866 = vmax.xlane.f32.xlu0 %v1865
    %v1867 = vpop.xlane.xlu0 %1866
    %v1868 = vsel %vm193, %v1612, -inf
    %1869 = vmax.xlane.f32.xlu0 %v1868
    %v1870 = vpop.xlane.xlu0 %1869
    %v1871 = vsel %vm193, %v1661, -inf
    %1872 = vmax.xlane.f32.xlu0 %v1871
    %v1873 = vpop.xlane.xlu0 %1872
    %v1874 = vsel %vm193, %v1710, -inf
    %1875 = vmax.xlane.f32.xlu0 %v1874
    %v1876 = vpop.xlane.xlu0 %1875
    %v1877 = vsel %vm193, %v1759, -inf
    %1878 = vmax.xlane.f32.xlu0 %v1877
    %v1879 = vpop.xlane.xlu0 %1878
    %v1880 = vsel %vm193, %v1808, -inf
    %1881 = vmax.xlane.f32.xlu0 %v1880
    %v1882 = vpop.xlane.xlu0 %1881
    %v1883 = vsel %vm193, %v1857, -inf
    %1884 = vmax.xlane.f32.xlu0 %v1883
    %v1885 = vpop.xlane.xlu0 %1884
    %v1886 = vsub.f32 %v1514, %v1864
    %v1887 = vsub.f32 %v1563, %v1867
    %v1888 = vsub.f32 %v1612, %v1870
    %v1889 = vsub.f32 %v1661, %v1873
    %v1890 = vsub.f32 %v1710, %v1876
    %v1891 = vsub.f32 %v1759, %v1879
    %v1892 = vsub.f32 %v1808, %v1882
    %v1893 = vsub.f32 %v1857, %v1885
    %v1894 = vmul.f32 %v1886, 1.442695
    %v1895 = vpow.pop %v1894
    %v1896 = vmul.f32 %v1887, 1.442695
    %v1897 = vpow.pop %v1896
    %v1898 = vmul.f32 %v1888, 1.442695
    %v1899 = vpow.pop %v1898
    %v1900 = vmul.f32 %v1889, 1.442695
    %v1901 = vpow.pop %v1900
    %v1902 = vmul.f32 %v1890, 1.442695
    %v1903 = vpow.pop %v1902
    %v1904 = vmul.f32 %v1891, 1.442695
    %v1905 = vpow.pop %v1904
    %v1906 = vmul.f32 %v1892, 1.442695
    %v1907 = vpow.pop %v1906
    %v1908 = vmul.f32 %v1893, 1.442695
    %v1909 = vpow.pop %v1908
    %v1910 = vsel %vm193, %v1895, 0.0
    %1911 = vadd.xlane.f32.xlu0 %v1910
    %v1912 = vpop.xlane.xlu0 %1911
    %v1913 = vsel %vm193, %v1897, 0.0
    %1914 = vadd.xlane.f32.xlu0 %v1913
    %v1915 = vpop.xlane.xlu0 %1914
    %v1916 = vsel %vm193, %v1899, 0.0
    %1917 = vadd.xlane.f32.xlu0 %v1916
    %v1918 = vpop.xlane.xlu0 %1917
    %v1919 = vsel %vm193, %v1901, 0.0
    %1920 = vadd.xlane.f32.xlu0 %v1919
    %v1921 = vpop.xlane.xlu0 %1920
    %v1922 = vsel %vm193, %v1903, 0.0
    %1923 = vadd.xlane.f32.xlu0 %v1922
    %v1924 = vpop.xlane.xlu0 %1923
    %v1925 = vsel %vm193, %v1905, 0.0
    %1926 = vadd.xlane.f32.xlu0 %v1925
    %v1927 = vpop.xlane.xlu0 %1926
    %v1928 = vsel %vm193, %v1907, 0.0
    %1929 = vadd.xlane.f32.xlu0 %v1928
    %v1930 = vpop.xlane.xlu0 %1929
    %v1931 = vsel %vm193, %v1909, 0.0
    %1932 = vadd.xlane.f32.xlu0 %v1931
    %v1933 = vpop.xlane.xlu0 %1932
    %v1934 = vrcp.pop %v1912
    %v1935 = vrcp.pop %v1915
    %v1936 = vrcp.pop %v1918
    %v1937 = vrcp.pop %v1921
    %v1938 = vrcp.pop %v1924
    %v1939 = vrcp.pop %v1927
    %v1940 = vrcp.pop %v1930
    %v1941 = vrcp.pop %v1933
    %v1942 = vmul.f32 %v1895, %v1934
    %v1943 = vmul.f32 %v1897, %v1935
    %v1944 = vmul.f32 %v1899, %v1936
    %v1945 = vmul.f32 %v1901, %v1937
    %v1946 = vmul.f32 %v1903, %v1938
    %v1947 = vmul.f32 %v1905, %v1939
    %v1948 = vmul.f32 %v1907, %v1940
    %v1949 = vmul.f32 %v1909, %v1941
    %v1950 = vpack.c.bf16 %v1942, %v1942
    %v1951 = vpack.c.bf16 %v1943, %v1943
    %v1952 = vpack.c.bf16 %v1944, %v1944
    %v1953 = vpack.c.bf16 %v1945, %v1945
    %v1954 = vpack.c.bf16 %v1946, %v1946
    %v1955 = vpack.c.bf16 %v1947, %v1947
    %v1956 = vpack.c.bf16 %v1948, %v1948
    %v1957 = vpack.c.bf16 %v1949, %v1949
    %1958 = vrot.lane.b32.xlu0 %v1462, 64
    %v1959 = vpop.permute.xlu0 %1958
    %v1961 = vsel %vm193, %v1950, 0
    %v1964 = vsel %vm684, %v1959, 0
    %1966 = vmatprep.subr.bf16.mxu0 0
    %1967 = vmatpush1.bf16.msra.mxu0 0
    %1968 = vmatprep.subr.bf16.mxu0 0
    %1969 = vmatpush1.bf16.msra.mxu0 0
    %1970 = vmatprep.subr.bf16.mxu0 0
    %1971 = vmatpush1.bf16.msra.mxu0 0
    %1972 = vmatprep.subr.bf16.mxu0 0
    %1973 = vmatpush1.bf16.msra.mxu0 0
    %1974 = vmatprep.subr.bf16.mxu0 0
    %1975 = vmatpush1.bf16.msra.mxu0 0
    %1976 = vmatprep.subr.bf16.mxu0 0
    %1977 = vmatpush1.bf16.msra.mxu0 0
    %1978 = vmatprep.subr.bf16.mxu0 0
    %1979 = vmatpush1.bf16.msra.mxu0 0
    %1980 = vmatprep.subr.bf16.mxu0 0
    %1981 = vmatpush1.bf16.msra.mxu0 %v1964
    %1982 = vmatprep.subr.bf16.mxu0 0
    %1983 = vmatpush2.bf16.msra.mxu0 0
    %1984 = vmatprep.subr.bf16.mxu0 0
    %1985 = vmatpush2.bf16.msra.mxu0 0
    %1986 = vmatprep.subr.bf16.mxu0 0
    %1987 = vmatpush2.bf16.msra.mxu0 0
    %1988 = vmatprep.subr.bf16.mxu0 0
    %1989 = vmatpush2.bf16.msra.mxu0 0
    %1990 = vmatprep.subr.bf16.mxu0 0
    %1991 = vmatpush2.bf16.msra.mxu0 0
    %1992 = vmatprep.subr.bf16.mxu0 0
    %1993 = vmatpush2.bf16.msra.mxu0 0
    %1994 = vmatprep.subr.bf16.mxu0 0
    %1995 = vmatpush2.bf16.msra.mxu0 0
    %1996 = vmatprep.subr.bf16.mxu0 0
    %1997 = vmatpush2.bf16.msra.mxu0 0
    %1998 = vmatprep.mubr.bf16.mxu0 0
    %1999 = vmatmul.mubr.bf16.gmra.mxu0 %v1961
    %v2000 = vpop.f32.mrf.mxu0
    %v2001 = vadd.f32 0.0, %v2000
    %v2002 = vpop.f32.mrf.mxu0
    %v2003 = vpop.f32.mrf.mxu0
    %v2004 = vpop.f32.mrf.mxu0
    %2005 = vdwg.mxu0
    %2006 = vrot.lane.b32.xlu0 %v1463, 64
    %v2007 = vpop.permute.xlu0 %2006
    %v2009 = vsel %vm193, %v1951, 0
    %v2012 = vsel %vm684, %v2007, 0
    %2014 = vmatprep.subr.bf16.mxu0 0
    %2015 = vmatpush1.bf16.msra.mxu0 0
    %2016 = vmatprep.subr.bf16.mxu0 0
    %2017 = vmatpush1.bf16.msra.mxu0 0
    %2018 = vmatprep.subr.bf16.mxu0 0
    %2019 = vmatpush1.bf16.msra.mxu0 0
    %2020 = vmatprep.subr.bf16.mxu0 0
    %2021 = vmatpush1.bf16.msra.mxu0 0
    %2022 = vmatprep.subr.bf16.mxu0 0
    %2023 = vmatpush1.bf16.msra.mxu0 0
    %2024 = vmatprep.subr.bf16.mxu0 0
    %2025 = vmatpush1.bf16.msra.mxu0 0
    %2026 = vmatprep.subr.bf16.mxu0 0
    %2027 = vmatpush1.bf16.msra.mxu0 0
    %2028 = vmatprep.subr.bf16.mxu0 0
    %2029 = vmatpush1.bf16.msra.mxu0 %v2012
    %2030 = vmatprep.subr.bf16.mxu0 0
    %2031 = vmatpush2.bf16.msra.mxu0 0
    %2032 = vmatprep.subr.bf16.mxu0 0
    %2033 = vmatpush2.bf16.msra.mxu0 0
    %2034 = vmatprep.subr.bf16.mxu0 0
    %2035 = vmatpush2.bf16.msra.mxu0 0
    %2036 = vmatprep.subr.bf16.mxu0 0
    %2037 = vmatpush2.bf16.msra.mxu0 0
    %2038 = vmatprep.subr.bf16.mxu0 0
    %2039 = vmatpush2.bf16.msra.mxu0 0
    %2040 = vmatprep.subr.bf16.mxu0 0
    %2041 = vmatpush2.bf16.msra.mxu0 0
    %2042 = vmatprep.subr.bf16.mxu0 0
    %2043 = vmatpush2.bf16.msra.mxu0 0
    %2044 = vmatprep.subr.bf16.mxu0 0
    %2045 = vmatpush2.bf16.msra.mxu0 0
    %2046 = vmatprep.mubr.bf16.mxu0 0
    %2047 = vmatmul.mubr.bf16.gmra.mxu0 %v2009
    %v2048 = vpop.f32.mrf.mxu0
    %v2049 = vadd.f32 0.0, %v2048
    %v2050 = vpop.f32.mrf.mxu0
    %v2051 = vpop.f32.mrf.mxu0
    %v2052 = vpop.f32.mrf.mxu0
    %2053 = vdwg.mxu0
    %2054 = vrot.lane.b32.xlu0 %v1464, 64
    %v2055 = vpop.permute.xlu0 %2054
    %v2057 = vsel %vm193, %v1952, 0
    %v2060 = vsel %vm684, %v2055, 0
    %2062 = vmatprep.subr.bf16.mxu0 0
    %2063 = vmatpush1.bf16.msra.mxu0 0
    %2064 = vmatprep.subr.bf16.mxu0 0
    %2065 = vmatpush1.bf16.msra.mxu0 0
    %2066 = vmatprep.subr.bf16.mxu0 0
    %2067 = vmatpush1.bf16.msra.mxu0 0
    %2068 = vmatprep.subr.bf16.mxu0 0
    %2069 = vmatpush1.bf16.msra.mxu0 0
    %2070 = vmatprep.subr.bf16.mxu0 0
    %2071 = vmatpush1.bf16.msra.mxu0 0
    %2072 = vmatprep.subr.bf16.mxu0 0
    %2073 = vmatpush1.bf16.msra.mxu0 0
    %2074 = vmatprep.subr.bf16.mxu0 0
    %2075 = vmatpush1.bf16.msra.mxu0 0
    %2076 = vmatprep.subr.bf16.mxu0 0
    %2077 = vmatpush1.bf16.msra.mxu0 %v2060
    %2078 = vmatprep.subr.bf16.mxu0 0
    %2079 = vmatpush2.bf16.msra.mxu0 0
    %2080 = vmatprep.subr.bf16.mxu0 0
    %2081 = vmatpush2.bf16.msra.mxu0 0
    %2082 = vmatprep.subr.bf16.mxu0 0
    %2083 = vmatpush2.bf16.msra.mxu0 0
    %2084 = vmatprep.subr.bf16.mxu0 0
    %2085 = vmatpush2.bf16.msra.mxu0 0
    %2086 = vmatprep.subr.bf16.mxu0 0
    %2087 = vmatpush2.bf16.msra.mxu0 0
    %2088 = vmatprep.subr.bf16.mxu0 0
    %2089 = vmatpush2.bf16.msra.mxu0 0
    %2090 = vmatprep.subr.bf16.mxu0 0
    %2091 = vmatpush2.bf16.msra.mxu0 0
    %2092 = vmatprep.subr.bf16.mxu0 0
    %2093 = vmatpush2.bf16.msra.mxu0 0
    %2094 = vmatprep.mubr.bf16.mxu0 0
    %2095 = vmatmul.mubr.bf16.gmra.mxu0 %v2057
    %v2096 = vpop.f32.mrf.mxu0
    %v2097 = vadd.f32 0.0, %v2096
    %v2098 = vpop.f32.mrf.mxu0
    %v2099 = vpop.f32.mrf.mxu0
    %v2100 = vpop.f32.mrf.mxu0
    %2101 = vdwg.mxu0
    %2102 = vrot.lane.b32.xlu0 %v1465, 64
    %v2103 = vpop.permute.xlu0 %2102
    %v2105 = vsel %vm193, %v1953, 0
    %v2108 = vsel %vm684, %v2103, 0
    %2110 = vmatprep.subr.bf16.mxu0 0
    %2111 = vmatpush1.bf16.msra.mxu0 0
    %2112 = vmatprep.subr.bf16.mxu0 0
    %2113 = vmatpush1.bf16.msra.mxu0 0
    %2114 = vmatprep.subr.bf16.mxu0 0
    %2115 = vmatpush1.bf16.msra.mxu0 0
    %2116 = vmatprep.subr.bf16.mxu0 0
    %2117 = vmatpush1.bf16.msra.mxu0 0
    %2118 = vmatprep.subr.bf16.mxu0 0
    %2119 = vmatpush1.bf16.msra.mxu0 0
    %2120 = vmatprep.subr.bf16.mxu0 0
    %2121 = vmatpush1.bf16.msra.mxu0 0
    %2122 = vmatprep.subr.bf16.mxu0 0
    %2123 = vmatpush1.bf16.msra.mxu0 0
    %2124 = vmatprep.subr.bf16.mxu0 0
    %2125 = vmatpush1.bf16.msra.mxu0 %v2108
    %2126 = vmatprep.subr.bf16.mxu0 0
    %2127 = vmatpush2.bf16.msra.mxu0 0
    %2128 = vmatprep.subr.bf16.mxu0 0
    %2129 = vmatpush2.bf16.msra.mxu0 0
    %2130 = vmatprep.subr.bf16.mxu0 0
    %2131 = vmatpush2.bf16.msra.mxu0 0
    %2132 = vmatprep.subr.bf16.mxu0 0
    %2133 = vmatpush2.bf16.msra.mxu0 0
    %2134 = vmatprep.subr.bf16.mxu0 0
    %2135 = vmatpush2.bf16.msra.mxu0 0
    %2136 = vmatprep.subr.bf16.mxu0 0
    %2137 = vmatpush2.bf16.msra.mxu0 0
    %2138 = vmatprep.subr.bf16.mxu0 0
    %2139 = vmatpush2.bf16.msra.mxu0 0
    %2140 = vmatprep.subr.bf16.mxu0 0
    %2141 = vmatpush2.bf16.msra.mxu0 0
    %2142 = vmatprep.mubr.bf16.mxu0 0
    %2143 = vmatmul.mubr.bf16.gmra.mxu0 %v2105
    %v2144 = vpop.f32.mrf.mxu0
    %v2145 = vadd.f32 0.0, %v2144
    %v2146 = vpop.f32.mrf.mxu0
    %v2147 = vpop.f32.mrf.mxu0
    %v2148 = vpop.f32.mrf.mxu0
    %2149 = vdwg.mxu0
    %2150 = vrot.lane.b32.xlu0 %v1466, 64
    %v2151 = vpop.permute.xlu0 %2150
    %v2153 = vsel %vm193, %v1954, 0
    %v2156 = vsel %vm684, %v2151, 0
    %2158 = vmatprep.subr.bf16.mxu0 0
    %2159 = vmatpush1.bf16.msra.mxu0 0
    %2160 = vmatprep.subr.bf16.mxu0 0
    %2161 = vmatpush1.bf16.msra.mxu0 0
    %2162 = vmatprep.subr.bf16.mxu0 0
    %2163 = vmatpush1.bf16.msra.mxu0 0
    %2164 = vmatprep.subr.bf16.mxu0 0
    %2165 = vmatpush1.bf16.msra.mxu0 0
    %2166 = vmatprep.subr.bf16.mxu0 0
    %2167 = vmatpush1.bf16.msra.mxu0 0
    %2168 = vmatprep.subr.bf16.mxu0 0
    %2169 = vmatpush1.bf16.msra.mxu0 0
    %2170 = vmatprep.subr.bf16.mxu0 0
    %2171 = vmatpush1.bf16.msra.mxu0 0
    %2172 = vmatprep.subr.bf16.mxu0 0
    %2173 = vmatpush1.bf16.msra.mxu0 %v2156
    %2174 = vmatprep.subr.bf16.mxu0 0
    %2175 = vmatpush2.bf16.msra.mxu0 0
    %2176 = vmatprep.subr.bf16.mxu0 0
    %2177 = vmatpush2.bf16.msra.mxu0 0
    %2178 = vmatprep.subr.bf16.mxu0 0
    %2179 = vmatpush2.bf16.msra.mxu0 0
    %2180 = vmatprep.subr.bf16.mxu0 0
    %2181 = vmatpush2.bf16.msra.mxu0 0
    %2182 = vmatprep.subr.bf16.mxu0 0
    %2183 = vmatpush2.bf16.msra.mxu0 0
    %2184 = vmatprep.subr.bf16.mxu0 0
    %2185 = vmatpush2.bf16.msra.mxu0 0
    %2186 = vmatprep.subr.bf16.mxu0 0
    %2187 = vmatpush2.bf16.msra.mxu0 0
    %2188 = vmatprep.subr.bf16.mxu0 0
    %2189 = vmatpush2.bf16.msra.mxu0 0
    %2190 = vmatprep.mubr.bf16.mxu0 0
    %2191 = vmatmul.mubr.bf16.gmra.mxu0 %v2153
    %v2192 = vpop.f32.mrf.mxu0
    %v2193 = vadd.f32 0.0, %v2192
    %v2194 = vpop.f32.mrf.mxu0
    %v2195 = vpop.f32.mrf.mxu0
    %v2196 = vpop.f32.mrf.mxu0
    %2197 = vdwg.mxu0
    %2198 = vrot.lane.b32.xlu0 %v1467, 64
    %v2199 = vpop.permute.xlu0 %2198
    %v2201 = vsel %vm193, %v1955, 0
    %v2204 = vsel %vm684, %v2199, 0
    %2206 = vmatprep.subr.bf16.mxu0 0
    %2207 = vmatpush1.bf16.msra.mxu0 0
    %2208 = vmatprep.subr.bf16.mxu0 0
    %2209 = vmatpush1.bf16.msra.mxu0 0
    %2210 = vmatprep.subr.bf16.mxu0 0
    %2211 = vmatpush1.bf16.msra.mxu0 0
    %2212 = vmatprep.subr.bf16.mxu0 0
    %2213 = vmatpush1.bf16.msra.mxu0 0
    %2214 = vmatprep.subr.bf16.mxu0 0
    %2215 = vmatpush1.bf16.msra.mxu0 0
    %2216 = vmatprep.subr.bf16.mxu0 0
    %2217 = vmatpush1.bf16.msra.mxu0 0
    %2218 = vmatprep.subr.bf16.mxu0 0
    %2219 = vmatpush1.bf16.msra.mxu0 0
    %2220 = vmatprep.subr.bf16.mxu0 0
    %2221 = vmatpush1.bf16.msra.mxu0 %v2204
    %2222 = vmatprep.subr.bf16.mxu0 0
    %2223 = vmatpush2.bf16.msra.mxu0 0
    %2224 = vmatprep.subr.bf16.mxu0 0
    %2225 = vmatpush2.bf16.msra.mxu0 0
    %2226 = vmatprep.subr.bf16.mxu0 0
    %2227 = vmatpush2.bf16.msra.mxu0 0
    %2228 = vmatprep.subr.bf16.mxu0 0
    %2229 = vmatpush2.bf16.msra.mxu0 0
    %2230 = vmatprep.subr.bf16.mxu0 0
    %2231 = vmatpush2.bf16.msra.mxu0 0
    %2232 = vmatprep.subr.bf16.mxu0 0
    %2233 = vmatpush2.bf16.msra.mxu0 0
    %2234 = vmatprep.subr.bf16.mxu0 0
    %2235 = vmatpush2.bf16.msra.mxu0 0
    %2236 = vmatprep.subr.bf16.mxu0 0
    %2237 = vmatpush2.bf16.msra.mxu0 0
    %2238 = vmatprep.mubr.bf16.mxu0 0
    %2239 = vmatmul.mubr.bf16.gmra.mxu0 %v2201
    %v2240 = vpop.f32.mrf.mxu0
    %v2241 = vadd.f32 0.0, %v2240
    %v2242 = vpop.f32.mrf.mxu0
    %v2243 = vpop.f32.mrf.mxu0
    %v2244 = vpop.f32.mrf.mxu0
    %2245 = vdwg.mxu0
    %2246 = vrot.lane.b32.xlu0 %v1468, 64
    %v2247 = vpop.permute.xlu0 %2246
    %v2249 = vsel %vm193, %v1956, 0
    %v2252 = vsel %vm684, %v2247, 0
    %2254 = vmatprep.subr.bf16.mxu0 0
    %2255 = vmatpush1.bf16.msra.mxu0 0
    %2256 = vmatprep.subr.bf16.mxu0 0
    %2257 = vmatpush1.bf16.msra.mxu0 0
    %2258 = vmatprep.subr.bf16.mxu0 0
    %2259 = vmatpush1.bf16.msra.mxu0 0
    %2260 = vmatprep.subr.bf16.mxu0 0
    %2261 = vmatpush1.bf16.msra.mxu0 0
    %2262 = vmatprep.subr.bf16.mxu0 0
    %2263 = vmatpush1.bf16.msra.mxu0 0
    %2264 = vmatprep.subr.bf16.mxu0 0
    %2265 = vmatpush1.bf16.msra.mxu0 0
    %2266 = vmatprep.subr.bf16.mxu0 0
    %2267 = vmatpush1.bf16.msra.mxu0 0
    %2268 = vmatprep.subr.bf16.mxu0 0
    %2269 = vmatpush1.bf16.msra.mxu0 %v2252
    %2270 = vmatprep.subr.bf16.mxu0 0
    %2271 = vmatpush2.bf16.msra.mxu0 0
    %2272 = vmatprep.subr.bf16.mxu0 0
    %2273 = vmatpush2.bf16.msra.mxu0 0
    %2274 = vmatprep.subr.bf16.mxu0 0
    %2275 = vmatpush2.bf16.msra.mxu0 0
    %2276 = vmatprep.subr.bf16.mxu0 0
    %2277 = vmatpush2.bf16.msra.mxu0 0
    %2278 = vmatprep.subr.bf16.mxu0 0
    %2279 = vmatpush2.bf16.msra.mxu0 0
    %2280 = vmatprep.subr.bf16.mxu0 0
    %2281 = vmatpush2.bf16.msra.mxu0 0
    %2282 = vmatprep.subr.bf16.mxu0 0
    %2283 = vmatpush2.bf16.msra.mxu0 0
    %2284 = vmatprep.subr.bf16.mxu0 0
    %2285 = vmatpush2.bf16.msra.mxu0 0
    %2286 = vmatprep.mubr.bf16.mxu0 0
    %2287 = vmatmul.mubr.bf16.gmra.mxu0 %v2249
    %v2288 = vpop.f32.mrf.mxu0
    %v2289 = vadd.f32 0.0, %v2288
    %v2290 = vpop.f32.mrf.mxu0
    %v2291 = vpop.f32.mrf.mxu0
    %v2292 = vpop.f32.mrf.mxu0
    %2293 = vdwg.mxu0
    %2294 = vrot.lane.b32.xlu0 %v1469, 64
    %v2295 = vpop.permute.xlu0 %2294
    %v2297 = vsel %vm193, %v1957, 0
    %v2300 = vsel %vm684, %v2295, 0
    %2302 = vmatprep.subr.bf16.mxu0 0
    %2303 = vmatpush1.bf16.msra.mxu0 0
    %2304 = vmatprep.subr.bf16.mxu0 0
    %2305 = vmatpush1.bf16.msra.mxu0 0
    %2306 = vmatprep.subr.bf16.mxu0 0
    %2307 = vmatpush1.bf16.msra.mxu0 0
    %2308 = vmatprep.subr.bf16.mxu0 0
    %2309 = vmatpush1.bf16.msra.mxu0 0
    %2310 = vmatprep.subr.bf16.mxu0 0
    %2311 = vmatpush1.bf16.msra.mxu0 0
    %2312 = vmatprep.subr.bf16.mxu0 0
    %2313 = vmatpush1.bf16.msra.mxu0 0
    %2314 = vmatprep.subr.bf16.mxu0 0
    %2315 = vmatpush1.bf16.msra.mxu0 0
    %2316 = vmatprep.subr.bf16.mxu0 0
    %2317 = vmatpush1.bf16.msra.mxu0 %v2300
    %2318 = vmatprep.subr.bf16.mxu0 0
    %2319 = vmatpush2.bf16.msra.mxu0 0
    %2320 = vmatprep.subr.bf16.mxu0 0
    %2321 = vmatpush2.bf16.msra.mxu0 0
    %2322 = vmatprep.subr.bf16.mxu0 0
    %2323 = vmatpush2.bf16.msra.mxu0 0
    %2324 = vmatprep.subr.bf16.mxu0 0
    %2325 = vmatpush2.bf16.msra.mxu0 0
    %2326 = vmatprep.subr.bf16.mxu0 0
    %2327 = vmatpush2.bf16.msra.mxu0 0
    %2328 = vmatprep.subr.bf16.mxu0 0
    %2329 = vmatpush2.bf16.msra.mxu0 0
    %2330 = vmatprep.subr.bf16.mxu0 0
    %2331 = vmatpush2.bf16.msra.mxu0 0
    %2332 = vmatprep.subr.bf16.mxu0 0
    %2333 = vmatpush2.bf16.msra.mxu0 0
    %2334 = vmatprep.mubr.bf16.mxu0 0
    %2335 = vmatmul.mubr.bf16.gmra.mxu0 %v2297
    %v2336 = vpop.f32.mrf.mxu0
    %v2337 = vadd.f32 0.0, %v2336
    %v2338 = vpop.f32.mrf.mxu0
    %v2339 = vpop.f32.mrf.mxu0
    %v2340 = vpop.f32.mrf.mxu0
    %2341 = vdwg.mxu0
    %2343 = vrot.lane.b32.xlu0 %v2049, 8
    %v2344 = vpop.permute.xlu0 %2343
    %2347 = vrot.lane.b32.xlu0 %v2097, 16
    %v2348 = vpop.permute.xlu0 %2347
    %2351 = vrot.lane.b32.xlu0 %v2145, 24
    %v2352 = vpop.permute.xlu0 %2351
    %v2354 = vsel %vm193, %v2001, %v2344
    %v2355 = vsel %vm1077, %v2354, %v2348
    %v2356 = vsel %vm1079, %v2355, %v2352
    %2358 = vrot.lane.b32.xlu0 %v2241, 8
    %v2359 = vpop.permute.xlu0 %2358
    %2362 = vrot.lane.b32.xlu0 %v2289, 16
    %v2363 = vpop.permute.xlu0 %2362
    %2366 = vrot.lane.b32.xlu0 %v2337, 24
    %v2367 = vpop.permute.xlu0 %2366
    %v2369 = vsel %vm193, %v2193, %v2359
    %v2370 = vsel %vm1077, %v2369, %v2363
    %v2371 = vsel %vm1079, %v2370, %v2367
    %v2372 = vpack.c.bf16 %v2371, %v2356
    %v2373 = vlaneseq
    %v2374 = vshrl.u32 %v2373, 7
    %v2375 = vsub.s32 0, %v2374
    %v2376 = vrot.slane %v1362, %v2375
    %v2381 = vunpack.c.l.b16 %v1344
    %v2382 = vunpack.c.l.b16 %v1345
    %v2383 = vunpack.c.l.b16 %v1346
    %v2384 = vunpack.c.l.b16 %v1347
    %v2385 = vpack.c.b16 %v2382, %v2381
    %v2386 = vpack.c.b16 %v2384, %v2383
    %v2390 = vsel %vm85, %v2372, 0
    %2392 = vmatprep.subr.bf16.mxu0 0
    %2393 = vmatpush1.bf16.msra.mxu0 0
    %2394 = vmatprep.subr.bf16.mxu0 0
    %2395 = vmatpush1.bf16.msra.mxu0 0
    %2396 = vmatprep.subr.bf16.mxu0 0
    %2397 = vmatpush1.bf16.msra.mxu0 0
    %2398 = vmatprep.subr.bf16.mxu0 0
    %2399 = vmatpush1.bf16.msra.mxu0 0
    %2400 = vmatprep.subr.bf16.mxu0 0
    %2401 = vmatpush1.bf16.msra.mxu0 0
    %2402 = vmatprep.subr.bf16.mxu0 0
    %2403 = vmatpush1.bf16.msra.mxu0 0
    %2404 = vmatprep.subr.bf16.mxu0 0
    %2405 = vmatpush1.bf16.msra.mxu0 %v2386
    %2406 = vmatprep.subr.bf16.mxu0 0
    %2407 = vmatpush1.bf16.msra.mxu0 %v2385
    %2408 = vmatprep.subr.bf16.mxu0 0
    %2409 = vmatpush2.bf16.msra.mxu0 0
    %2410 = vmatprep.subr.bf16.mxu0 0
    %2411 = vmatpush2.bf16.msra.mxu0 0
    %2412 = vmatprep.subr.bf16.mxu0 0
    %2413 = vmatpush2.bf16.msra.mxu0 0
    %2414 = vmatprep.subr.bf16.mxu0 0
    %2415 = vmatpush2.bf16.msra.mxu0 0
    %2416 = vmatprep.subr.bf16.mxu0 0
    %2417 = vmatpush2.bf16.msra.mxu0 0
    %2418 = vmatprep.subr.bf16.mxu0 0
    %2419 = vmatpush2.bf16.msra.mxu0 0
    %2420 = vmatprep.subr.bf16.mxu0 0
    %2421 = vmatpush2.bf16.msra.mxu0 0
    %2422 = vmatprep.subr.bf16.mxu0 0
    %2423 = vmatpush2.bf16.msra.mxu0 0
    %2424 = vmatprep.mubr.bf16.mxu0 0
    %2425 = vmatmul.mubr.bf16.gmra.mxu0 %v2390
    %v2426 = vpop.f32.mrf.mxu0
    %v2427 = vadd.f32 %v2376, %v2426
    %v2428 = vpop.f32.mrf.mxu0
    %v2429 = vpop.f32.mrf.mxu0
    %v2430 = vadd.f32 %v2376, %v2429
    %v2431 = vpop.f32.mrf.mxu0
    %2432 = vdwg.mxu0
    %v2433 = vadd.f32 %v2427, %v1337
    %v2434 = vadd.f32 %v2430, %v1338
    %v2435 = vmul.f32 %v2433, %v2433
    %v2436 = vmul.f32 %v2434, %v2434
    %v2437 = vsel %vm85, %v2435, 0.0
    %2438 = vadd.xlane.f32.xlu0 %v2437
    %v2439 = vpop.xlane.xlu0 %2438
    %v2440 = vsel %vm85, %v2436, 0.0
    %2441 = vadd.xlane.f32.xlu0 %v2440
    %v2442 = vpop.xlane.xlu0 %2441
    %v2443 = vmul.f32 %v2439, %v92
    %v2444 = vmul.f32 %v2442, %v92
    %v2445 = vadd.f32 %v2443, 1e-06
    %v2446 = vadd.f32 %v2444, 1e-06
    %v2447 = vrsqrt.pop %v2445
    %v2448 = vrsqrt.pop %v2446
    %v2449 = vmul.f32 %v2433, %v2447
    %v2450 = vmul.f32 %v2434, %v2448
    %v2451 = vpack.c.bf16 %v2450, %v2449
    %v2452 = vlaneseq
    %v2453 = vshrl.u32 %v2452, 7
    %v2454 = vsub.s32 0, %v2453
    %v2455 = vrot.slane %v1363, %v2454
    %v2460 = vunpack.c.l.b16 %v1348
    %v2461 = vunpack.c.l.b16 %v1349
    %v2462 = vunpack.c.l.b16 %v1350
    %v2463 = vunpack.c.l.b16 %v1351
    %v2464 = vpack.c.b16 %v2461, %v2460
    %v2465 = vpack.c.b16 %v2463, %v2462
    %v2469 = vsel %vm85, %v2451, 0
    %2471 = vmatprep.subr.bf16.mxu0 0
    %2472 = vmatpush1.bf16.msra.mxu0 0
    %2473 = vmatprep.subr.bf16.mxu0 0
    %2474 = vmatpush1.bf16.msra.mxu0 0
    %2475 = vmatprep.subr.bf16.mxu0 0
    %2476 = vmatpush1.bf16.msra.mxu0 0
    %2477 = vmatprep.subr.bf16.mxu0 0
    %2478 = vmatpush1.bf16.msra.mxu0 0
    %2479 = vmatprep.subr.bf16.mxu0 0
    %2480 = vmatpush1.bf16.msra.mxu0 0
    %2481 = vmatprep.subr.bf16.mxu0 0
    %2482 = vmatpush1.bf16.msra.mxu0 0
    %2483 = vmatprep.subr.bf16.mxu0 0
    %2484 = vmatpush1.bf16.msra.mxu0 %v2465
    %2485 = vmatprep.subr.bf16.mxu0 0
    %2486 = vmatpush1.bf16.msra.mxu0 %v2464
    %2487 = vmatprep.subr.bf16.mxu0 0
    %2488 = vmatpush2.bf16.msra.mxu0 0
    %2489 = vmatprep.subr.bf16.mxu0 0
    %2490 = vmatpush2.bf16.msra.mxu0 0
    %2491 = vmatprep.subr.bf16.mxu0 0
    %2492 = vmatpush2.bf16.msra.mxu0 0
    %2493 = vmatprep.subr.bf16.mxu0 0
    %2494 = vmatpush2.bf16.msra.mxu0 0
    %2495 = vmatprep.subr.bf16.mxu0 0
    %2496 = vmatpush2.bf16.msra.mxu0 0
    %2497 = vmatprep.subr.bf16.mxu0 0
    %2498 = vmatpush2.bf16.msra.mxu0 0
    %2499 = vmatprep.subr.bf16.mxu0 0
    %2500 = vmatpush2.bf16.msra.mxu0 0
    %2501 = vmatprep.subr.bf16.mxu0 0
    %2502 = vmatpush2.bf16.msra.mxu0 0
    %2503 = vmatprep.mubr.bf16.mxu0 0
    %2504 = vmatmul.mubr.bf16.gmra.mxu0 %v2469
    %v2505 = vpop.f32.mrf.mxu0
    %v2506 = vadd.f32 %v2455, %v2505
    %v2507 = vpop.f32.mrf.mxu0
    %v2508 = vpop.f32.mrf.mxu0
    %v2509 = vadd.f32 %v2455, %v2508
    %v2510 = vpop.f32.mrf.mxu0
    %2511 = vdwg.mxu0
    %v2512 = vxor.u32 %v2506, 2147483648
    %v2513 = vxor.u32 %v2509, 2147483648
    %v2514 = vmul.f32 %v2512, 1.442695
    %v2515 = vpow.pop %v2514
    %v2516 = vmul.f32 %v2513, 1.442695
    %v2517 = vpow.pop %v2516
    %v2518 = vadd.f32 %v2515, 1.0
    %v2519 = vadd.f32 %v2517, 1.0
    %v2520 = vrcp.pop %v2518
    %v2521 = vmul.f32 1.0, %v2520
    %v2522 = vrcp.pop %v2519
    %v2523 = vmul.f32 1.0, %v2522
    %v2524 = vmul.f32 %v2506, %v2521
    %v2525 = vmul.f32 %v2509, %v2523
    %2528 = vrot.lane.b32.xlu0 %v2524, 64
    %v2529 = vpop.permute.xlu0 %2528
    %2530 = vrot.lane.b32.xlu0 %v2525, 64
    %v2531 = vpop.permute.xlu0 %2530
    %v2534 = vmul.f32 %v2506, %v2529
    %v2535 = vmul.f32 %v2509, %v2531
    %v2536 = vpack.c.bf16 %v2535, %v2534
    %v2537 = vlaneseq
    %v2538 = vshrl.u32 %v2537, 7
    %v2539 = vsub.s32 0, %v2538
    %v2540 = vrot.slane %v1364, %v2539
    %2542 = vrot.lane.b32.xlu0 %v2536, 64
    %v2543 = vpop.permute.xlu0 %2542
    %v2552 = vunpack.c.l.b16 %v1352
    %v2553 = vunpack.c.l.b16 %v1353
    %v2554 = vunpack.c.l.b16 %v1354
    %v2555 = vunpack.c.l.b16 %v1355
    %v2556 = vunpack.c.l.b16 %v1356
    %v2557 = vunpack.c.l.b16 %v1357
    %v2558 = vunpack.c.l.b16 %v1358
    %v2559 = vunpack.c.l.b16 %v1359
    %v2560 = vpack.c.b16 %v2553, %v2552
    %v2561 = vpack.c.b16 %v2555, %v2554
    %v2562 = vpack.c.b16 %v2557, %v2556
    %v2563 = vpack.c.b16 %v2559, %v2558
    %v2569 = vsel %vm1292, %v2543, 0
    %2571 = vmatprep.subr.bf16.mxu0 0
    %2572 = vmatpush1.bf16.msra.mxu0 0
    %2573 = vmatprep.subr.bf16.mxu0 0
    %2574 = vmatpush1.bf16.msra.mxu0 0
    %2575 = vmatprep.subr.bf16.mxu0 0
    %2576 = vmatpush1.bf16.msra.mxu0 0
    %2577 = vmatprep.subr.bf16.mxu0 0
    %2578 = vmatpush1.bf16.msra.mxu0 0
    %2579 = vmatprep.subr.bf16.mxu0 0
    %2580 = vmatpush1.bf16.msra.mxu0 %v2563
    %2581 = vmatprep.subr.bf16.mxu0 0
    %2582 = vmatpush1.bf16.msra.mxu0 %v2562
    %2583 = vmatprep.subr.bf16.mxu0 0
    %2584 = vmatpush1.bf16.msra.mxu0 %v2561
    %2585 = vmatprep.subr.bf16.mxu0 0
    %2586 = vmatpush1.bf16.msra.mxu0 %v2560
    %2587 = vmatprep.subr.bf16.mxu0 0
    %2588 = vmatpush2.bf16.msra.mxu0 0
    %2589 = vmatprep.subr.bf16.mxu0 0
    %2590 = vmatpush2.bf16.msra.mxu0 0
    %2591 = vmatprep.subr.bf16.mxu0 0
    %2592 = vmatpush2.bf16.msra.mxu0 0
    %2593 = vmatprep.subr.bf16.mxu0 0
    %2594 = vmatpush2.bf16.msra.mxu0 0
    %2595 = vmatprep.subr.bf16.mxu0 0
    %2596 = vmatpush2.bf16.msra.mxu0 0
    %2597 = vmatprep.subr.bf16.mxu0 0
    %2598 = vmatpush2.bf16.msra.mxu0 0
    %2599 = vmatprep.subr.bf16.mxu0 0
    %2600 = vmatpush2.bf16.msra.mxu0 0
    %2601 = vmatprep.subr.bf16.mxu0 0
    %2602 = vmatpush2.bf16.msra.mxu0 0
    %2603 = vmatprep.mubr.bf16.mxu0 0
    %2604 = vmatmul.mubr.bf16.gmra.mxu0 %v2569
    %v2605 = vpop.f32.mrf.mxu0
    %v2606 = vadd.f32 %v2540, %v2605
    %v2607 = vpop.f32.mrf.mxu0
    %v2608 = vpop.f32.mrf.mxu0
    %v2609 = vadd.f32 %v2540, %v2608
    %v2610 = vpop.f32.mrf.mxu0
    %2611 = vdwg.mxu0
    %v2612 = vadd.f32 %v2606, %v2433
    %v2613 = vadd.f32 %v2609, %v2434
    %2614 = vst.msk [vmem:[#allocation8] sm:$0xff] %vm85, %v2612
    %2615 = vst.msk [vmem:[#allocation8 + $0x8] sm:$0xff] %vm85, %v2613
    // Predicated region
    $region26: #{tpu_custom_call.1} parent=1 // pred_check
      _
    $region27: #{tpu_custom_call.1} parent=1 // pred_check_branch
      %2617 = sbr.rel (0) target = $region29
    $region28: #{tpu_custom_call.1} parent=1 // pred_region
      %s2619 = ssub.s32 256, 256
      %2620 = vsyncadd [#allocation4], %s2619
      %s2621 = sshll.u32 [#allocation8], 4
      %s2622 = int_to_ptr.vmem [resolvable:$true] %s2621
      %2627 = dma.vmem_to_hbm [thread:$0]  %s2622, 256, %s3, [#allocation4], 128, 128, 8
    $region29: #{tpu_custom_call.1} parent=1 // pred_fallthru
      _
    // Predicated region
    $region30: #{tpu_custom_call.1} parent=1 // pred_check
      _
    $region31: #{tpu_custom_call.1} parent=1 // pred_check_branch
      %2629 = sbr.rel (0) target = $region33
    $region32: #{tpu_custom_call.1} parent=1 // pred_region
      %2630 = dma.done [#allocation4], 256
    $region33: #{tpu_custom_call.1} parent=1 // pred_fallthru
      _
    %2631 = vsyncpa [#allocation3], 1
    %2632 = vsyncpa [#allocation6], 1
    %2633 = vsyncpa [#allocation4], 1

</llo_original>
